<compile_context>
chip_gen: v5e
topology: v5e:2x2
jax: 0.10.0
libtpu: 0.0.40
codegen_flags: <defaults>
</compile_context>

<pallas_src>
import functools
import math

import jax
import jax.numpy as jnp
from jax import lax
from jax.experimental import pallas as pl
from jax.experimental.pallas import tpu as pltpu

LEAKY_SLOPE = 0.01   # nn.LeakyReLU default
BN_EPS = 1e-5        # nn.BatchNorm2d default


def _cdiv(a, b):
    return -(-a // b)


def _vmem_limit_bytes():
    """Generation-aware scoped-VMEM limit (v5e/v6e: 128 MiB physical, v7x: 64 MiB)."""
    cap = 64 * 1024 * 1024                      # conservative fallback = v7x physical
    try:
        cap = int(getattr(pltpu.get_tpu_info(), "vmem_capacity_bytes", cap))
    except Exception:
        pass
    return max(32 * 1024 * 1024, min(3 * cap // 4, 96 * 1024 * 1024))


# ------------------------------ Pallas kernels ------------------------------

def _conv_stats_kernel(xs_ref, w_ref, y_ref, st_ref, *, phase_terms, wo, chunk_tr):
    """Fused conv + per-tile BatchNorm partial statistics.

    xs_ref : (S, TR, Wq, C)     bf16  column-phase slabs, row shifts packed into C
    w_ref  : (NW, C, Cout)      bf16  one (C, Cout) matrix per column tap
    y_ref  : (PH, TR*wo, Cout)  bf16  conv output (one slab per output sub-pixel phase)
    st_ref : (1, 8, Cout)       f32   rows 0/1 = sum / sum-of-squares over this tile
    """
    tr = xs_ref.shape[1]
    c = xs_ref.shape[3]
    cout = w_ref.shape[2]
    s1 = jnp.zeros((1, cout), jnp.float32)
    s2 = jnp.zeros((1, cout), jnp.float32)
    for ph, terms in enumerate(phase_terms):                 # static, fully unrolled
        for r0 in range(0, tr, chunk_tr):                    # M-chunks: acc stays in vregs
            rows = min(chunk_tr, tr - r0)
            acc = jnp.zeros((rows * wo, cout), jnp.float32)
            for (slab, off, wi) in terms:                    # taps innermost
                x = xs_ref[slab, r0:r0 + rows, off:off + wo, :].reshape(rows * wo, c)
                acc = acc + jnp.dot(x, w_ref[wi], preferred_element_type=jnp.float32)
            y_ref[ph, r0 * wo:(r0 + rows) * wo, :] = acc.astype(y_ref.dtype)
            s1 = s1 + jnp.sum(acc, axis=0, keepdims=True)
            s2 = s2 + jnp.sum(acc * acc, axis=0, keepdims=True)
    st_ref[0] = jnp.concatenate([s1, s2, jnp.zeros((6, cout), jnp.float32)], axis=0)


def _bn_act_kernel(y_ref, sc_ref, sh_ref, o_ref, *, use_act):
    """Streaming BatchNorm apply (precomputed scale/shift) + optional LeakyReLU."""
    y = y_ref[...].astype(jnp.float32)           # BN/act math in f32 (v5e has no bf16 VPU)
    o = y * sc_ref[...] + sh_ref[...]
    if use_act:
        o = jnp.where(o > 0, o, LEAKY_SLOPE * o)
    o_ref[...] = o.astype(o_ref.dtype)


# ------------------------------ pallas wrappers ------------------------------

def _conv_bn_pallas(xs, w_mats, gamma, beta, *, phase_terms, wo, use_act, out_dtype):
    """conv+stats kernel, tiny XLA scale/shift reduction, BN+act kernel.

    xs : (S, R, Wq, C) bf16 slabs (R = N * Ho).  Returns (PH, R_pad*wo, Cout) out_dtype;
    caller crops the zero-padded rows.
    """
    S, R, Wq, C = xs.shape
    NW, _, Cout = w_mats.shape
    PH = len(phase_terms)
    vmem_limit = _vmem_limit_bytes()

    # ---- tile plan: register-sized M chunks, >=4 grid steps when rows allow ----------
    chunk_tr = max(1, 128 // max(wo, 1))          # ~128-row (M, Cout) f32 chunk accumulator
    while (chunk_tr * wo) % 8:                    # keep stores sublane-aligned
        chunk_tr += 1
    per_row = 4 * S * Wq * C + 8 * PH * wo * Cout          # double-buffered bytes per R row
    budget = vmem_limit // 3
    max_chunks = max(1, (budget // max(per_row, 1)) // chunk_tr)
    want_chunks = max(1, _cdiv(R, 4 * chunk_tr))            # >=4 steps -> >=2 per v7x core
    n_chunks = max(1, min(max_chunks, want_chunks, 16))     # cap static unroll
    tr = chunk_tr * n_chunks
    nt = _cdiv(R, tr)
    R_pad = nt * tr
    if R_pad != R:
        # zero pad rows: with no conv bias they contribute exactly 0 to the BN sums
        xs = jnp.pad(xs, ((0, 0), (0, R_pad - R), (0, 0), (0, 0)))

    # ---- kernel 1: conv + per-tile BN partial sums -----------------------------------
    y, st = pl.pallas_call(
        functools.partial(_conv_stats_kernel, phase_terms=phase_terms, wo=wo,
                          chunk_tr=chunk_tr),
        out_shape=(
            jax.ShapeDtypeStruct((PH, R_pad * wo, Cout), jnp.bfloat16),
            jax.ShapeDtypeStruct((nt, 8, Cout), jnp.float32),
        ),
        grid=(nt,),
        in_specs=[
            pl.BlockSpec((S, tr, Wq, C), lambda i: (0, i, 0, 0)),
            pl.BlockSpec((NW, C, Cout), lambda i: (0, 0, 0)),
        ],
        out_specs=(
            pl.BlockSpec((PH, tr * wo, Cout), lambda i: (0, i, 0)),
            pl.BlockSpec((1, 8, Cout), lambda i: (i, 0, 0)),
        ),
        compiler_params=pltpu.CompilerParams(
            dimension_semantics=("parallel",), vmem_limit_bytes=vmem_limit),
    )(xs, w_mats)

    # ---- tiny XLA reduction: fold batch stats + gamma/beta into per-channel scale/shift
    count = float(PH * R * wo)                    # real elements only (pad rows excluded)
    st_sum = jnp.sum(st, axis=0)                  # (8, Cout)
    mean = st_sum[0] / count
    var = jnp.maximum(st_sum[1] / count - mean * mean, 0.0)   # biased var (PyTorch train)
    scale = gamma.astype(jnp.float32) * lax.rsqrt(var + BN_EPS)
    shift = beta.astype(jnp.float32) - mean * scale
    scale = scale.reshape(1, Cout)
    shift = shift.reshape(1, Cout)

    # ---- kernel 2: streaming normalize + LeakyReLU ------------------------------------
    out = pl.pallas_call(
        functools.partial(_bn_act_kernel, use_act=use_act),
        out_shape=jax.ShapeDtypeStruct((PH, R_pad * wo, Cout), out_dtype),
        grid=(nt,),
        in_specs=[
            pl.BlockSpec((PH, tr * wo, Cout), lambda i: (0, i, 0)),
            pl.BlockSpec((1, Cout), lambda i: (0, 0)),
            pl.BlockSpec((1, Cout), lambda i: (0, 0)),
        ],
        out_specs=pl.BlockSpec((PH, tr * wo, Cout), lambda i: (0, i, 0)),
        compiler_params=pltpu.CompilerParams(
            dimension_semantics=("parallel",), vmem_limit_bytes=vmem_limit),
    )(y, scale, shift)
    return out


def _conv_block_down(x, w, gamma, beta, *, k, s, p, use_act, out_dtype):
    """Conv2d(k, stride=s, padding=p, padding_mode='reflect') -> BN -> LeakyReLU."""
    N, H, W, Cin = x.shape
    Cout = w.shape[-1]
    xp = jnp.pad(x, ((0, 0), (p, p), (p, p), (0, 0)), mode="reflect") if p else x
    Hp, Wp = xp.shape[1], xp.shape[2]
    Ho = (Hp - k) // s + 1
    Wo = (Wp - k) // s + 1
    Wq = Wo + (k - 1) // s
    if s * Wq > Wp:                               # equal slab widths for all column phases
        xp = jnp.pad(xp, ((0, 0), (0, 0), (0, s * Wq - Wp), (0, 0)))
    xp = xp.astype(jnp.bfloat16)

    # Column-phase slabs with the k row shifts folded into channels:
    #   xs[pj][n*Ho + r, q, ki*Cin + c] = xp[n, s*r + ki, s*q + pj, c]
    slabs = []
    for pj in range(s):
        rows = [xp[:, ki:ki + s * Ho:s, pj::s, :][:, :, :Wq, :] for ki in range(k)]
        slabs.append(jnp.concatenate(rows, axis=-1))
    xs = jnp.stack(slabs, 0).reshape(s, N * Ho, Wq, k * Cin)

    # One (k*Cin, Cout) weight matrix per column tap kj (row shifts stacked on rows).
    w_mats = jnp.transpose(w, (1, 0, 2, 3)).reshape(k, k * Cin, Cout).astype(jnp.bfloat16)
    terms = tuple((kj % s, kj // s, kj) for kj in range(k))

    out = _conv_bn_pallas(xs, w_mats, gamma, beta, phase_terms=(terms,), wo=Wo,
                          use_act=use_act, out_dtype=out_dtype)
    out = out[0].reshape(-1, Wo, Cout)[:N * Ho].reshape(N, Ho, Wo, Cout)
    return out


def _conv_block_up(x, w, gamma, beta, *, k, s, p, op, use_act, out_dtype):
    """ConvTranspose2d(3, stride=2, padding=1, output_padding=1) -> BN -> LeakyReLU via
    the 4-phase sub-pixel decomposition (no multiplies against dilation zeros); the two
    row shifts are packed into the contraction axis."""
    if (k, s, p, op) != (3, 2, 1, 1):
        # TODO(synk): generic (k, s, p, op) transposed-conv phase decomposition; the
        # encoder only uses ConvTranspose2d(3, stride=2, padding=1, output_padding=1).
        raise NotImplementedError("up ConvBlock supports kernel_size=3, stride=2, "
                                  "padding=1, output_padding=1 only")
    N, H, W, Cin = x.shape
    Cout = w.shape[-1]
    xz = jnp.pad(x, ((0, 0), (0, 1), (0, 1), (0, 0))).astype(jnp.bfloat16)
    # single slab, row shifts {0,1} packed into channels: (1, N*H, W+1, 2*Cin)
    xs = jnp.concatenate([xz[:, 0:H], xz[:, 1:H + 1]], axis=-1)
    xs = xs.reshape(1, N * H, W + 1, 2 * Cin)

    z = jnp.zeros((Cin, Cout), w.dtype)
    # out[n, 2r+a, 2c+b] = sum_t x_packed[n, r, c + off_t, :] @ w_mats[wi_t]
    w_mats = jnp.stack([
        jnp.concatenate([w[1, 1], z], 0),          # 0: phase (0,0), off 0
        jnp.concatenate([w[1, 2], z], 0),          # 1: phase (0,1), off 0
        jnp.concatenate([w[1, 0], z], 0),          # 2: phase (0,1), off 1
        jnp.concatenate([w[2, 1], w[0, 1]], 0),    # 3: phase (1,0), off 0
        jnp.concatenate([w[2, 2], w[0, 2]], 0),    # 4: phase (1,1), off 0
        jnp.concatenate([w[2, 0], w[0, 0]], 0),    # 5: phase (1,1), off 1
    ], 0).astype(jnp.bfloat16)
    phase_terms = (
        ((0, 0, 0),),                  # (a, b) = (0, 0)
        ((0, 0, 1), (0, 1, 2)),        # (0, 1)
        ((0, 0, 3),),                  # (1, 0)  (row shifts packed -> single tap)
        ((0, 0, 4), (0, 1, 5)),        # (1, 1)
    )
    out = _conv_bn_pallas(xs, w_mats, gamma, beta, phase_terms=phase_terms, wo=W,
                          use_act=use_act, out_dtype=out_dtype)
    # crop pad rows, then interleave the 4 phases back into (N, 2H, 2W, Cout)
    out = out.reshape(4, -1, W, Cout)[:, :N * H]
    out = out.reshape(2, 2, N, H, W, Cout)
    out = jnp.transpose(out, (2, 3, 0, 4, 1, 5)).reshape(N, 2 * H, 2 * W, Cout)
    return out


def conv_block_forward(x_nchw, w, b, gamma, beta, *, down=True, use_act=True,
                       kernel_size=3, stride=2, padding=1, output_padding=1,
                       out_dtype=jnp.float32):
    """Pallas forward of ConvBlock.

    x_nchw : (N, Cin, H, W) (PyTorch layout)
    w      : (K, K, Cin, Cout); from torch: Conv2d weight.permute(2, 3, 1, 0),
             ConvTranspose2d weight.permute(2, 3, 0, 1)
    b, gamma, beta : (Cout,).  The conv bias `b` is accepted for API parity but is not
    applied: under training-mode BatchNorm a per-channel bias cancels exactly.
    Returns (N, Cout, Ho, Wo) in `out_dtype` (use bf16 when the consumer casts anyway).
    """
    del b
    x = jnp.transpose(x_nchw, (0, 2, 3, 1)).astype(jnp.float32)     # NHWC, C on lanes
    if down:
        y = _conv_block_down(x, w, gamma, beta, k=kernel_size, s=stride,
                             p=padding, use_act=use_act, out_dtype=out_dtype)
    else:
        y = _conv_block_up(x, w, gamma, beta, k=kernel_size, s=stride, p=padding,
                           op=output_padding, use_act=use_act, out_dtype=out_dtype)
    return jnp.transpose(y, (0, 3, 1, 2))


# ------------------------- pure-XLA reference (checks) -----------------------

def conv_block_reference(x_nchw, params, *, down=True, use_act=True, kernel_size=3,
                         stride=2, padding=1, output_padding=1):
    """Reference with the same bf16 rounding of inputs/weights as the kernels."""
    k, s, p, op = kernel_size, stride, padding, output_padding
    x = jnp.transpose(x_nchw, (0, 2, 3, 1)).astype(jnp.float32)
    x = x.astype(jnp.bfloat16).astype(jnp.float32)
    w = params["w"].astype(jnp.bfloat16).astype(jnp.float32)
    if down:
        xp = jnp.pad(x, ((0, 0), (p, p), (p, p), (0, 0)), mode="reflect") if p else x
        y = lax.conv_general_dilated(xp, w, (s, s), "VALID",
                                     dimension_numbers=("NHWC", "HWIO", "NHWC"))
    else:
        y = lax.conv_general_dilated(
            x, w[::-1, ::-1], (1, 1),
            [(k - 1 - p, k - 1 - p + op), (k - 1 - p, k - 1 - p + op)],
            lhs_dilation=(s, s), dimension_numbers=("NHWC", "HWIO", "NHWC"))
    y = y + params["b"].astype(jnp.float32)
    mean = jnp.mean(y, axis=(0, 1, 2))
    var = jnp.mean(jnp.square(y - mean), axis=(0, 1, 2))
    o = (y - mean) * lax.rsqrt(var + BN_EPS) * params["gamma"] + params["beta"]
    if use_act:
        o = jnp.where(o > 0, o, LEAKY_SLOPE * o)
    return jnp.transpose(o, (0, 3, 1, 2))


# --------------------------------- params ------------------------------------

def init_conv_block_params(key, cin, cout, k):
    kw, kb = jax.random.split(key)
    bound = 1.0 / math.sqrt(cin * k * k)
    return dict(
        w=jax.random.uniform(kw, (k, k, cin, cout), jnp.float32, -bound, bound),
        b=jax.random.uniform(kb, (cout,), jnp.float32, -bound, bound),
        gamma=jnp.ones((cout,), jnp.float32),
        beta=jnp.zeros((cout,), jnp.float32),
    )


# ---------------------------------- main --------------------------------------

if __name__ == "__main__":
    N, CIN, H, W = 2, 64, 64, 64
    key = jax.random.PRNGKey(0)
    k1, k2, k3, kx = jax.random.split(key, 4)
    x = jax.random.normal(kx, (N, CIN, H, W), jnp.float32)

    # Exercise the three ways the encoder uses ConvBlock:
    #   down-sampling conv, stride-1 conv without activation (residual body), up conv.
    # Intermediate blocks emit bf16 (consumer casts to bf16 anyway); final block f32.
    blocks = [
        (dict(down=True, use_act=True, kernel_size=3, stride=2, padding=1),
         init_conv_block_params(k1, 64, 128, 3), jnp.bfloat16),
        (dict(down=True, use_act=False, kernel_size=3, stride=1, padding=1),
         init_conv_block_params(k2, 128, 128, 3), jnp.bfloat16),
        (dict(down=False, use_act=True, kernel_size=3, stride=2, padding=1,
              output_padding=1),
         init_conv_block_params(k3, 128, 128, 3), jnp.float32),
    ]

    h = x
    for cfg, prm, odt in blocks:
        fwd = jax.jit(functools.partial(conv_block_forward, out_dtype=odt, **cfg))
        out = jax.block_until_ready(
            fwd(h, prm["w"], prm["b"], prm["gamma"], prm["beta"]))
        ref = jax.jit(functools.partial(conv_block_reference, **cfg))(h, prm)
        err = float(jnp.max(jnp.abs(out.astype(jnp.float32) - ref)))
        assert err < 0.1, f"mismatch vs reference: {err}"
        assert bool(jnp.all(jnp.isfinite(out.astype(jnp.float32))))
        h = out

    assert h.shape == (N, 128, H, W) and h.dtype == jnp.float32
    print("KERNEL_OK")
</pallas_src>

<mosaic_0001>
module attributes {stable_mosaic.version = 11 : i64} {
  func.func @_conv_stats_kernel(%arg0: i32, %arg1: memref<2x16x33x192xbf16, #tpu.memory_space<vmem>>, %arg2: memref<3x192x128xbf16, #tpu.memory_space<vmem>>, %arg3: memref<1x512x128xbf16, #tpu.memory_space<vmem>>, %arg4: memref<1x8x128xf32, #tpu.memory_space<vmem>>) attributes {dimension_semantics = [#tpu.dimension_semantics<parallel>], iteration_bounds = array<i64: 4>, scalar_prefetch = 0 : i64, scratch_operands = 0 : i64, tpu.core_type = #tpu.core_type<tc>, window_params = [{transform_indices = @transform_0, window_bounds = array<i64: 2, 16, 33, 192>}, {pipeline_mode = #tpu.pipeline_mode<synchronous>, transform_indices = @transform_1, window_bounds = array<i64: 3, 192, 128>}, {transform_indices = @transform_2, window_bounds = array<i64: 1, 512, 128>}, {transform_indices = @transform_3, window_bounds = array<i64: 1, 8, 128>}]} {
    %cst = arith.constant 0.000000e+00 : f32
    %0 = vector.broadcast %cst : f32 to vector<1x128xf32>
    %cst_0 = arith.constant 0.000000e+00 : f32
    %1 = vector.broadcast %cst_0 : f32 to vector<1x128xf32>
    %cst_1 = arith.constant 0.000000e+00 : f32
    %2 = vector.broadcast %cst_1 : f32 to vector<128x128xf32>
    %c0 = arith.constant 0 : index
    %c0_2 = arith.constant 0 : index
    %c0_3 = arith.constant 0 : index
    %c0_4 = arith.constant 0 : index
    %3 = vector.load %arg1[%c0, %c0_2, %c0_3, %c0_4] : memref<2x16x33x192xbf16, #tpu.memory_space<vmem>>, vector<1x4x32x192xbf16>
    %4 = vector.shape_cast %3 : vector<1x4x32x192xbf16> to vector<4x32x192xbf16>
    %5 = vector.shape_cast %4 : vector<4x32x192xbf16> to vector<128x192xbf16>
    %c0_5 = arith.constant 0 : index
    %c0_6 = arith.constant 0 : index
    %c0_7 = arith.constant 0 : index
    %6 = vector.load %arg2[%c0_5, %c0_6, %c0_7] : memref<3x192x128xbf16, #tpu.memory_space<vmem>>, vector<1x192x128xbf16>
    %7 = vector.shape_cast %6 : vector<1x192x128xbf16> to vector<192x128xbf16>
    %cst_8 = arith.constant dense<0.000000e+00> : vector<128x128xf32>
    %8 = tpu.matmul %5, %7, %cst_8 {dimension_numbers = #tpu.dot_dimension_numbers<[1], [0], [0], [1], [0, 0, 1, 1], [], []>} : vector<128x192xbf16>, vector<192x128xbf16>, vector<128x128xf32> -> vector<128x128xf32>
    %9 = arith.addf %2, %8 : vector<128x128xf32>
    %c1 = arith.constant 1 : index
    %c0_9 = arith.constant 0 : index
    %c0_10 = arith.constant 0 : index
    %c0_11 = arith.constant 0 : index
    %10 = vector.load %arg1[%c1, %c0_9, %c0_10, %c0_11] : memref<2x16x33x192xbf16, #tpu.memory_space<vmem>>, vector<1x4x32x192xbf16>
    %11 = vector.shape_cast %10 : vector<1x4x32x192xbf16> to vector<4x32x192xbf16>
    %12 = vector.shape_cast %11 : vector<4x32x192xbf16> to vector<128x192xbf16>
    %c1_12 = arith.constant 1 : index
    %c0_13 = arith.constant 0 : index
    %c0_14 = arith.constant 0 : index
    %13 = vector.load %arg2[%c1_12, %c0_13, %c0_14] : memref<3x192x128xbf16, #tpu.memory_space<vmem>>, vector<1x192x128xbf16>
    %14 = vector.shape_cast %13 : vector<1x192x128xbf16> to vector<192x128xbf16>
    %cst_15 = arith.constant dense<0.000000e+00> : vector<128x128xf32>
    %15 = tpu.matmul %12, %14, %cst_15 {dimension_numbers = #tpu.dot_dimension_numbers<[1], [0], [0], [1], [0, 0, 1, 1], [], []>} : vector<128x192xbf16>, vector<192x128xbf16>, vector<128x128xf32> -> vector<128x128xf32>
    %16 = arith.addf %9, %15 : vector<128x128xf32>
    %c0_16 = arith.constant 0 : index
    %c0_17 = arith.constant 0 : index
    %c1_18 = arith.constant 1 : index
    %c0_19 = arith.constant 0 : index
    %17 = vector.load %arg1[%c0_16, %c0_17, %c1_18, %c0_19] : memref<2x16x33x192xbf16, #tpu.memory_space<vmem>>, vector<1x4x32x192xbf16>
    %18 = vector.shape_cast %17 : vector<1x4x32x192xbf16> to vector<4x32x192xbf16>
    %19 = vector.shape_cast %18 : vector<4x32x192xbf16> to vector<128x192xbf16>
    %c2 = arith.constant 2 : index
    %c0_20 = arith.constant 0 : index
    %c0_21 = arith.constant 0 : index
    %20 = vector.load %arg2[%c2, %c0_20, %c0_21] : memref<3x192x128xbf16, #tpu.memory_space<vmem>>, vector<1x192x128xbf16>
    %21 = vector.shape_cast %20 : vector<1x192x128xbf16> to vector<192x128xbf16>
    %cst_22 = arith.constant dense<0.000000e+00> : vector<128x128xf32>
    %22 = tpu.matmul %19, %21, %cst_22 {dimension_numbers = #tpu.dot_dimension_numbers<[1], [0], [0], [1], [0, 0, 1, 1], [], []>} : vector<128x192xbf16>, vector<192x128xbf16>, vector<128x128xf32> -> vector<128x128xf32>
    %23 = arith.addf %16, %22 : vector<128x128xf32>
    %24 = arith.truncf %23 : vector<128x128xf32> to vector<128x128xbf16>
    %c0_23 = arith.constant 0 : index
    %c0_24 = arith.constant 0 : index
    %c0_25 = arith.constant 0 : index
    %25 = vector.load %arg3[%c0_23, %c0_24, %c0_25] : memref<1x512x128xbf16, #tpu.memory_space<vmem>>, vector<1x128x128xbf16>
    %26 = vector.shape_cast %25 : vector<1x128x128xbf16> to vector<128x128xbf16>
    %27 = vector.shape_cast %24 : vector<128x128xbf16> to vector<1x128x128xbf16>
    tpu.vector_store %arg3[%c0_23, %c0_24, %c0_25], %27 {strides = array<i32>} : memref<1x512x128xbf16, #tpu.memory_space<vmem>>, vector<1x128x128xbf16>,
    %cst_26 = arith.constant dense<0.000000e+00> : vector<128xf32>
    %28 = vector.multi_reduction <add>, %23, %cst_26 [0] : vector<128x128xf32> to vector<128xf32>
    %29 = vector.shape_cast %28 : vector<128xf32> to vector<1x128xf32>
    %30 = arith.addf %0, %29 : vector<1x128xf32>
    %31 = arith.mulf %23, %23 : vector<128x128xf32>
    %cst_27 = arith.constant dense<0.000000e+00> : vector<128xf32>
    %32 = vector.multi_reduction <add>, %31, %cst_27 [0] : vector<128x128xf32> to vector<128xf32>
    %33 = vector.shape_cast %32 : vector<128xf32> to vector<1x128xf32>
    %34 = arith.addf %1, %33 : vector<1x128xf32>
    %cst_28 = arith.constant 0.000000e+00 : f32
    %35 = vector.broadcast %cst_28 : f32 to vector<128x128xf32>
    %c0_29 = arith.constant 0 : index
    %c4 = arith.constant 4 : index
    %c0_30 = arith.constant 0 : index
    %c0_31 = arith.constant 0 : index
    %36 = vector.load %arg1[%c0_29, %c4, %c0_30, %c0_31] : memref<2x16x33x192xbf16, #tpu.memory_space<vmem>>, vector<1x4x32x192xbf16>
    %37 = vector.shape_cast %36 : vector<1x4x32x192xbf16> to vector<4x32x192xbf16>
    %38 = vector.shape_cast %37 : vector<4x32x192xbf16> to vector<128x192xbf16>
    %c0_32 = arith.constant 0 : index
    %c0_33 = arith.constant 0 : index
    %c0_34 = arith.constant 0 : index
    %39 = vector.load %arg2[%c0_32, %c0_33, %c0_34] : memref<3x192x128xbf16, #tpu.memory_space<vmem>>, vector<1x192x128xbf16>
    %40 = vector.shape_cast %39 : vector<1x192x128xbf16> to vector<192x128xbf16>
    %cst_35 = arith.constant dense<0.000000e+00> : vector<128x128xf32>
    %41 = tpu.matmul %38, %40, %cst_35 {dimension_numbers = #tpu.dot_dimension_numbers<[1], [0], [0], [1], [0, 0, 1, 1], [], []>} : vector<128x192xbf16>, vector<192x128xbf16>, vector<128x128xf32> -> vector<128x128xf32>
    %42 = arith.addf %35, %41 : vector<128x128xf32>
    %c1_36 = arith.constant 1 : index
    %c4_37 = arith.constant 4 : index
    %c0_38 = arith.constant 0 : index
    %c0_39 = arith.constant 0 : index
    %43 = vector.load %arg1[%c1_36, %c4_37, %c0_38, %c0_39] : memref<2x16x33x192xbf16, #tpu.memory_space<vmem>>, vector<1x4x32x192xbf16>
    %44 = vector.shape_cast %43 : vector<1x4x32x192xbf16> to vector<4x32x192xbf16>
    %45 = vector.shape_cast %44 : vector<4x32x192xbf16> to vector<128x192xbf16>
    %c1_40 = arith.constant 1 : index
    %c0_41 = arith.constant 0 : index
    %c0_42 = arith.constant 0 : index
    %46 = vector.load %arg2[%c1_40, %c0_41, %c0_42] : memref<3x192x128xbf16, #tpu.memory_space<vmem>>, vector<1x192x128xbf16>
    %47 = vector.shape_cast %46 : vector<1x192x128xbf16> to vector<192x128xbf16>
    %cst_43 = arith.constant dense<0.000000e+00> : vector<128x128xf32>
    %48 = tpu.matmul %45, %47, %cst_43 {dimension_numbers = #tpu.dot_dimension_numbers<[1], [0], [0], [1], [0, 0, 1, 1], [], []>} : vector<128x192xbf16>, vector<192x128xbf16>, vector<128x128xf32> -> vector<128x128xf32>
    %49 = arith.addf %42, %48 : vector<128x128xf32>
    %c0_44 = arith.constant 0 : index
    %c4_45 = arith.constant 4 : index
    %c1_46 = arith.constant 1 : index
    %c0_47 = arith.constant 0 : index
    %50 = vector.load %arg1[%c0_44, %c4_45, %c1_46, %c0_47] : memref<2x16x33x192xbf16, #tpu.memory_space<vmem>>, vector<1x4x32x192xbf16>
    %51 = vector.shape_cast %50 : vector<1x4x32x192xbf16> to vector<4x32x192xbf16>
    %52 = vector.shape_cast %51 : vector<4x32x192xbf16> to vector<128x192xbf16>
    %c2_48 = arith.constant 2 : index
    %c0_49 = arith.constant 0 : index
    %c0_50 = arith.constant 0 : index
    %53 = vector.load %arg2[%c2_48, %c0_49, %c0_50] : memref<3x192x128xbf16, #tpu.memory_space<vmem>>, vector<1x192x128xbf16>
    %54 = vector.shape_cast %53 : vector<1x192x128xbf16> to vector<192x128xbf16>
    %cst_51 = arith.constant dense<0.000000e+00> : vector<128x128xf32>
    %55 = tpu.matmul %52, %54, %cst_51 {dimension_numbers = #tpu.dot_dimension_numbers<[1], [0], [0], [1], [0, 0, 1, 1], [], []>} : vector<128x192xbf16>, vector<192x128xbf16>, vector<128x128xf32> -> vector<128x128xf32>
    %56 = arith.addf %49, %55 : vector<128x128xf32>
    %57 = arith.truncf %56 : vector<128x128xf32> to vector<128x128xbf16>
    %c0_52 = arith.constant 0 : index
    %c128 = arith.constant 128 : index
    %c0_53 = arith.constant 0 : index
    %58 = vector.load %arg3[%c0_52, %c128, %c0_53] : memref<1x512x128xbf16, #tpu.memory_space<vmem>>, vector<1x128x128xbf16>
    %59 = vector.shape_cast %58 : vector<1x128x128xbf16> to vector<128x128xbf16>
    %60 = vector.shape_cast %57 : vector<128x128xbf16> to vector<1x128x128xbf16>
    tpu.vector_store %arg3[%c0_52, %c128, %c0_53], %60 {strides = array<i32>} : memref<1x512x128xbf16, #tpu.memory_space<vmem>>, vector<1x128x128xbf16>,
    %cst_54 = arith.constant dense<0.000000e+00> : vector<128xf32>
    %61 = vector.multi_reduction <add>, %56, %cst_54 [0] : vector<128x128xf32> to vector<128xf32>
    %62 = vector.shape_cast %61 : vector<128xf32> to vector<1x128xf32>
    %63 = arith.addf %30, %62 : vector<1x128xf32>
    %64 = arith.mulf %56, %56 : vector<128x128xf32>
    %cst_55 = arith.constant dense<0.000000e+00> : vector<128xf32>
    %65 = vector.multi_reduction <add>, %64, %cst_55 [0] : vector<128x128xf32> to vector<128xf32>
    %66 = vector.shape_cast %65 : vector<128xf32> to vector<1x128xf32>
    %67 = arith.addf %34, %66 : vector<1x128xf32>
    %cst_56 = arith.constant 0.000000e+00 : f32
    %68 = vector.broadcast %cst_56 : f32 to vector<128x128xf32>
    %c0_57 = arith.constant 0 : index
    %c8 = arith.constant 8 : index
    %c0_58 = arith.constant 0 : index
    %c0_59 = arith.constant 0 : index
    %69 = vector.load %arg1[%c0_57, %c8, %c0_58, %c0_59] : memref<2x16x33x192xbf16, #tpu.memory_space<vmem>>, vector<1x4x32x192xbf16>
    %70 = vector.shape_cast %69 : vector<1x4x32x192xbf16> to vector<4x32x192xbf16>
    %71 = vector.shape_cast %70 : vector<4x32x192xbf16> to vector<128x192xbf16>
    %c0_60 = arith.constant 0 : index
    %c0_61 = arith.constant 0 : index
    %c0_62 = arith.constant 0 : index
    %72 = vector.load %arg2[%c0_60, %c0_61, %c0_62] : memref<3x192x128xbf16, #tpu.memory_space<vmem>>, vector<1x192x128xbf16>
    %73 = vector.shape_cast %72 : vector<1x192x128xbf16> to vector<192x128xbf16>
    %cst_63 = arith.constant dense<0.000000e+00> : vector<128x128xf32>
    %74 = tpu.matmul %71, %73, %cst_63 {dimension_numbers = #tpu.dot_dimension_numbers<[1], [0], [0], [1], [0, 0, 1, 1], [], []>} : vector<128x192xbf16>, vector<192x128xbf16>, vector<128x128xf32> -> vector<128x128xf32>
    %75 = arith.addf %68, %74 : vector<128x128xf32>
    %c1_64 = arith.constant 1 : index
    %c8_65 = arith.constant 8 : index
    %c0_66 = arith.constant 0 : index
    %c0_67 = arith.constant 0 : index
    %76 = vector.load %arg1[%c1_64, %c8_65, %c0_66, %c0_67] : memref<2x16x33x192xbf16, #tpu.memory_space<vmem>>, vector<1x4x32x192xbf16>
    %77 = vector.shape_cast %76 : vector<1x4x32x192xbf16> to vector<4x32x192xbf16>
    %78 = vector.shape_cast %77 : vector<4x32x192xbf16> to vector<128x192xbf16>
    %c1_68 = arith.constant 1 : index
    %c0_69 = arith.constant 0 : index
    %c0_70 = arith.constant 0 : index
    %79 = vector.load %arg2[%c1_68, %c0_69, %c0_70] : memref<3x192x128xbf16, #tpu.memory_space<vmem>>, vector<1x192x128xbf16>
    %80 = vector.shape_cast %79 : vector<1x192x128xbf16> to vector<192x128xbf16>
    %cst_71 = arith.constant dense<0.000000e+00> : vector<128x128xf32>
    %81 = tpu.matmul %78, %80, %cst_71 {dimension_numbers = #tpu.dot_dimension_numbers<[1], [0], [0], [1], [0, 0, 1, 1], [], []>} : vector<128x192xbf16>, vector<192x128xbf16>, vector<128x128xf32> -> vector<128x128xf32>
    %82 = arith.addf %75, %81 : vector<128x128xf32>
    %c0_72 = arith.constant 0 : index
    %c8_73 = arith.constant 8 : index
    %c1_74 = arith.constant 1 : index
    %c0_75 = arith.constant 0 : index
    %83 = vector.load %arg1[%c0_72, %c8_73, %c1_74, %c0_75] : memref<2x16x33x192xbf16, #tpu.memory_space<vmem>>, vector<1x4x32x192xbf16>
    %84 = vector.shape_cast %83 : vector<1x4x32x192xbf16> to vector<4x32x192xbf16>
    %85 = vector.shape_cast %84 : vector<4x32x192xbf16> to vector<128x192xbf16>
    %c2_76 = arith.constant 2 : index
    %c0_77 = arith.constant 0 : index
    %c0_78 = arith.constant 0 : index
    %86 = vector.load %arg2[%c2_76, %c0_77, %c0_78] : memref<3x192x128xbf16, #tpu.memory_space<vmem>>, vector<1x192x128xbf16>
    %87 = vector.shape_cast %86 : vector<1x192x128xbf16> to vector<192x128xbf16>
    %cst_79 = arith.constant dense<0.000000e+00> : vector<128x128xf32>
    %88 = tpu.matmul %85, %87, %cst_79 {dimension_numbers = #tpu.dot_dimension_numbers<[1], [0], [0], [1], [0, 0, 1, 1], [], []>} : vector<128x192xbf16>, vector<192x128xbf16>, vector<128x128xf32> -> vector<128x128xf32>
    %89 = arith.addf %82, %88 : vector<128x128xf32>
    %90 = arith.truncf %89 : vector<128x128xf32> to vector<128x128xbf16>
    %c0_80 = arith.constant 0 : index
    %c256 = arith.constant 256 : index
    %c0_81 = arith.constant 0 : index
    %91 = vector.load %arg3[%c0_80, %c256, %c0_81] : memref<1x512x128xbf16, #tpu.memory_space<vmem>>, vector<1x128x128xbf16>
    %92 = vector.shape_cast %91 : vector<1x128x128xbf16> to vector<128x128xbf16>
    %93 = vector.shape_cast %90 : vector<128x128xbf16> to vector<1x128x128xbf16>
    tpu.vector_store %arg3[%c0_80, %c256, %c0_81], %93 {strides = array<i32>} : memref<1x512x128xbf16, #tpu.memory_space<vmem>>, vector<1x128x128xbf16>,
    %cst_82 = arith.constant dense<0.000000e+00> : vector<128xf32>
    %94 = vector.multi_reduction <add>, %89, %cst_82 [0] : vector<128x128xf32> to vector<128xf32>
    %95 = vector.shape_cast %94 : vector<128xf32> to vector<1x128xf32>
    %96 = arith.addf %63, %95 : vector<1x128xf32>
    %97 = arith.mulf %89, %89 : vector<128x128xf32>
    %cst_83 = arith.constant dense<0.000000e+00> : vector<128xf32>
    %98 = vector.multi_reduction <add>, %97, %cst_83 [0] : vector<128x128xf32> to vector<128xf32>
    %99 = vector.shape_cast %98 : vector<128xf32> to vector<1x128xf32>
    %100 = arith.addf %67, %99 : vector<1x128xf32>
    %cst_84 = arith.constant 0.000000e+00 : f32
    %101 = vector.broadcast %cst_84 : f32 to vector<128x128xf32>
    %c0_85 = arith.constant 0 : index
    %c12 = arith.constant 12 : index
    %c0_86 = arith.constant 0 : index
    %c0_87 = arith.constant 0 : index
    %102 = vector.load %arg1[%c0_85, %c12, %c0_86, %c0_87] : memref<2x16x33x192xbf16, #tpu.memory_space<vmem>>, vector<1x4x32x192xbf16>
    %103 = vector.shape_cast %102 : vector<1x4x32x192xbf16> to vector<4x32x192xbf16>
    %104 = vector.shape_cast %103 : vector<4x32x192xbf16> to vector<128x192xbf16>
    %c0_88 = arith.constant 0 : index
    %c0_89 = arith.constant 0 : index
    %c0_90 = arith.constant 0 : index
    %105 = vector.load %arg2[%c0_88, %c0_89, %c0_90] : memref<3x192x128xbf16, #tpu.memory_space<vmem>>, vector<1x192x128xbf16>
    %106 = vector.shape_cast %105 : vector<1x192x128xbf16> to vector<192x128xbf16>
    %cst_91 = arith.constant dense<0.000000e+00> : vector<128x128xf32>
    %107 = tpu.matmul %104, %106, %cst_91 {dimension_numbers = #tpu.dot_dimension_numbers<[1], [0], [0], [1], [0, 0, 1, 1], [], []>} : vector<128x192xbf16>, vector<192x128xbf16>, vector<128x128xf32> -> vector<128x128xf32>
    %108 = arith.addf %101, %107 : vector<128x128xf32>
    %c1_92 = arith.constant 1 : index
    %c12_93 = arith.constant 12 : index
    %c0_94 = arith.constant 0 : index
    %c0_95 = arith.constant 0 : index
    %109 = vector.load %arg1[%c1_92, %c12_93, %c0_94, %c0_95] : memref<2x16x33x192xbf16, #tpu.memory_space<vmem>>, vector<1x4x32x192xbf16>
    %110 = vector.shape_cast %109 : vector<1x4x32x192xbf16> to vector<4x32x192xbf16>
    %111 = vector.shape_cast %110 : vector<4x32x192xbf16> to vector<128x192xbf16>
    %c1_96 = arith.constant 1 : index
    %c0_97 = arith.constant 0 : index
    %c0_98 = arith.constant 0 : index
    %112 = vector.load %arg2[%c1_96, %c0_97, %c0_98] : memref<3x192x128xbf16, #tpu.memory_space<vmem>>, vector<1x192x128xbf16>
    %113 = vector.shape_cast %112 : vector<1x192x128xbf16> to vector<192x128xbf16>
    %cst_99 = arith.constant dense<0.000000e+00> : vector<128x128xf32>
    %114 = tpu.matmul %111, %113, %cst_99 {dimension_numbers = #tpu.dot_dimension_numbers<[1], [0], [0], [1], [0, 0, 1, 1], [], []>} : vector<128x192xbf16>, vector<192x128xbf16>, vector<128x128xf32> -> vector<128x128xf32>
    %115 = arith.addf %108, %114 : vector<128x128xf32>
    %c0_100 = arith.constant 0 : index
    %c12_101 = arith.constant 12 : index
    %c1_102 = arith.constant 1 : index
    %c0_103 = arith.constant 0 : index
    %116 = vector.load %arg1[%c0_100, %c12_101, %c1_102, %c0_103] : memref<2x16x33x192xbf16, #tpu.memory_space<vmem>>, vector<1x4x32x192xbf16>
    %117 = vector.shape_cast %116 : vector<1x4x32x192xbf16> to vector<4x32x192xbf16>
    %118 = vector.shape_cast %117 : vector<4x32x192xbf16> to vector<128x192xbf16>
    %c2_104 = arith.constant 2 : index
    %c0_105 = arith.constant 0 : index
    %c0_106 = arith.constant 0 : index
    %119 = vector.load %arg2[%c2_104, %c0_105, %c0_106] : memref<3x192x128xbf16, #tpu.memory_space<vmem>>, vector<1x192x128xbf16>
    %120 = vector.shape_cast %119 : vector<1x192x128xbf16> to vector<192x128xbf16>
    %cst_107 = arith.constant dense<0.000000e+00> : vector<128x128xf32>
    %121 = tpu.matmul %118, %120, %cst_107 {dimension_numbers = #tpu.dot_dimension_numbers<[1], [0], [0], [1], [0, 0, 1, 1], [], []>} : vector<128x192xbf16>, vector<192x128xbf16>, vector<128x128xf32> -> vector<128x128xf32>
    %122 = arith.addf %115, %121 : vector<128x128xf32>
    %123 = arith.truncf %122 : vector<128x128xf32> to vector<128x128xbf16>
    %c0_108 = arith.constant 0 : index
    %c384 = arith.constant 384 : index
    %c0_109 = arith.constant 0 : index
    %124 = vector.load %arg3[%c0_108, %c384, %c0_109] : memref<1x512x128xbf16, #tpu.memory_space<vmem>>, vector<1x128x128xbf16>
    %125 = vector.shape_cast %124 : vector<1x128x128xbf16> to vector<128x128xbf16>
    %126 = vector.shape_cast %123 : vector<128x128xbf16> to vector<1x128x128xbf16>
    tpu.vector_store %arg3[%c0_108, %c384, %c0_109], %126 {strides = array<i32>} : memref<1x512x128xbf16, #tpu.memory_space<vmem>>, vector<1x128x128xbf16>,
    %cst_110 = arith.constant dense<0.000000e+00> : vector<128xf32>
    %127 = vector.multi_reduction <add>, %122, %cst_110 [0] : vector<128x128xf32> to vector<128xf32>
    %128 = vector.shape_cast %127 : vector<128xf32> to vector<1x128xf32>
    %129 = arith.addf %96, %128 : vector<1x128xf32>
    %130 = arith.mulf %122, %122 : vector<128x128xf32>
    %cst_111 = arith.constant dense<0.000000e+00> : vector<128xf32>
    %131 = vector.multi_reduction <add>, %130, %cst_111 [0] : vector<128x128xf32> to vector<128xf32>
    %132 = vector.shape_cast %131 : vector<128xf32> to vector<1x128xf32>
    %133 = arith.addf %100, %132 : vector<1x128xf32>
    %cst_112 = arith.constant 0.000000e+00 : f32
    %134 = vector.broadcast %cst_112 : f32 to vector<6x128xf32>
    %135 = tpu.concatenate %129, %133, %134 in 0 : vector<1x128xf32>, vector<1x128xf32>, vector<6x128xf32> -> vector<8x128xf32>
    %c0_113 = arith.constant 0 : index
    %c0_114 = arith.constant 0 : index
    %c0_115 = arith.constant 0 : index
    %136 = vector.load %arg4[%c0_113, %c0_114, %c0_115] : memref<1x8x128xf32, #tpu.memory_space<vmem>>, vector<1x8x128xf32>
    %137 = vector.shape_cast %136 : vector<1x8x128xf32> to vector<8x128xf32>
    %138 = vector.shape_cast %135 : vector<8x128xf32> to vector<1x8x128xf32>
    tpu.vector_store %arg4[%c0_113, %c0_114, %c0_115], %138 {strides = array<i32>} : memref<1x8x128xf32, #tpu.memory_space<vmem>>, vector<1x8x128xf32>,
    return
  }
  func.func @transform_0(%arg0: i32) -> (i32, i32, i32, i32) {
    %c0_i32 = arith.constant 0 : i32
    %c0_i32_0 = arith.constant 0 : i32
    %c0_i32_1 = arith.constant 0 : i32
    %c0_i32_2 = arith.constant 0 : i32
    return %c0_i32, %arg0, %c0_i32_0, %c0_i32_1 : i32, i32, i32, i32
  }
  func.func @transform_1(%arg0: i32) -> (i32, i32, i32) {
    %c0_i32 = arith.constant 0 : i32
    %c0_i32_0 = arith.constant 0 : i32
    %c0_i32_1 = arith.constant 0 : i32
    %c0_i32_2 = arith.constant 0 : i32
    return %c0_i32, %c0_i32_0, %c0_i32_1 : i32, i32, i32
  }
  func.func @transform_2(%arg0: i32) -> (i32, i32, i32) {
    %c0_i32 = arith.constant 0 : i32
    %c0_i32_0 = arith.constant 0 : i32
    %c0_i32_1 = arith.constant 0 : i32
    return %c0_i32, %arg0, %c0_i32_0 : i32, i32, i32
  }
  func.func @transform_3(%arg0: i32) -> (i32, i32, i32) {
    %c0_i32 = arith.constant 0 : i32
    %c0_i32_0 = arith.constant 0 : i32
    %c0_i32_1 = arith.constant 0 : i32
    return %arg0, %c0_i32, %c0_i32_0 : i32, i32, i32
  }
}

module attributes {stable_mosaic.version = 11 : i64} {
  func.func @_bn_act_kernel(%arg0: i32, %arg1: memref<1x512x128xbf16, #tpu.memory_space<vmem>>, %arg2: memref<1x128xf32, #tpu.memory_space<vmem>>, %arg3: memref<1x128xf32, #tpu.memory_space<vmem>>, %arg4: memref<1x512x128xbf16, #tpu.memory_space<vmem>>) attributes {dimension_semantics = [#tpu.dimension_semantics<parallel>], iteration_bounds = array<i64: 4>, scalar_prefetch = 0 : i64, scratch_operands = 0 : i64, tpu.core_type = #tpu.core_type<tc>, window_params = [{transform_indices = @transform_0, window_bounds = array<i64: 1, 512, 128>}, {pipeline_mode = #tpu.pipeline_mode<synchronous>, transform_indices = @transform_1, window_bounds = array<i64: 1, 128>}, {pipeline_mode = #tpu.pipeline_mode<synchronous>, transform_indices = @transform_2, window_bounds = array<i64: 1, 128>}, {transform_indices = @transform_3, window_bounds = array<i64: 1, 512, 128>}]} {
    %c0 = arith.constant 0 : index
    %c0_0 = arith.constant 0 : index
    %c0_1 = arith.constant 0 : index
    %0 = vector.load %arg1[%c0, %c0_0, %c0_1] : memref<1x512x128xbf16, #tpu.memory_space<vmem>>, vector<1x512x128xbf16>
    %1 = arith.extf %0 : vector<1x512x128xbf16> to vector<1x512x128xf32>
    %c0_2 = arith.constant 0 : index
    %c0_3 = arith.constant 0 : index
    %2 = vector.load %arg2[%c0_2, %c0_3] : memref<1x128xf32, #tpu.memory_space<vmem>>, vector<1x128xf32>
    %3 = vector.shape_cast %2 : vector<1x128xf32> to vector<1x1x128xf32>
    %4 = vector.broadcast %3 : vector<1x1x128xf32> to vector<1x512x128xf32>
    %5 = arith.mulf %1, %4 : vector<1x512x128xf32>
    %c0_4 = arith.constant 0 : index
    %c0_5 = arith.constant 0 : index
    %6 = vector.load %arg3[%c0_4, %c0_5] : memref<1x128xf32, #tpu.memory_space<vmem>>, vector<1x128xf32>
    %7 = vector.shape_cast %6 : vector<1x128xf32> to vector<1x1x128xf32>
    %8 = vector.broadcast %7 : vector<1x1x128xf32> to vector<1x512x128xf32>
    %9 = arith.addf %5, %8 : vector<1x512x128xf32>
    %cst = arith.constant 0.000000e+00 : f32
    %10 = vector.broadcast %cst : f32 to vector<1x512x128xf32>
    %11 = arith.cmpf ogt, %9, %10 : vector<1x512x128xf32>
    %cst_6 = arith.constant 0.00999999977 : f32
    %12 = vector.broadcast %cst_6 : f32 to vector<1x512x128xf32>
    %13 = arith.mulf %12, %9 : vector<1x512x128xf32>
    %14 = arith.select %11, %9, %13 : vector<1x512x128xi1>, vector<1x512x128xf32>
    %15 = arith.truncf %14 : vector<1x512x128xf32> to vector<1x512x128xbf16>
    %c0_7 = arith.constant 0 : index
    %c0_8 = arith.constant 0 : index
    %c0_9 = arith.constant 0 : index
    %16 = vector.load %arg4[%c0_7, %c0_8, %c0_9] : memref<1x512x128xbf16, #tpu.memory_space<vmem>>, vector<1x512x128xbf16>
    tpu.vector_store %arg4[%c0_7, %c0_8, %c0_9], %15 {strides = array<i32>} : memref<1x512x128xbf16, #tpu.memory_space<vmem>>, vector<1x512x128xbf16>,
    return
  }
  func.func @transform_0(%arg0: i32) -> (i32, i32, i32) {
    %c0_i32 = arith.constant 0 : i32
    %c0_i32_0 = arith.constant 0 : i32
    %c0_i32_1 = arith.constant 0 : i32
    return %c0_i32, %arg0, %c0_i32_0 : i32, i32, i32
  }
  func.func @transform_1(%arg0: i32) -> (i32, i32) {
    %c0_i32 = arith.constant 0 : i32
    %c0_i32_0 = arith.constant 0 : i32
    %c0_i32_1 = arith.constant 0 : i32
    return %c0_i32, %c0_i32_0 : i32, i32
  }
  func.func @transform_2(%arg0: i32) -> (i32, i32) {
    %c0_i32 = arith.constant 0 : i32
    %c0_i32_0 = arith.constant 0 : i32
    %c0_i32_1 = arith.constant 0 : i32
    return %c0_i32, %c0_i32_0 : i32, i32
  }
  func.func @transform_3(%arg0: i32) -> (i32, i32, i32) {
    %c0_i32 = arith.constant 0 : i32
    %c0_i32_0 = arith.constant 0 : i32
    %c0_i32_1 = arith.constant 0 : i32
    return %c0_i32, %arg0, %c0_i32_0 : i32, i32, i32
  }
}

</mosaic_0001>

<llo_original>
// kernel: conv_block_forward.3
$region0: #{conv_block_forward.3}
  #allocation0 [shape = 'u32[]', space=smem, size = 0x4, offset = 0x4, fixed_abs, tag = 'smem constant byte address 0x4 - core index']
  #allocation1 [shape = 'u32[72,128]{1,0:T(1,128)}', space=vmem, size = 0x9000, scoped, tag = 'internal scratch']
  %s0 = inlined_call_operand.vmem [shape: bf16[1,2048,128], index: 0, kind: input, shape index: {}]
  %s1 = inlined_call_operand.vmem [shape: f32[1,128], index: 1, kind: input, shape index: {}]
  %s2 = inlined_call_operand.vmem [shape: f32[1,128], index: 2, kind: input, shape index: {}]
  %s3 = inlined_call_operand.hbm [shape: bf16[1,2048,128], index: 3, kind: output, shape index: {}]
  %s4 = sld [smem:[#allocation0]]
  $region45: #{conv_block_forward.3} parent=0
    _
  %s6 = ssub.s32 1, %s4
  %s7 = scalar_select 0, %s6, %s4
  $region1: #{conv_block_forward.3} parent=0
    #allocation2 [shape = 'u8[262144]{0}', space=vmem, size = 0x40000, scoped, tag = 'output window, operand 0']
    #allocation3 [shape = 's32[2]{0}', space=sflag, size = 0x8, scoped, tag = 'scoped memory for conv_block_forward.3']
    %8 = vsyncpa [#allocation3], 0
    %s9 = scalar_lea.sflag [#allocation3], 1
    %10 = vsyncpa %s9, 0
    loop: start=0, step=1, limit=6
    $region2: #{conv_block_forward.3} parent=1 // loop_pre_header
      _
    $region3: #{conv_block_forward.3} parent=1 // loop_header
      %s12 = sphi 0, %s16
      %p13 = scmp.ge.s32.totalorder %s12, 6
      %s22 = sphi 0, %s24
      %s25 = sphi 0, %s22
      %s26 = sphi 0, %s25
      %s42 = sphi 0, %s26
      %s46 = sphi 0, %s46
      %s48 = sphi 0, %s46
      %s49 = sphi 0, %s48
      %s63 = sphi 0, %s49
      %s67 = sphi 0, %s67
      %s69 = sphi 0, %s67
      %s70 = sphi 0, %s69
      %s84 = sphi 0, %s70
      %s90 = sphi 0, %s92
      %s93 = sphi 0, %s90
      %s94 = sphi 0, %s93
      %s110 = sphi 0, %s94
    $region4: #{conv_block_forward.3} parent=1 // loop_header_branch
      %15 = sbr.rel (%p13) target = $region8
    $region5: #{conv_block_forward.3} parent=1 // loop_body
      %s17 = ssub.s32 %s12, 1
      %s18 = ssub.s32 %s12, 2
      %s19 = sadd.s32 %s12, 1
      %s20 = ssub.s32 %s12, %s19
      %p21 = scmp.eq.s32.totalorder %s20, 0
      %s23 = sadd.s32 %s22, 1
      %s24 = scalar_select %p21, %s22, %s23
      %p27 = pneg %p21
      %p28 = scmp.eq.s32.totalorder %s12, 3
      %p29 = por %p27, %p28
      %p30 = scmp.ne.s32.totalorder %s22, %s25
      %p31 = scmp.eq.s32.totalorder %s12, 0
      %p32 = por %p30, %p31
      %p33 = scmp.ne.s32.totalorder %s22, %s25
      %p34 = scmp.eq.s32.totalorder %s17, 3
      %p35 = por %p33, %p34
      %p36 = scmp.ne.s32.totalorder %s25, %s26
      %p37 = scmp.eq.s32.totalorder %s17, 0
      %p38 = por %p36, %p37
      %p39 = scmp.ne.s32.totalorder %s25, %s26
      %p40 = scmp.eq.s32.totalorder %s18, 3
      %p41 = por %p39, %p40
      %p43 = scmp.ne.s32.totalorder %s26, %s42
      %p44 = scmp.eq.s32.totalorder %s18, 0
      %p45 = por %p43, %p44
      %s47 = sadd.s32 %s46, 1
      %p50 = scmp.eq.s32.totalorder %s12, 3
      %p51 = scmp.ne.s32.totalorder %s46, %s48
      %p52 = scmp.eq.s32.totalorder %s12, 0
      %p53 = por %p51, %p52
      %p54 = scmp.ne.s32.totalorder %s46, %s48
      %p55 = scmp.eq.s32.totalorder %s17, 3
      %p56 = por %p54, %p55
      %p57 = scmp.ne.s32.totalorder %s48, %s49
      %p58 = scmp.eq.s32.totalorder %s17, 0
      %p59 = por %p57, %p58
      %p60 = scmp.ne.s32.totalorder %s48, %s49
      %p61 = scmp.eq.s32.totalorder %s18, 3
      %p62 = por %p60, %p61
      %p64 = scmp.ne.s32.totalorder %s49, %s63
      %p65 = scmp.eq.s32.totalorder %s18, 0
      %p66 = por %p64, %p65
      %s68 = sadd.s32 %s67, 1
      %p71 = scmp.eq.s32.totalorder %s12, 3
      %p72 = scmp.ne.s32.totalorder %s67, %s69
      %p73 = scmp.eq.s32.totalorder %s12, 0
      %p74 = por %p72, %p73
      %p75 = scmp.ne.s32.totalorder %s67, %s69
      %p76 = scmp.eq.s32.totalorder %s17, 3
      %p77 = por %p75, %p76
      %p78 = scmp.ne.s32.totalorder %s69, %s70
      %p79 = scmp.eq.s32.totalorder %s17, 0
      %p80 = por %p78, %p79
      %p81 = scmp.ne.s32.totalorder %s69, %s70
      %p82 = scmp.eq.s32.totalorder %s18, 3
      %p83 = por %p81, %p82
      %p85 = scmp.ne.s32.totalorder %s70, %s84
      %p86 = scmp.eq.s32.totalorder %s18, 0
      %p87 = por %p85, %p86
      %s88 = ssub.s32 %s12, %s19
      %p89 = scmp.eq.s32.totalorder %s88, 0
      %s91 = sadd.s32 %s90, 1
      %s92 = scalar_select %p89, %s90, %s91
      %p95 = pneg %p89
      %p96 = scmp.eq.s32.totalorder %s12, 3
      %p97 = por %p95, %p96
      %p98 = scmp.ne.s32.totalorder %s90, %s93
      %p99 = scmp.eq.s32.totalorder %s12, 0
      %p100 = por %p98, %p99
      %p101 = scmp.ne.s32.totalorder %s90, %s93
      %p102 = scmp.eq.s32.totalorder %s17, 3
      %p103 = por %p101, %p102
      %p104 = scmp.ne.s32.totalorder %s93, %s94
      %p105 = scmp.eq.s32.totalorder %s17, 0
      %p106 = por %p104, %p105
      %p107 = scmp.ne.s32.totalorder %s93, %s94
      %p108 = scmp.eq.s32.totalorder %s18, 3
      %p109 = por %p107, %p108
      %p111 = scmp.ne.s32.totalorder %s94, %s110
      %p112 = scmp.eq.s32.totalorder %s18, 0
      %p113 = por %p111, %p112
      %p114 = scmp.le.s32.totalorder 1, %s12
      %p115 = scmp.lt.s32.totalorder %s12, 5
      %p116 = pnand %p114, %p115
      %p117 = pneg %p116
      // Predicated region
      $region9: #{conv_block_forward.3} parent=5 // pred_check
        _
      $region10: #{conv_block_forward.3} parent=5 // pred_check_branch
        %119 = sbr.rel (%p116) target = $region12
      $region11: #{conv_block_forward.3} parent=5 // pred_region
        %s120 = ssub.s32 %s12, 1
        // Predicated region
        $region13: #{conv_block_forward.3} parent=11 // pred_check
          %p121 = pneg %p59
        $region14: #{conv_block_forward.3} parent=11 // pred_check_branch
          %123 = sbr.rel (%p121) target = $region16
        $region15: #{conv_block_forward.3} parent=11 // pred_region
          _
        $region16: #{conv_block_forward.3} parent=11 // pred_fallthru
          _
        // Predicated region
        $region17: #{conv_block_forward.3} parent=11 // pred_check
          %p124 = pneg %p80
        $region18: #{conv_block_forward.3} parent=11 // pred_check_branch
          %126 = sbr.rel (%p124) target = $region20
        $region19: #{conv_block_forward.3} parent=11 // pred_region
          _
        $region20: #{conv_block_forward.3} parent=11 // pred_fallthru
          _
      $region12: #{conv_block_forward.3} parent=5 // pred_fallthru
        _
      %p127 = scmp.lt.s32.totalorder %s12, 4
      // Predicated region
      $region21: #{conv_block_forward.3} parent=5 // pred_check
        %p128 = pneg %p127
      $region22: #{conv_block_forward.3} parent=5 // pred_check_branch
        %130 = sbr.rel (%p128) target = $region24
      $region23: #{conv_block_forward.3} parent=5 // pred_region
        // Predicated region
        $region25: #{conv_block_forward.3} parent=23 // pred_check
          %p131 = pneg %p32
        $region26: #{conv_block_forward.3} parent=23 // pred_check_branch
          %133 = sbr.rel (%p131) target = $region28
        $region27: #{conv_block_forward.3} parent=23 // pred_region
          %s134 = smul.u32 64, %s12
          %p135 = scmp.lt.s32.totalorder %s134, 255
          %s136 = scalar_select %p135, %s134, 255
          %s137 = smul.addr %s136, 4
          %s138 = scalar_lea.vmem %s0, %s137
          %s139 = smul.u32 64, %s12
        $region28: #{conv_block_forward.3} parent=23 // pred_fallthru
          _
      $region24: #{conv_block_forward.3} parent=5 // pred_fallthru
        _
      %p140 = scmp.le.s32.totalorder 1, %s12
      %p141 = scmp.lt.s32.totalorder %s12, 5
      %p142 = pnand %p140, %p141
      %p143 = pneg %p142
      // Predicated region
      $region29: #{conv_block_forward.3} parent=5 // pred_check
        _
      $region30: #{conv_block_forward.3} parent=5 // pred_check_branch
        %145 = sbr.rel (%p142) target = $region32
      $region31: #{conv_block_forward.3} parent=5 // pred_region
        %s146 = ssub.s32 %s12, 1
        %s147 = smul.u32 64, %s17
        %p148 = scmp.lt.s32.totalorder %s147, 255
        %s149 = scalar_select %p148, %s147, 255
        %s150 = smul.addr %s149, 4
        %s151 = scalar_lea.vmem %s0, %s150
        %p152 = pneg %p38
        %p153 = pneg %p35
        %p154 = pneg %p59
        %p155 = pneg %p56
        %p156 = pneg %p80
        %p157 = pneg %p77
        %p158 = pneg %p106
        %p159 = pneg %p103
        %s160 = sand.u32 %s93, 1
        %s161 = scalar_lea.sflag [#allocation3], %s160
        %s162 = sand.u32 %s93, 1
        %s163 = smul.addr %s162, 256
        %s164 = scalar_lea.vmem [#allocation2], %s163
        %s165 = smul.u32 64, %s17
        %p166 = scmp.lt.s32.totalorder %s165, 255
        %s167 = scalar_select %p166, %s165, 255
        %s168 = smul.addr %s167, 4
        %s169 = scalar_lea.vmem %s0, %s168
        %s170 = smul.u32 64, %s17
        %s171 = smul.u32 64, %s17
        %v172 = vld [vmem:[%s169] sm:$0xf]
        %v173 = vld [vmem:[%s169 + $0x4] sm:$0xf]
        %v174 = vld [vmem:[%s169 + $0x8] sm:$0xf]
        %v175 = vld [vmem:[%s169 + $0xc] sm:$0xf]
        %v176 = vld [vmem:[%s169 + $0x10] sm:$0xf]
        %v177 = vld [vmem:[%s169 + $0x14] sm:$0xf]
        %v178 = vld [vmem:[%s169 + $0x18] sm:$0xf]
        %v179 = vld [vmem:[%s169 + $0x1c] sm:$0xf]
        %v180 = vld [vmem:[%s169 + $0x20] sm:$0xf]
        %v181 = vld [vmem:[%s169 + $0x24] sm:$0xf]
        %v182 = vld [vmem:[%s169 + $0x28] sm:$0xf]
        %v183 = vld [vmem:[%s169 + $0x2c] sm:$0xf]
        %v184 = vld [vmem:[%s169 + $0x30] sm:$0xf]
        %v185 = vld [vmem:[%s169 + $0x34] sm:$0xf]
        %v186 = vld [vmem:[%s169 + $0x38] sm:$0xf]
        %v187 = vld [vmem:[%s169 + $0x3c] sm:$0xf]
        %v188 = vld [vmem:[%s169 + $0x40] sm:$0xf]
        %v189 = vld [vmem:[%s169 + $0x44] sm:$0xf]
        %v190 = vld [vmem:[%s169 + $0x48] sm:$0xf]
        %v191 = vld [vmem:[%s169 + $0x4c] sm:$0xf]
        %v192 = vld [vmem:[%s169 + $0x50] sm:$0xf]
        %v193 = vld [vmem:[%s169 + $0x54] sm:$0xf]
        %v194 = vld [vmem:[%s169 + $0x58] sm:$0xf]
        %v195 = vld [vmem:[%s169 + $0x5c] sm:$0xf]
        %v196 = vld [vmem:[%s169 + $0x60] sm:$0xf]
        %v197 = vld [vmem:[%s169 + $0x64] sm:$0xf]
        %v198 = vld [vmem:[%s169 + $0x68] sm:$0xf]
        %v199 = vld [vmem:[%s169 + $0x6c] sm:$0xf]
        %v200 = vld [vmem:[%s169 + $0x70] sm:$0xf]
        %v201 = vld [vmem:[%s169 + $0x74] sm:$0xf]
        %v202 = vld [vmem:[%s169 + $0x78] sm:$0xf]
        %v203 = vld [vmem:[%s169 + $0x7c] sm:$0xf]
        %v204 = vld [vmem:[%s169 + $0x80] sm:$0xf]
        %v205 = vld [vmem:[%s169 + $0x84] sm:$0xf]
        %v206 = vld [vmem:[%s169 + $0x88] sm:$0xf]
        %v207 = vld [vmem:[%s169 + $0x8c] sm:$0xf]
        %v208 = vld [vmem:[%s169 + $0x90] sm:$0xf]
        %v209 = vld [vmem:[%s169 + $0x94] sm:$0xf]
        %v210 = vld [vmem:[%s169 + $0x98] sm:$0xf]
        %v211 = vld [vmem:[%s169 + $0x9c] sm:$0xf]
        %v212 = vld [vmem:[%s169 + $0xa0] sm:$0xf]
        %v213 = vld [vmem:[%s169 + $0xa4] sm:$0xf]
        %v214 = vld [vmem:[%s169 + $0xa8] sm:$0xf]
        %v215 = vld [vmem:[%s169 + $0xac] sm:$0xf]
        %v216 = vld [vmem:[%s169 + $0xb0] sm:$0xf]
        %v217 = vld [vmem:[%s169 + $0xb4] sm:$0xf]
        %v218 = vld [vmem:[%s169 + $0xb8] sm:$0xf]
        %v219 = vld [vmem:[%s169 + $0xbc] sm:$0xf]
        %v220 = vld [vmem:[%s169 + $0xc0] sm:$0xf]
        %v221 = vld [vmem:[%s169 + $0xc4] sm:$0xf]
        %v222 = vld [vmem:[%s169 + $0xc8] sm:$0xf]
        %v223 = vld [vmem:[%s169 + $0xcc] sm:$0xf]
        %v224 = vld [vmem:[%s169 + $0xd0] sm:$0xf]
        %v225 = vld [vmem:[%s169 + $0xd4] sm:$0xf]
        %v226 = vld [vmem:[%s169 + $0xd8] sm:$0xf]
        %v227 = vld [vmem:[%s169 + $0xdc] sm:$0xf]
        %v228 = vld [vmem:[%s169 + $0xe0] sm:$0xf]
        %v229 = vld [vmem:[%s169 + $0xe4] sm:$0xf]
        %v230 = vld [vmem:[%s169 + $0xe8] sm:$0xf]
        %v231 = vld [vmem:[%s169 + $0xec] sm:$0xf]
        %v232 = vld [vmem:[%s169 + $0xf0] sm:$0xf]
        %v233 = vld [vmem:[%s169 + $0xf4] sm:$0xf]
        %v234 = vld [vmem:[%s169 + $0xf8] sm:$0xf]
        %v235 = vld [vmem:[%s169 + $0xfc] sm:$0xf]
        %v236 = vunpack.c.l.bf16 %v172
        %v237 = vunpack.c.l.bf16 %v173
        %v238 = vunpack.c.l.bf16 %v174
        %v239 = vunpack.c.l.bf16 %v175
        %v240 = vunpack.c.l.bf16 %v176
        %v241 = vunpack.c.l.bf16 %v177
        %v242 = vunpack.c.l.bf16 %v178
        %v243 = vunpack.c.l.bf16 %v179
        %v244 = vunpack.c.l.bf16 %v180
        %v245 = vunpack.c.l.bf16 %v181
        %v246 = vunpack.c.l.bf16 %v182
        %v247 = vunpack.c.l.bf16 %v183
        %v248 = vunpack.c.l.bf16 %v184
        %v249 = vunpack.c.l.bf16 %v185
        %v250 = vunpack.c.l.bf16 %v186
        %v251 = vunpack.c.l.bf16 %v187
        %v252 = vunpack.c.l.bf16 %v188
        %v253 = vunpack.c.l.bf16 %v189
        %v254 = vunpack.c.l.bf16 %v190
        %v255 = vunpack.c.l.bf16 %v191
        %v256 = vunpack.c.l.bf16 %v192
        %v257 = vunpack.c.l.bf16 %v193
        %v258 = vunpack.c.l.bf16 %v194
        %v259 = vunpack.c.l.bf16 %v195
        %v260 = vunpack.c.l.bf16 %v196
        %v261 = vunpack.c.l.bf16 %v197
        %v262 = vunpack.c.l.bf16 %v198
        %v263 = vunpack.c.l.bf16 %v199
        %v264 = vunpack.c.l.bf16 %v200
        %v265 = vunpack.c.l.bf16 %v201
        %v266 = vunpack.c.l.bf16 %v202
        %v267 = vunpack.c.l.bf16 %v203
        %v268 = vunpack.c.l.bf16 %v204
        %v269 = vunpack.c.l.bf16 %v205
        %v270 = vunpack.c.l.bf16 %v206
        %v271 = vunpack.c.l.bf16 %v207
        %v272 = vunpack.c.l.bf16 %v208
        %v273 = vunpack.c.l.bf16 %v209
        %v274 = vunpack.c.l.bf16 %v210
        %v275 = vunpack.c.l.bf16 %v211
        %v276 = vunpack.c.l.bf16 %v212
        %v277 = vunpack.c.l.bf16 %v213
        %v278 = vunpack.c.l.bf16 %v214
        %v279 = vunpack.c.l.bf16 %v215
        %v280 = vunpack.c.l.bf16 %v216
        %v281 = vunpack.c.l.bf16 %v217
        %v282 = vunpack.c.l.bf16 %v218
        %v283 = vunpack.c.l.bf16 %v219
        %v284 = vunpack.c.l.bf16 %v220
        %v285 = vunpack.c.l.bf16 %v221
        %v286 = vunpack.c.l.bf16 %v222
        %v287 = vunpack.c.l.bf16 %v223
        %v288 = vunpack.c.l.bf16 %v224
        %v289 = vunpack.c.l.bf16 %v225
        %v290 = vunpack.c.l.bf16 %v226
        %v291 = vunpack.c.l.bf16 %v227
        %v292 = vunpack.c.l.bf16 %v228
        %v293 = vunpack.c.l.bf16 %v229
        %v294 = vunpack.c.l.bf16 %v230
        %v295 = vunpack.c.l.bf16 %v231
        %v296 = vunpack.c.l.bf16 %v232
        %v297 = vunpack.c.l.bf16 %v233
        %v298 = vunpack.c.l.bf16 %v234
        %v299 = vunpack.c.l.bf16 %v235
        %v300 = vld [vmem:[%s1] sm:$0x1]
        %v302 = vperm.slane %v300, 0
        %v304 = vmul.f32 %v236, %v302
        %v305 = vmul.f32 %v237, %v302
        %v306 = vmul.f32 %v238, %v302
        %v307 = vmul.f32 %v239, %v302
        %v308 = vmul.f32 %v240, %v302
        %v309 = vmul.f32 %v241, %v302
        %v310 = vmul.f32 %v242, %v302
        %v311 = vmul.f32 %v243, %v302
        %v312 = vmul.f32 %v244, %v302
        %v313 = vmul.f32 %v245, %v302
        %v314 = vmul.f32 %v246, %v302
        %v315 = vmul.f32 %v247, %v302
        %v316 = vmul.f32 %v248, %v302
        %v317 = vmul.f32 %v249, %v302
        %v318 = vmul.f32 %v250, %v302
        %v319 = vmul.f32 %v251, %v302
        %v320 = vmul.f32 %v252, %v302
        %v321 = vmul.f32 %v253, %v302
        %v322 = vmul.f32 %v254, %v302
        %v323 = vmul.f32 %v255, %v302
        %v324 = vmul.f32 %v256, %v302
        %v325 = vmul.f32 %v257, %v302
        %v326 = vmul.f32 %v258, %v302
        %v327 = vmul.f32 %v259, %v302
        %v328 = vmul.f32 %v260, %v302
        %v329 = vmul.f32 %v261, %v302
        %v330 = vmul.f32 %v262, %v302
        %v331 = vmul.f32 %v263, %v302
        %v332 = vmul.f32 %v264, %v302
        %v333 = vmul.f32 %v265, %v302
        %v334 = vmul.f32 %v266, %v302
        %v335 = vmul.f32 %v267, %v302
        %v336 = vmul.f32 %v268, %v302
        %v337 = vmul.f32 %v269, %v302
        %v338 = vmul.f32 %v270, %v302
        %v339 = vmul.f32 %v271, %v302
        %v340 = vmul.f32 %v272, %v302
        %v341 = vmul.f32 %v273, %v302
        %v342 = vmul.f32 %v274, %v302
        %v343 = vmul.f32 %v275, %v302
        %v344 = vmul.f32 %v276, %v302
        %v345 = vmul.f32 %v277, %v302
        %v346 = vmul.f32 %v278, %v302
        %v347 = vmul.f32 %v279, %v302
        %v348 = vmul.f32 %v280, %v302
        %v349 = vmul.f32 %v281, %v302
        %v350 = vmul.f32 %v282, %v302
        %v351 = vmul.f32 %v283, %v302
        %v352 = vmul.f32 %v284, %v302
        %v353 = vmul.f32 %v285, %v302
        %v354 = vmul.f32 %v286, %v302
        %v355 = vmul.f32 %v287, %v302
        %v356 = vmul.f32 %v288, %v302
        %v357 = vmul.f32 %v289, %v302
        %v358 = vmul.f32 %v290, %v302
        %v359 = vmul.f32 %v291, %v302
        %v360 = vmul.f32 %v292, %v302
        %v361 = vmul.f32 %v293, %v302
        %v362 = vmul.f32 %v294, %v302
        %v363 = vmul.f32 %v295, %v302
        %v364 = vmul.f32 %v296, %v302
        %v365 = vmul.f32 %v297, %v302
        %v366 = vmul.f32 %v298, %v302
        %v367 = vmul.f32 %v299, %v302
        %v368 = vld [vmem:[%s2] sm:$0x1]
        %v370 = vperm.slane %v368, 0
        %v372 = vadd.f32 %v304, %v370
        %v373 = vadd.f32 %v305, %v370
        %v374 = vadd.f32 %v306, %v370
        %v375 = vadd.f32 %v307, %v370
        %v376 = vadd.f32 %v308, %v370
        %v377 = vadd.f32 %v309, %v370
        %v378 = vadd.f32 %v310, %v370
        %v379 = vadd.f32 %v311, %v370
        %v380 = vadd.f32 %v312, %v370
        %v381 = vadd.f32 %v313, %v370
        %v382 = vadd.f32 %v314, %v370
        %v383 = vadd.f32 %v315, %v370
        %v384 = vadd.f32 %v316, %v370
        %v385 = vadd.f32 %v317, %v370
        %v386 = vadd.f32 %v318, %v370
        %v387 = vadd.f32 %v319, %v370
        %v388 = vadd.f32 %v320, %v370
        %v389 = vadd.f32 %v321, %v370
        %v390 = vadd.f32 %v322, %v370
        %v391 = vadd.f32 %v323, %v370
        %v392 = vadd.f32 %v324, %v370
        %v393 = vadd.f32 %v325, %v370
        %v394 = vadd.f32 %v326, %v370
        %v395 = vadd.f32 %v327, %v370
        %v396 = vadd.f32 %v328, %v370
        %v397 = vadd.f32 %v329, %v370
        %v398 = vadd.f32 %v330, %v370
        %v399 = vadd.f32 %v331, %v370
        %v400 = vadd.f32 %v332, %v370
        %v401 = vadd.f32 %v333, %v370
        %v402 = vadd.f32 %v334, %v370
        %v403 = vadd.f32 %v335, %v370
        %v404 = vadd.f32 %v336, %v370
        %v405 = vadd.f32 %v337, %v370
        %v406 = vadd.f32 %v338, %v370
        %v407 = vadd.f32 %v339, %v370
        %v408 = vadd.f32 %v340, %v370
        %v409 = vadd.f32 %v341, %v370
        %v410 = vadd.f32 %v342, %v370
        %v411 = vadd.f32 %v343, %v370
        %v412 = vadd.f32 %v344, %v370
        %v413 = vadd.f32 %v345, %v370
        %v414 = vadd.f32 %v346, %v370
        %v415 = vadd.f32 %v347, %v370
        %v416 = vadd.f32 %v348, %v370
        %v417 = vadd.f32 %v349, %v370
        %v418 = vadd.f32 %v350, %v370
        %v419 = vadd.f32 %v351, %v370
        %v420 = vadd.f32 %v352, %v370
        %v421 = vadd.f32 %v353, %v370
        %v422 = vadd.f32 %v354, %v370
        %v423 = vadd.f32 %v355, %v370
        %v424 = vadd.f32 %v356, %v370
        %v425 = vadd.f32 %v357, %v370
        %v426 = vadd.f32 %v358, %v370
        %v427 = vadd.f32 %v359, %v370
        %v428 = vadd.f32 %v360, %v370
        %v429 = vadd.f32 %v361, %v370
        %v430 = vadd.f32 %v362, %v370
        %v431 = vadd.f32 %v363, %v370
        %v432 = vadd.f32 %v364, %v370
        %v433 = vadd.f32 %v365, %v370
        %v434 = vadd.f32 %v366, %v370
        %v435 = vadd.f32 %v367, %v370
        %vm436 = vcmp.gt.f32.partialorder %v372, 0.0
        %vm437 = vcmp.gt.f32.partialorder %v373, 0.0
        %vm438 = vcmp.gt.f32.partialorder %v374, 0.0
        %vm439 = vcmp.gt.f32.partialorder %v375, 0.0
        %vm440 = vcmp.gt.f32.partialorder %v376, 0.0
        %vm441 = vcmp.gt.f32.partialorder %v377, 0.0
        %vm442 = vcmp.gt.f32.partialorder %v378, 0.0
        %vm443 = vcmp.gt.f32.partialorder %v379, 0.0
        %vm444 = vcmp.gt.f32.partialorder %v380, 0.0
        %vm445 = vcmp.gt.f32.partialorder %v381, 0.0
        %vm446 = vcmp.gt.f32.partialorder %v382, 0.0
        %vm447 = vcmp.gt.f32.partialorder %v383, 0.0
        %vm448 = vcmp.gt.f32.partialorder %v384, 0.0
        %vm449 = vcmp.gt.f32.partialorder %v385, 0.0
        %vm450 = vcmp.gt.f32.partialorder %v386, 0.0
        %vm451 = vcmp.gt.f32.partialorder %v387, 0.0
        %vm452 = vcmp.gt.f32.partialorder %v388, 0.0
        %vm453 = vcmp.gt.f32.partialorder %v389, 0.0
        %vm454 = vcmp.gt.f32.partialorder %v390, 0.0
        %vm455 = vcmp.gt.f32.partialorder %v391, 0.0
        %vm456 = vcmp.gt.f32.partialorder %v392, 0.0
        %vm457 = vcmp.gt.f32.partialorder %v393, 0.0
        %vm458 = vcmp.gt.f32.partialorder %v394, 0.0
        %vm459 = vcmp.gt.f32.partialorder %v395, 0.0
        %vm460 = vcmp.gt.f32.partialorder %v396, 0.0
        %vm461 = vcmp.gt.f32.partialorder %v397, 0.0
        %vm462 = vcmp.gt.f32.partialorder %v398, 0.0
        %vm463 = vcmp.gt.f32.partialorder %v399, 0.0
        %vm464 = vcmp.gt.f32.partialorder %v400, 0.0
        %vm465 = vcmp.gt.f32.partialorder %v401, 0.0
        %vm466 = vcmp.gt.f32.partialorder %v402, 0.0
        %vm467 = vcmp.gt.f32.partialorder %v403, 0.0
        %vm468 = vcmp.gt.f32.partialorder %v404, 0.0
        %vm469 = vcmp.gt.f32.partialorder %v405, 0.0
        %vm470 = vcmp.gt.f32.partialorder %v406, 0.0
        %vm471 = vcmp.gt.f32.partialorder %v407, 0.0
        %vm472 = vcmp.gt.f32.partialorder %v408, 0.0
        %vm473 = vcmp.gt.f32.partialorder %v409, 0.0
        %vm474 = vcmp.gt.f32.partialorder %v410, 0.0
        %vm475 = vcmp.gt.f32.partialorder %v411, 0.0
        %vm476 = vcmp.gt.f32.partialorder %v412, 0.0
        %vm477 = vcmp.gt.f32.partialorder %v413, 0.0
        %vm478 = vcmp.gt.f32.partialorder %v414, 0.0
        %vm479 = vcmp.gt.f32.partialorder %v415, 0.0
        %vm480 = vcmp.gt.f32.partialorder %v416, 0.0
        %vm481 = vcmp.gt.f32.partialorder %v417, 0.0
        %vm482 = vcmp.gt.f32.partialorder %v418, 0.0
        %vm483 = vcmp.gt.f32.partialorder %v419, 0.0
        %vm484 = vcmp.gt.f32.partialorder %v420, 0.0
        %vm485 = vcmp.gt.f32.partialorder %v421, 0.0
        %vm486 = vcmp.gt.f32.partialorder %v422, 0.0
        %vm487 = vcmp.gt.f32.partialorder %v423, 0.0
        %vm488 = vcmp.gt.f32.partialorder %v424, 0.0
        %vm489 = vcmp.gt.f32.partialorder %v425, 0.0
        %vm490 = vcmp.gt.f32.partialorder %v426, 0.0
        %vm491 = vcmp.gt.f32.partialorder %v427, 0.0
        %vm492 = vcmp.gt.f32.partialorder %v428, 0.0
        %vm493 = vcmp.gt.f32.partialorder %v429, 0.0
        %vm494 = vcmp.gt.f32.partialorder %v430, 0.0
        %vm495 = vcmp.gt.f32.partialorder %v431, 0.0
        %vm496 = vcmp.gt.f32.partialorder %v432, 0.0
        %vm497 = vcmp.gt.f32.partialorder %v433, 0.0
        %vm498 = vcmp.gt.f32.partialorder %v434, 0.0
        %vm499 = vcmp.gt.f32.partialorder %v435, 0.0
        %v500 = vmul.f32 %v372, 0.01
        %v501 = vmul.f32 %v373, 0.01
        %v502 = vmul.f32 %v374, 0.01
        %v503 = vmul.f32 %v375, 0.01
        %v504 = vmul.f32 %v376, 0.01
        %v505 = vmul.f32 %v377, 0.01
        %v506 = vmul.f32 %v378, 0.01
        %v507 = vmul.f32 %v379, 0.01
        %v508 = vmul.f32 %v380, 0.01
        %v509 = vmul.f32 %v381, 0.01
        %v510 = vmul.f32 %v382, 0.01
        %v511 = vmul.f32 %v383, 0.01
        %v512 = vmul.f32 %v384, 0.01
        %v513 = vmul.f32 %v385, 0.01
        %v514 = vmul.f32 %v386, 0.01
        %v515 = vmul.f32 %v387, 0.01
        %v516 = vmul.f32 %v388, 0.01
        %v517 = vmul.f32 %v389, 0.01
        %v518 = vmul.f32 %v390, 0.01
        %v519 = vmul.f32 %v391, 0.01
        %v520 = vmul.f32 %v392, 0.01
        %v521 = vmul.f32 %v393, 0.01
        %v522 = vmul.f32 %v394, 0.01
        %v523 = vmul.f32 %v395, 0.01
        %v524 = vmul.f32 %v396, 0.01
        %v525 = vmul.f32 %v397, 0.01
        %v526 = vmul.f32 %v398, 0.01
        %v527 = vmul.f32 %v399, 0.01
        %v528 = vmul.f32 %v400, 0.01
        %v529 = vmul.f32 %v401, 0.01
        %v530 = vmul.f32 %v402, 0.01
        %v531 = vmul.f32 %v403, 0.01
        %v532 = vmul.f32 %v404, 0.01
        %v533 = vmul.f32 %v405, 0.01
        %v534 = vmul.f32 %v406, 0.01
        %v535 = vmul.f32 %v407, 0.01
        %v536 = vmul.f32 %v408, 0.01
        %v537 = vmul.f32 %v409, 0.01
        %v538 = vmul.f32 %v410, 0.01
        %v539 = vmul.f32 %v411, 0.01
        %v540 = vmul.f32 %v412, 0.01
        %v541 = vmul.f32 %v413, 0.01
        %v542 = vmul.f32 %v414, 0.01
        %v543 = vmul.f32 %v415, 0.01
        %v544 = vmul.f32 %v416, 0.01
        %v545 = vmul.f32 %v417, 0.01
        %v546 = vmul.f32 %v418, 0.01
        %v547 = vmul.f32 %v419, 0.01
        %v548 = vmul.f32 %v420, 0.01
        %v549 = vmul.f32 %v421, 0.01
        %v550 = vmul.f32 %v422, 0.01
        %v551 = vmul.f32 %v423, 0.01
        %v552 = vmul.f32 %v424, 0.01
        %v553 = vmul.f32 %v425, 0.01
        %v554 = vmul.f32 %v426, 0.01
        %v555 = vmul.f32 %v427, 0.01
        %v556 = vmul.f32 %v428, 0.01
        %v557 = vmul.f32 %v429, 0.01
        %v558 = vmul.f32 %v430, 0.01
        %v559 = vmul.f32 %v431, 0.01
        %v560 = vmul.f32 %v432, 0.01
        %v561 = vmul.f32 %v433, 0.01
        %v562 = vmul.f32 %v434, 0.01
        %v563 = vmul.f32 %v435, 0.01
        %v564 = vsel %vm436, %v372, %v500
        %v565 = vsel %vm437, %v373, %v501
        %v566 = vsel %vm438, %v374, %v502
        %v567 = vsel %vm439, %v375, %v503
        %v568 = vsel %vm440, %v376, %v504
        %v569 = vsel %vm441, %v377, %v505
        %v570 = vsel %vm442, %v378, %v506
        %v571 = vsel %vm443, %v379, %v507
        %v572 = vsel %vm444, %v380, %v508
        %v573 = vsel %vm445, %v381, %v509
        %v574 = vsel %vm446, %v382, %v510
        %v575 = vsel %vm447, %v383, %v511
        %v576 = vsel %vm448, %v384, %v512
        %v577 = vsel %vm449, %v385, %v513
        %v578 = vsel %vm450, %v386, %v514
        %v579 = vsel %vm451, %v387, %v515
        %v580 = vsel %vm452, %v388, %v516
        %v581 = vsel %vm453, %v389, %v517
        %v582 = vsel %vm454, %v390, %v518
        %v583 = vsel %vm455, %v391, %v519
        %v584 = vsel %vm456, %v392, %v520
        %v585 = vsel %vm457, %v393, %v521
        %v586 = vsel %vm458, %v394, %v522
        %v587 = vsel %vm459, %v395, %v523
        %v588 = vsel %vm460, %v396, %v524
        %v589 = vsel %vm461, %v397, %v525
        %v590 = vsel %vm462, %v398, %v526
        %v591 = vsel %vm463, %v399, %v527
        %v592 = vsel %vm464, %v400, %v528
        %v593 = vsel %vm465, %v401, %v529
        %v594 = vsel %vm466, %v402, %v530
        %v595 = vsel %vm467, %v403, %v531
        %v596 = vsel %vm468, %v404, %v532
        %v597 = vsel %vm469, %v405, %v533
        %v598 = vsel %vm470, %v406, %v534
        %v599 = vsel %vm471, %v407, %v535
        %v600 = vsel %vm472, %v408, %v536
        %v601 = vsel %vm473, %v409, %v537
        %v602 = vsel %vm474, %v410, %v538
        %v603 = vsel %vm475, %v411, %v539
        %v604 = vsel %vm476, %v412, %v540
        %v605 = vsel %vm477, %v413, %v541
        %v606 = vsel %vm478, %v414, %v542
        %v607 = vsel %vm479, %v415, %v543
        %v608 = vsel %vm480, %v416, %v544
        %v609 = vsel %vm481, %v417, %v545
        %v610 = vsel %vm482, %v418, %v546
        %v611 = vsel %vm483, %v419, %v547
        %v612 = vsel %vm484, %v420, %v548
        %v613 = vsel %vm485, %v421, %v549
        %v614 = vsel %vm486, %v422, %v550
        %v615 = vsel %vm487, %v423, %v551
        %v616 = vsel %vm488, %v424, %v552
        %v617 = vsel %vm489, %v425, %v553
        %v618 = vsel %vm490, %v426, %v554
        %v619 = vsel %vm491, %v427, %v555
        %v620 = vsel %vm492, %v428, %v556
        %v621 = vsel %vm493, %v429, %v557
        %v622 = vsel %vm494, %v430, %v558
        %v623 = vsel %vm495, %v431, %v559
        %v624 = vsel %vm496, %v432, %v560
        %v625 = vsel %vm497, %v433, %v561
        %v626 = vsel %vm498, %v434, %v562
        %v627 = vsel %vm499, %v435, %v563
        %v628 = vpack.c.bf16 %v564, %v564
        %v629 = vpack.c.bf16 %v565, %v565
        %v630 = vpack.c.bf16 %v566, %v566
        %v631 = vpack.c.bf16 %v567, %v567
        %v632 = vpack.c.bf16 %v568, %v568
        %v633 = vpack.c.bf16 %v569, %v569
        %v634 = vpack.c.bf16 %v570, %v570
        %v635 = vpack.c.bf16 %v571, %v571
        %v636 = vpack.c.bf16 %v572, %v572
        %v637 = vpack.c.bf16 %v573, %v573
        %v638 = vpack.c.bf16 %v574, %v574
        %v639 = vpack.c.bf16 %v575, %v575
        %v640 = vpack.c.bf16 %v576, %v576
        %v641 = vpack.c.bf16 %v577, %v577
        %v642 = vpack.c.bf16 %v578, %v578
        %v643 = vpack.c.bf16 %v579, %v579
        %v644 = vpack.c.bf16 %v580, %v580
        %v645 = vpack.c.bf16 %v581, %v581
        %v646 = vpack.c.bf16 %v582, %v582
        %v647 = vpack.c.bf16 %v583, %v583
        %v648 = vpack.c.bf16 %v584, %v584
        %v649 = vpack.c.bf16 %v585, %v585
        %v650 = vpack.c.bf16 %v586, %v586
        %v651 = vpack.c.bf16 %v587, %v587
        %v652 = vpack.c.bf16 %v588, %v588
        %v653 = vpack.c.bf16 %v589, %v589
        %v654 = vpack.c.bf16 %v590, %v590
        %v655 = vpack.c.bf16 %v591, %v591
        %v656 = vpack.c.bf16 %v592, %v592
        %v657 = vpack.c.bf16 %v593, %v593
        %v658 = vpack.c.bf16 %v594, %v594
        %v659 = vpack.c.bf16 %v595, %v595
        %v660 = vpack.c.bf16 %v596, %v596
        %v661 = vpack.c.bf16 %v597, %v597
        %v662 = vpack.c.bf16 %v598, %v598
        %v663 = vpack.c.bf16 %v599, %v599
        %v664 = vpack.c.bf16 %v600, %v600
        %v665 = vpack.c.bf16 %v601, %v601
        %v666 = vpack.c.bf16 %v602, %v602
        %v667 = vpack.c.bf16 %v603, %v603
        %v668 = vpack.c.bf16 %v604, %v604
        %v669 = vpack.c.bf16 %v605, %v605
        %v670 = vpack.c.bf16 %v606, %v606
        %v671 = vpack.c.bf16 %v607, %v607
        %v672 = vpack.c.bf16 %v608, %v608
        %v673 = vpack.c.bf16 %v609, %v609
        %v674 = vpack.c.bf16 %v610, %v610
        %v675 = vpack.c.bf16 %v611, %v611
        %v676 = vpack.c.bf16 %v612, %v612
        %v677 = vpack.c.bf16 %v613, %v613
        %v678 = vpack.c.bf16 %v614, %v614
        %v679 = vpack.c.bf16 %v615, %v615
        %v680 = vpack.c.bf16 %v616, %v616
        %v681 = vpack.c.bf16 %v617, %v617
        %v682 = vpack.c.bf16 %v618, %v618
        %v683 = vpack.c.bf16 %v619, %v619
        %v684 = vpack.c.bf16 %v620, %v620
        %v685 = vpack.c.bf16 %v621, %v621
        %v686 = vpack.c.bf16 %v622, %v622
        %v687 = vpack.c.bf16 %v623, %v623
        %v688 = vpack.c.bf16 %v624, %v624
        %v689 = vpack.c.bf16 %v625, %v625
        %v690 = vpack.c.bf16 %v626, %v626
        %v691 = vpack.c.bf16 %v627, %v627
        %692 = vst [vmem:[%s164] sm:$0xf] %v628
        %693 = vst [vmem:[%s164 + $0x4] sm:$0xf] %v629
        %694 = vst [vmem:[%s164 + $0x8] sm:$0xf] %v630
        %695 = vst [vmem:[%s164 + $0xc] sm:$0xf] %v631
        %696 = vst [vmem:[%s164 + $0x10] sm:$0xf] %v632
        %697 = vst [vmem:[%s164 + $0x14] sm:$0xf] %v633
        %698 = vst [vmem:[%s164 + $0x18] sm:$0xf] %v634
        %699 = vst [vmem:[%s164 + $0x1c] sm:$0xf] %v635
        %700 = vst [vmem:[%s164 + $0x20] sm:$0xf] %v636
        %701 = vst [vmem:[%s164 + $0x24] sm:$0xf] %v637
        %702 = vst [vmem:[%s164 + $0x28] sm:$0xf] %v638
        %703 = vst [vmem:[%s164 + $0x2c] sm:$0xf] %v639
        %704 = vst [vmem:[%s164 + $0x30] sm:$0xf] %v640
        %705 = vst [vmem:[%s164 + $0x34] sm:$0xf] %v641
        %706 = vst [vmem:[%s164 + $0x38] sm:$0xf] %v642
        %707 = vst [vmem:[%s164 + $0x3c] sm:$0xf] %v643
        %708 = vst [vmem:[%s164 + $0x40] sm:$0xf] %v644
        %709 = vst [vmem:[%s164 + $0x44] sm:$0xf] %v645
        %710 = vst [vmem:[%s164 + $0x48] sm:$0xf] %v646
        %711 = vst [vmem:[%s164 + $0x4c] sm:$0xf] %v647
        %712 = vst [vmem:[%s164 + $0x50] sm:$0xf] %v648
        %713 = vst [vmem:[%s164 + $0x54] sm:$0xf] %v649
        %714 = vst [vmem:[%s164 + $0x58] sm:$0xf] %v650
        %715 = vst [vmem:[%s164 + $0x5c] sm:$0xf] %v651
        %716 = vst [vmem:[%s164 + $0x60] sm:$0xf] %v652
        %717 = vst [vmem:[%s164 + $0x64] sm:$0xf] %v653
        %718 = vst [vmem:[%s164 + $0x68] sm:$0xf] %v654
        %719 = vst [vmem:[%s164 + $0x6c] sm:$0xf] %v655
        %720 = vst [vmem:[%s164 + $0x70] sm:$0xf] %v656
        %721 = vst [vmem:[%s164 + $0x74] sm:$0xf] %v657
        %722 = vst [vmem:[%s164 + $0x78] sm:$0xf] %v658
        %723 = vst [vmem:[%s164 + $0x7c] sm:$0xf] %v659
        %724 = vst [vmem:[%s164 + $0x80] sm:$0xf] %v660
        %725 = vst [vmem:[%s164 + $0x84] sm:$0xf] %v661
        %726 = vst [vmem:[%s164 + $0x88] sm:$0xf] %v662
        %727 = vst [vmem:[%s164 + $0x8c] sm:$0xf] %v663
        %728 = vst [vmem:[%s164 + $0x90] sm:$0xf] %v664
        %729 = vst [vmem:[%s164 + $0x94] sm:$0xf] %v665
        %730 = vst [vmem:[%s164 + $0x98] sm:$0xf] %v666
        %731 = vst [vmem:[%s164 + $0x9c] sm:$0xf] %v667
        %732 = vst [vmem:[%s164 + $0xa0] sm:$0xf] %v668
        %733 = vst [vmem:[%s164 + $0xa4] sm:$0xf] %v669
        %734 = vst [vmem:[%s164 + $0xa8] sm:$0xf] %v670
        %735 = vst [vmem:[%s164 + $0xac] sm:$0xf] %v671
        %736 = vst [vmem:[%s164 + $0xb0] sm:$0xf] %v672
        %737 = vst [vmem:[%s164 + $0xb4] sm:$0xf] %v673
        %738 = vst [vmem:[%s164 + $0xb8] sm:$0xf] %v674
        %739 = vst [vmem:[%s164 + $0xbc] sm:$0xf] %v675
        %740 = vst [vmem:[%s164 + $0xc0] sm:$0xf] %v676
        %741 = vst [vmem:[%s164 + $0xc4] sm:$0xf] %v677
        %742 = vst [vmem:[%s164 + $0xc8] sm:$0xf] %v678
        %743 = vst [vmem:[%s164 + $0xcc] sm:$0xf] %v679
        %744 = vst [vmem:[%s164 + $0xd0] sm:$0xf] %v680
        %745 = vst [vmem:[%s164 + $0xd4] sm:$0xf] %v681
        %746 = vst [vmem:[%s164 + $0xd8] sm:$0xf] %v682
        %747 = vst [vmem:[%s164 + $0xdc] sm:$0xf] %v683
        %748 = vst [vmem:[%s164 + $0xe0] sm:$0xf] %v684
        %749 = vst [vmem:[%s164 + $0xe4] sm:$0xf] %v685
        %750 = vst [vmem:[%s164 + $0xe8] sm:$0xf] %v686
        %751 = vst [vmem:[%s164 + $0xec] sm:$0xf] %v687
        %752 = vst [vmem:[%s164 + $0xf0] sm:$0xf] %v688
        %753 = vst [vmem:[%s164 + $0xf4] sm:$0xf] %v689
        %754 = vst [vmem:[%s164 + $0xf8] sm:$0xf] %v690
        %755 = vst [vmem:[%s164 + $0xfc] sm:$0xf] %v691
        %s756 = sand.u32 %s93, 1
        %s757 = scalar_lea.sflag [#allocation3], %s756
        %s758 = sand.u32 %s93, 1
        %s759 = smul.addr %s758, 256
        %s760 = scalar_lea.vmem [#allocation2], %s759
        // Predicated region
        $region33: #{conv_block_forward.3} parent=31 // pred_check
          %p761 = pneg %p103
        $region34: #{conv_block_forward.3} parent=31 // pred_check_branch
          %763 = sbr.rel (%p761) target = $region36
        $region35: #{conv_block_forward.3} parent=31 // pred_region
          %s764 = smul.u32 64, %s17
          %766 = vsyncadd %s757, 0
          %s767 = smul.addr %s764, 4
          %s768 = scalar_lea.hbm %s3, %s767
          %s769 = sshll.u32 %s760, 4
          %s770 = int_to_ptr.vmem [resolvable:$true] %s769
          %s771 = sshll.u32 %s768, 4
          %s772 = int_to_ptr.hbm [resolvable:$true] %s771
          %777 = dma.vmem_to_hbm [thread:$0]  %s770, 4096, %s772, %s757, 64, 64, 4
        $region36: #{conv_block_forward.3} parent=31 // pred_fallthru
          _
      $region32: #{conv_block_forward.3} parent=5 // pred_fallthru
        _
      %p778 = scmp.le.s32.totalorder 2, %s12
      // Predicated region
      $region37: #{conv_block_forward.3} parent=5 // pred_check
        %p779 = pneg %p778
      $region38: #{conv_block_forward.3} parent=5 // pred_check_branch
        %781 = sbr.rel (%p779) target = $region40
      $region39: #{conv_block_forward.3} parent=5 // pred_region
        %s782 = ssub.s32 %s12, 2
        // Predicated region
        $region41: #{conv_block_forward.3} parent=39 // pred_check
          %p783 = pneg %p109
        $region42: #{conv_block_forward.3} parent=39 // pred_check_branch
          %785 = sbr.rel (%p783) target = $region44
        $region43: #{conv_block_forward.3} parent=39 // pred_region
          %s786 = sand.u32 %s94, 1
          %s787 = scalar_lea.sflag [#allocation3], %s786
          %s788 = sand.u32 %s94, 1
          %s789 = smul.addr %s788, 256
          %s790 = scalar_lea.vmem [#allocation2], %s789
          %792 = dma.done %s787, 4096
        $region44: #{conv_block_forward.3} parent=39 // pred_fallthru
          _
      $region40: #{conv_block_forward.3} parent=5 // pred_fallthru
        _
    $region6: #{conv_block_forward.3} parent=1 // loop_footer
      %s16 = sadd.s32 1, %s12
    $region7: #{conv_block_forward.3} parent=1 // loop_footer_branch
      %11 = sbr.rel target = $region3
    $region8: #{conv_block_forward.3} parent=1 // loop_exit
      _
    %793 = vsyncpa [#allocation3], 1
    %s794 = scalar_lea.sflag [#allocation3], 1
    %795 = vsyncpa %s794, 1

// kernel: conv_block_forward.2
$region0: #{conv_block_forward.2}
  #allocation0 [shape = 'u32[]', space=smem, size = 0x4, offset = 0x4, fixed_abs, tag = 'smem constant byte address 0x4 - core index']
  #allocation1 [shape = 'u32[72,128]{1,0:T(1,128)}', space=vmem, size = 0x9000, scoped, tag = 'internal scratch']
  %s0 = inlined_call_operand.vmem [shape: bf16[2,64,33,192], index: 0, kind: input, shape index: {}]
  %s1 = inlined_call_operand.vmem [shape: bf16[3,192,128], index: 1, kind: input, shape index: {}]
  %s2 = inlined_call_operand.vmem [shape: bf16[1,2048,128], index: 2, kind: output, shape index: {0}]
  %s3 = inlined_call_operand.vmem [shape: f32[4,8,128], index: 3, kind: output, shape index: {1}]
  %4 = xla_tuple %s2, %s3
  %s5 = sld [smem:[#allocation0]]
  $region87: #{conv_block_forward.2} parent=0
    _
  %s7 = ssub.s32 1, %s5
  %s8 = scalar_select 0, %s7, %s5
  $region1: #{conv_block_forward.2} parent=0
    #allocation2 [shape = 'u8[1310720]{0}', space=vmem, size = 0x140000, scoped, tag = 'input window, operand 0']
    loop: start=0, step=1, limit=6
    $region2: #{conv_block_forward.2} parent=1 // loop_pre_header
      _
    $region3: #{conv_block_forward.2} parent=1 // loop_header
      %s10 = sphi 0, %s14
      %p11 = scmp.ge.s32.totalorder %s10, 6
      %s20 = sphi 0, %s22
      %s23 = sphi 0, %s20
      %s24 = sphi 0, %s23
      %s40 = sphi 0, %s24
      %s44 = sphi 0, %s44
      %s46 = sphi 0, %s44
      %s47 = sphi 0, %s46
      %s61 = sphi 0, %s47
      %s67 = sphi 0, %s69
      %s70 = sphi 0, %s67
      %s71 = sphi 0, %s70
      %s87 = sphi 0, %s71
      %s93 = sphi 0, %s95
      %s96 = sphi 0, %s93
      %s97 = sphi 0, %s96
      %s113 = sphi 0, %s97
    $region4: #{conv_block_forward.2} parent=1 // loop_header_branch
      %13 = sbr.rel (%p11) target = $region8
    $region5: #{conv_block_forward.2} parent=1 // loop_body
      %s15 = ssub.s32 %s10, 1
      %s16 = ssub.s32 %s10, 2
      %s17 = sadd.s32 %s10, 1
      %s18 = ssub.s32 %s10, %s17
      %p19 = scmp.eq.s32.totalorder %s18, 0
      %s21 = sadd.s32 %s20, 1
      %s22 = scalar_select %p19, %s20, %s21
      %p25 = pneg %p19
      %p26 = scmp.eq.s32.totalorder %s10, 3
      %p27 = por %p25, %p26
      %p28 = scmp.ne.s32.totalorder %s20, %s23
      %p29 = scmp.eq.s32.totalorder %s10, 0
      %p30 = por %p28, %p29
      %p31 = scmp.ne.s32.totalorder %s20, %s23
      %p32 = scmp.eq.s32.totalorder %s15, 3
      %p33 = por %p31, %p32
      %p34 = scmp.ne.s32.totalorder %s23, %s24
      %p35 = scmp.eq.s32.totalorder %s15, 0
      %p36 = por %p34, %p35
      %p37 = scmp.ne.s32.totalorder %s23, %s24
      %p38 = scmp.eq.s32.totalorder %s16, 3
      %p39 = por %p37, %p38
      %p41 = scmp.ne.s32.totalorder %s24, %s40
      %p42 = scmp.eq.s32.totalorder %s16, 0
      %p43 = por %p41, %p42
      %s45 = sadd.s32 %s44, 1
      %p48 = scmp.eq.s32.totalorder %s10, 3
      %p49 = scmp.ne.s32.totalorder %s44, %s46
      %p50 = scmp.eq.s32.totalorder %s10, 0
      %p51 = por %p49, %p50
      %p52 = scmp.ne.s32.totalorder %s44, %s46
      %p53 = scmp.eq.s32.totalorder %s15, 3
      %p54 = por %p52, %p53
      %p55 = scmp.ne.s32.totalorder %s46, %s47
      %p56 = scmp.eq.s32.totalorder %s15, 0
      %p57 = por %p55, %p56
      %p58 = scmp.ne.s32.totalorder %s46, %s47
      %p59 = scmp.eq.s32.totalorder %s16, 3
      %p60 = por %p58, %p59
      %p62 = scmp.ne.s32.totalorder %s47, %s61
      %p63 = scmp.eq.s32.totalorder %s16, 0
      %p64 = por %p62, %p63
      %s65 = ssub.s32 %s10, %s17
      %p66 = scmp.eq.s32.totalorder %s65, 0
      %s68 = sadd.s32 %s67, 1
      %s69 = scalar_select %p66, %s67, %s68
      %p72 = pneg %p66
      %p73 = scmp.eq.s32.totalorder %s10, 3
      %p74 = por %p72, %p73
      %p75 = scmp.ne.s32.totalorder %s67, %s70
      %p76 = scmp.eq.s32.totalorder %s10, 0
      %p77 = por %p75, %p76
      %p78 = scmp.ne.s32.totalorder %s67, %s70
      %p79 = scmp.eq.s32.totalorder %s15, 3
      %p80 = por %p78, %p79
      %p81 = scmp.ne.s32.totalorder %s70, %s71
      %p82 = scmp.eq.s32.totalorder %s15, 0
      %p83 = por %p81, %p82
      %p84 = scmp.ne.s32.totalorder %s70, %s71
      %p85 = scmp.eq.s32.totalorder %s16, 3
      %p86 = por %p84, %p85
      %p88 = scmp.ne.s32.totalorder %s71, %s87
      %p89 = scmp.eq.s32.totalorder %s16, 0
      %p90 = por %p88, %p89
      %s91 = ssub.s32 %s10, %s17
      %p92 = scmp.eq.s32.totalorder %s91, 0
      %s94 = sadd.s32 %s93, 1
      %s95 = scalar_select %p92, %s93, %s94
      %p98 = pneg %p92
      %p99 = scmp.eq.s32.totalorder %s10, 3
      %p100 = por %p98, %p99
      %p101 = scmp.ne.s32.totalorder %s93, %s96
      %p102 = scmp.eq.s32.totalorder %s10, 0
      %p103 = por %p101, %p102
      %p104 = scmp.ne.s32.totalorder %s93, %s96
      %p105 = scmp.eq.s32.totalorder %s15, 3
      %p106 = por %p104, %p105
      %p107 = scmp.ne.s32.totalorder %s96, %s97
      %p108 = scmp.eq.s32.totalorder %s15, 0
      %p109 = por %p107, %p108
      %p110 = scmp.ne.s32.totalorder %s96, %s97
      %p111 = scmp.eq.s32.totalorder %s16, 3
      %p112 = por %p110, %p111
      %p114 = scmp.ne.s32.totalorder %s97, %s113
      %p115 = scmp.eq.s32.totalorder %s16, 0
      %p116 = por %p114, %p115
      %p117 = scmp.le.s32.totalorder 1, %s10
      %p118 = scmp.lt.s32.totalorder %s10, 5
      %p119 = pnand %p117, %p118
      %p120 = pneg %p119
      // Predicated region
      $region9: #{conv_block_forward.2} parent=5 // pred_check
        _
      $region10: #{conv_block_forward.2} parent=5 // pred_check_branch
        %122 = sbr.rel (%p119) target = $region12
      $region11: #{conv_block_forward.2} parent=5 // pred_region
        %s123 = ssub.s32 %s10, 1
        // Predicated region
        $region13: #{conv_block_forward.2} parent=11 // pred_check
          %p124 = pneg %p57
        $region14: #{conv_block_forward.2} parent=11 // pred_check_branch
          %126 = sbr.rel (%p124) target = $region16
        $region15: #{conv_block_forward.2} parent=11 // pred_region
          _
        $region16: #{conv_block_forward.2} parent=11 // pred_fallthru
          _
      $region12: #{conv_block_forward.2} parent=5 // pred_fallthru
        _
      %p127 = scmp.lt.s32.totalorder %s10, 4
      // Predicated region
      $region17: #{conv_block_forward.2} parent=5 // pred_check
        %p128 = pneg %p127
      $region18: #{conv_block_forward.2} parent=5 // pred_check_branch
        %130 = sbr.rel (%p128) target = $region20
      $region19: #{conv_block_forward.2} parent=5 // pred_region
        // Predicated region
        $region21: #{conv_block_forward.2} parent=19 // pred_check
          %p131 = pneg %p30
        $region22: #{conv_block_forward.2} parent=19 // pred_check_branch
          %133 = sbr.rel (%p131) target = $region24
        $region23: #{conv_block_forward.2} parent=19 // pred_region
          %s134 = sand.u32 %s20, 1
          %s135 = sand.u32 %s20, 1
          %s136 = smul.addr %s135, 1280
          %s137 = scalar_lea.vmem [#allocation2], %s136
          %s138 = smul.u32 16, %s10
          %s139 = smul.addr %s138, 10
          %s140 = smul.addr %s139, 4
          %s141 = scalar_lea.vmem %s0, %s140
          // Predicated region
          $region25: #{conv_block_forward.2} parent=23 // pred_check
            _
          $region26: #{conv_block_forward.2} parent=23 // pred_check_branch
            %143 = sbr.rel (0) target = $region28
          $region27: #{conv_block_forward.2} parent=23 // pred_region
            // Predicated region
            $region29: #{conv_block_forward.2} parent=27 // pred_check
              _
            $region30: #{conv_block_forward.2} parent=27 // pred_check_branch
              %145 = sbr.rel (0) target = $region32
            $region31: #{conv_block_forward.2} parent=27 // pred_region
              // Predicated region
              $region44: #{conv_block_forward.2} parent=31 // pred_check
                _
              $region45: #{conv_block_forward.2} parent=31 // pred_check_branch
                %479 = sbr.rel (0) target = $region47
              $region46: #{conv_block_forward.2} parent=31 // pred_region
                loop: start=0, step=1, limit=1
                $region48: #{conv_block_forward.2} parent=46 // loop_pre_header
                  _
                $region49: #{conv_block_forward.2} parent=46 // loop_header
                  %s481 = sphi 0, %s485
                  %p482 = scmp.ge.s32.totalorder %s481, 1
                  %s486 = sphi %s141, %s141
                  %s487 = sphi %s137, %s137
                $region50: #{conv_block_forward.2} parent=46 // loop_header_branch
                  %484 = sbr.rel (%p482) target = $region54
                $region51: #{conv_block_forward.2} parent=46 // loop_body
                  %v488 = vld [vmem:[%s486] sm:$0xff]
                  %489 = vst [vmem:[%s487] sm:$0xff] %v488
                  %v490 = vld [vmem:[%s486 + $0x8] sm:$0xff]
                  %491 = vst [vmem:[%s487 + $0x8] sm:$0xff] %v490
                  %v492 = vld [vmem:[%s486 + $0x10] sm:$0xff]
                  %493 = vst [vmem:[%s487 + $0x10] sm:$0xff] %v492
                  %v494 = vld [vmem:[%s486 + $0x18] sm:$0xff]
                  %495 = vst [vmem:[%s487 + $0x18] sm:$0xff] %v494
                  %v496 = vld [vmem:[%s486 + $0x20] sm:$0xff]
                  %497 = vst [vmem:[%s487 + $0x20] sm:$0xff] %v496
                  %v498 = vld [vmem:[%s486 + $0x28] sm:$0xff]
                  %499 = vst [vmem:[%s487 + $0x28] sm:$0xff] %v498
                  %v500 = vld [vmem:[%s486 + $0x30] sm:$0xff]
                  %501 = vst [vmem:[%s487 + $0x30] sm:$0xff] %v500
                  %v502 = vld [vmem:[%s486 + $0x38] sm:$0xff]
                  %503 = vst [vmem:[%s487 + $0x38] sm:$0xff] %v502
                  %v504 = vld [vmem:[%s486 + $0x40] sm:$0xff]
                  %505 = vst [vmem:[%s487 + $0x40] sm:$0xff] %v504
                  %v506 = vld [vmem:[%s486 + $0x48] sm:$0xff]
                  %507 = vst [vmem:[%s487 + $0x48] sm:$0xff] %v506
                  %v508 = vld [vmem:[%s486 + $0x50] sm:$0xff]
                  %509 = vst [vmem:[%s487 + $0x50] sm:$0xff] %v508
                  %v510 = vld [vmem:[%s486 + $0x58] sm:$0xff]
                  %511 = vst [vmem:[%s487 + $0x58] sm:$0xff] %v510
                  %v512 = vld [vmem:[%s486 + $0x60] sm:$0xff]
                  %513 = vst [vmem:[%s487 + $0x60] sm:$0xff] %v512
                  %v514 = vld [vmem:[%s486 + $0x68] sm:$0xff]
                  %515 = vst [vmem:[%s487 + $0x68] sm:$0xff] %v514
                  %v516 = vld [vmem:[%s486 + $0x70] sm:$0xff]
                  %517 = vst [vmem:[%s487 + $0x70] sm:$0xff] %v516
                  %v518 = vld [vmem:[%s486 + $0x78] sm:$0xff]
                  %519 = vst [vmem:[%s487 + $0x78] sm:$0xff] %v518
                  %v520 = vld [vmem:[%s486 + $0x80] sm:$0xff]
                  %521 = vst [vmem:[%s487 + $0x80] sm:$0xff] %v520
                  %v522 = vld [vmem:[%s486 + $0x88] sm:$0xff]
                  %523 = vst [vmem:[%s487 + $0x88] sm:$0xff] %v522
                  %v524 = vld [vmem:[%s486 + $0x90] sm:$0xff]
                  %525 = vst [vmem:[%s487 + $0x90] sm:$0xff] %v524
                  %v526 = vld [vmem:[%s486 + $0x98] sm:$0xff]
                  %527 = vst [vmem:[%s487 + $0x98] sm:$0xff] %v526
                  %v528 = vld [vmem:[%s486 + $0xa0] sm:$0xff]
                  %529 = vst [vmem:[%s487 + $0xa0] sm:$0xff] %v528
                  %v530 = vld [vmem:[%s486 + $0xa8] sm:$0xff]
                  %531 = vst [vmem:[%s487 + $0xa8] sm:$0xff] %v530
                  %v532 = vld [vmem:[%s486 + $0xb0] sm:$0xff]
                  %533 = vst [vmem:[%s487 + $0xb0] sm:$0xff] %v532
                  %v534 = vld [vmem:[%s486 + $0xb8] sm:$0xff]
                  %535 = vst [vmem:[%s487 + $0xb8] sm:$0xff] %v534
                  %v536 = vld [vmem:[%s486 + $0xc0] sm:$0xff]
                  %537 = vst [vmem:[%s487 + $0xc0] sm:$0xff] %v536
                  %v538 = vld [vmem:[%s486 + $0xc8] sm:$0xff]
                  %539 = vst [vmem:[%s487 + $0xc8] sm:$0xff] %v538
                  %v540 = vld [vmem:[%s486 + $0xd0] sm:$0xff]
                  %541 = vst [vmem:[%s487 + $0xd0] sm:$0xff] %v540
                  %v542 = vld [vmem:[%s486 + $0xd8] sm:$0xff]
                  %543 = vst [vmem:[%s487 + $0xd8] sm:$0xff] %v542
                  %v544 = vld [vmem:[%s486 + $0xe0] sm:$0xff]
                  %545 = vst [vmem:[%s487 + $0xe0] sm:$0xff] %v544
                  %v546 = vld [vmem:[%s486 + $0xe8] sm:$0xff]
                  %547 = vst [vmem:[%s487 + $0xe8] sm:$0xff] %v546
                  %v548 = vld [vmem:[%s486 + $0xf0] sm:$0xff]
                  %549 = vst [vmem:[%s487 + $0xf0] sm:$0xff] %v548
                  %v550 = vld [vmem:[%s486 + $0xf8] sm:$0xff]
                  %551 = vst [vmem:[%s487 + $0xf8] sm:$0xff] %v550
                  %v552 = vld [vmem:[%s486 + $0x100] sm:$0xff]
                  %553 = vst [vmem:[%s487 + $0x100] sm:$0xff] %v552
                  %v554 = vld [vmem:[%s486 + $0x108] sm:$0xff]
                  %555 = vst [vmem:[%s487 + $0x108] sm:$0xff] %v554
                  %v556 = vld [vmem:[%s486 + $0x110] sm:$0xff]
                  %557 = vst [vmem:[%s487 + $0x110] sm:$0xff] %v556
                  %v558 = vld [vmem:[%s486 + $0x118] sm:$0xff]
                  %559 = vst [vmem:[%s487 + $0x118] sm:$0xff] %v558
                  %v560 = vld [vmem:[%s486 + $0x120] sm:$0xff]
                  %561 = vst [vmem:[%s487 + $0x120] sm:$0xff] %v560
                  %v562 = vld [vmem:[%s486 + $0x128] sm:$0xff]
                  %563 = vst [vmem:[%s487 + $0x128] sm:$0xff] %v562
                  %v564 = vld [vmem:[%s486 + $0x130] sm:$0xff]
                  %565 = vst [vmem:[%s487 + $0x130] sm:$0xff] %v564
                  %v566 = vld [vmem:[%s486 + $0x138] sm:$0xff]
                  %567 = vst [vmem:[%s487 + $0x138] sm:$0xff] %v566
                  %v568 = vld [vmem:[%s486 + $0x140] sm:$0xff]
                  %569 = vst [vmem:[%s487 + $0x140] sm:$0xff] %v568
                  %v570 = vld [vmem:[%s486 + $0x148] sm:$0xff]
                  %571 = vst [vmem:[%s487 + $0x148] sm:$0xff] %v570
                  %v572 = vld [vmem:[%s486 + $0x150] sm:$0xff]
                  %573 = vst [vmem:[%s487 + $0x150] sm:$0xff] %v572
                  %v574 = vld [vmem:[%s486 + $0x158] sm:$0xff]
                  %575 = vst [vmem:[%s487 + $0x158] sm:$0xff] %v574
                  %v576 = vld [vmem:[%s486 + $0x160] sm:$0xff]
                  %577 = vst [vmem:[%s487 + $0x160] sm:$0xff] %v576
                  %v578 = vld [vmem:[%s486 + $0x168] sm:$0xff]
                  %579 = vst [vmem:[%s487 + $0x168] sm:$0xff] %v578
                  %v580 = vld [vmem:[%s486 + $0x170] sm:$0xff]
                  %581 = vst [vmem:[%s487 + $0x170] sm:$0xff] %v580
                  %v582 = vld [vmem:[%s486 + $0x178] sm:$0xff]
                  %583 = vst [vmem:[%s487 + $0x178] sm:$0xff] %v582
                  %v584 = vld [vmem:[%s486 + $0x180] sm:$0xff]
                  %585 = vst [vmem:[%s487 + $0x180] sm:$0xff] %v584
                  %v586 = vld [vmem:[%s486 + $0x188] sm:$0xff]
                  %587 = vst [vmem:[%s487 + $0x188] sm:$0xff] %v586
                  %v588 = vld [vmem:[%s486 + $0x190] sm:$0xff]
                  %589 = vst [vmem:[%s487 + $0x190] sm:$0xff] %v588
                  %v590 = vld [vmem:[%s486 + $0x198] sm:$0xff]
                  %591 = vst [vmem:[%s487 + $0x198] sm:$0xff] %v590
                  %v592 = vld [vmem:[%s486 + $0x1a0] sm:$0xff]
                  %593 = vst [vmem:[%s487 + $0x1a0] sm:$0xff] %v592
                  %v594 = vld [vmem:[%s486 + $0x1a8] sm:$0xff]
                  %595 = vst [vmem:[%s487 + $0x1a8] sm:$0xff] %v594
                  %v596 = vld [vmem:[%s486 + $0x1b0] sm:$0xff]
                  %597 = vst [vmem:[%s487 + $0x1b0] sm:$0xff] %v596
                  %v598 = vld [vmem:[%s486 + $0x1b8] sm:$0xff]
                  %599 = vst [vmem:[%s487 + $0x1b8] sm:$0xff] %v598
                  %v600 = vld [vmem:[%s486 + $0x1c0] sm:$0xff]
                  %601 = vst [vmem:[%s487 + $0x1c0] sm:$0xff] %v600
                  %v602 = vld [vmem:[%s486 + $0x1c8] sm:$0xff]
                  %603 = vst [vmem:[%s487 + $0x1c8] sm:$0xff] %v602
                  %v604 = vld [vmem:[%s486 + $0x1d0] sm:$0xff]
                  %605 = vst [vmem:[%s487 + $0x1d0] sm:$0xff] %v604
                  %v606 = vld [vmem:[%s486 + $0x1d8] sm:$0xff]
                  %607 = vst [vmem:[%s487 + $0x1d8] sm:$0xff] %v606
                  %v608 = vld [vmem:[%s486 + $0x1e0] sm:$0xff]
                  %609 = vst [vmem:[%s487 + $0x1e0] sm:$0xff] %v608
                  %v610 = vld [vmem:[%s486 + $0x1e8] sm:$0xff]
                  %611 = vst [vmem:[%s487 + $0x1e8] sm:$0xff] %v610
                  %v612 = vld [vmem:[%s486 + $0x1f0] sm:$0xff]
                  %613 = vst [vmem:[%s487 + $0x1f0] sm:$0xff] %v612
                  %v614 = vld [vmem:[%s486 + $0x1f8] sm:$0xff]
                  %615 = vst [vmem:[%s487 + $0x1f8] sm:$0xff] %v614
                  %v616 = vld [vmem:[%s486 + $0x200] sm:$0xff]
                  %617 = vst [vmem:[%s487 + $0x200] sm:$0xff] %v616
                  %v618 = vld [vmem:[%s486 + $0x208] sm:$0xff]
                  %619 = vst [vmem:[%s487 + $0x208] sm:$0xff] %v618
                  %v620 = vld [vmem:[%s486 + $0x210] sm:$0xff]
                  %621 = vst [vmem:[%s487 + $0x210] sm:$0xff] %v620
                  %v622 = vld [vmem:[%s486 + $0x218] sm:$0xff]
                  %623 = vst [vmem:[%s487 + $0x218] sm:$0xff] %v622
                  %v624 = vld [vmem:[%s486 + $0x220] sm:$0xff]
                  %625 = vst [vmem:[%s487 + $0x220] sm:$0xff] %v624
                  %v626 = vld [vmem:[%s486 + $0x228] sm:$0xff]
                  %627 = vst [vmem:[%s487 + $0x228] sm:$0xff] %v626
                  %v628 = vld [vmem:[%s486 + $0x230] sm:$0xff]
                  %629 = vst [vmem:[%s487 + $0x230] sm:$0xff] %v628
                  %v630 = vld [vmem:[%s486 + $0x238] sm:$0xff]
                  %631 = vst [vmem:[%s487 + $0x238] sm:$0xff] %v630
                  %v632 = vld [vmem:[%s486 + $0x240] sm:$0xff]
                  %633 = vst [vmem:[%s487 + $0x240] sm:$0xff] %v632
                  %v634 = vld [vmem:[%s486 + $0x248] sm:$0xff]
                  %635 = vst [vmem:[%s487 + $0x248] sm:$0xff] %v634
                  %v636 = vld [vmem:[%s486 + $0x250] sm:$0xff]
                  %637 = vst [vmem:[%s487 + $0x250] sm:$0xff] %v636
                  %v638 = vld [vmem:[%s486 + $0x258] sm:$0xff]
                  %639 = vst [vmem:[%s487 + $0x258] sm:$0xff] %v638
                  %v640 = vld [vmem:[%s486 + $0x260] sm:$0xff]
                  %641 = vst [vmem:[%s487 + $0x260] sm:$0xff] %v640
                  %v642 = vld [vmem:[%s486 + $0x268] sm:$0xff]
                  %643 = vst [vmem:[%s487 + $0x268] sm:$0xff] %v642
                  %v644 = vld [vmem:[%s486 + $0x270] sm:$0xff]
                  %645 = vst [vmem:[%s487 + $0x270] sm:$0xff] %v644
                  %v646 = vld [vmem:[%s486 + $0x278] sm:$0xff]
                  %647 = vst [vmem:[%s487 + $0x278] sm:$0xff] %v646
                  %v648 = vld [vmem:[%s486 + $0xa00] sm:$0xff]
                  %649 = vst [vmem:[%s487 + $0x280] sm:$0xff] %v648
                  %v650 = vld [vmem:[%s486 + $0xa08] sm:$0xff]
                  %651 = vst [vmem:[%s487 + $0x288] sm:$0xff] %v650
                  %v652 = vld [vmem:[%s486 + $0xa10] sm:$0xff]
                  %653 = vst [vmem:[%s487 + $0x290] sm:$0xff] %v652
                  %v654 = vld [vmem:[%s486 + $0xa18] sm:$0xff]
                  %655 = vst [vmem:[%s487 + $0x298] sm:$0xff] %v654
                  %v656 = vld [vmem:[%s486 + $0xa20] sm:$0xff]
                  %657 = vst [vmem:[%s487 + $0x2a0] sm:$0xff] %v656
                  %v658 = vld [vmem:[%s486 + $0xa28] sm:$0xff]
                  %659 = vst [vmem:[%s487 + $0x2a8] sm:$0xff] %v658
                  %v660 = vld [vmem:[%s486 + $0xa30] sm:$0xff]
                  %661 = vst [vmem:[%s487 + $0x2b0] sm:$0xff] %v660
                  %v662 = vld [vmem:[%s486 + $0xa38] sm:$0xff]
                  %663 = vst [vmem:[%s487 + $0x2b8] sm:$0xff] %v662
                  %v664 = vld [vmem:[%s486 + $0xa40] sm:$0xff]
                  %665 = vst [vmem:[%s487 + $0x2c0] sm:$0xff] %v664
                  %v666 = vld [vmem:[%s486 + $0xa48] sm:$0xff]
                  %667 = vst [vmem:[%s487 + $0x2c8] sm:$0xff] %v666
                  %v668 = vld [vmem:[%s486 + $0xa50] sm:$0xff]
                  %669 = vst [vmem:[%s487 + $0x2d0] sm:$0xff] %v668
                  %v670 = vld [vmem:[%s486 + $0xa58] sm:$0xff]
                  %671 = vst [vmem:[%s487 + $0x2d8] sm:$0xff] %v670
                  %v672 = vld [vmem:[%s486 + $0xa60] sm:$0xff]
                  %673 = vst [vmem:[%s487 + $0x2e0] sm:$0xff] %v672
                  %v674 = vld [vmem:[%s486 + $0xa68] sm:$0xff]
                  %675 = vst [vmem:[%s487 + $0x2e8] sm:$0xff] %v674
                  %v676 = vld [vmem:[%s486 + $0xa70] sm:$0xff]
                  %677 = vst [vmem:[%s487 + $0x2f0] sm:$0xff] %v676
                  %v678 = vld [vmem:[%s486 + $0xa78] sm:$0xff]
                  %679 = vst [vmem:[%s487 + $0x2f8] sm:$0xff] %v678
                  %v680 = vld [vmem:[%s486 + $0xa80] sm:$0xff]
                  %681 = vst [vmem:[%s487 + $0x300] sm:$0xff] %v680
                  %v682 = vld [vmem:[%s486 + $0xa88] sm:$0xff]
                  %683 = vst [vmem:[%s487 + $0x308] sm:$0xff] %v682
                  %v684 = vld [vmem:[%s486 + $0xa90] sm:$0xff]
                  %685 = vst [vmem:[%s487 + $0x310] sm:$0xff] %v684
                  %v686 = vld [vmem:[%s486 + $0xa98] sm:$0xff]
                  %687 = vst [vmem:[%s487 + $0x318] sm:$0xff] %v686
                  %v688 = vld [vmem:[%s486 + $0xaa0] sm:$0xff]
                  %689 = vst [vmem:[%s487 + $0x320] sm:$0xff] %v688
                  %v690 = vld [vmem:[%s486 + $0xaa8] sm:$0xff]
                  %691 = vst [vmem:[%s487 + $0x328] sm:$0xff] %v690
                  %v692 = vld [vmem:[%s486 + $0xab0] sm:$0xff]
                  %693 = vst [vmem:[%s487 + $0x330] sm:$0xff] %v692
                  %v694 = vld [vmem:[%s486 + $0xab8] sm:$0xff]
                  %695 = vst [vmem:[%s487 + $0x338] sm:$0xff] %v694
                  %v696 = vld [vmem:[%s486 + $0xac0] sm:$0xff]
                  %697 = vst [vmem:[%s487 + $0x340] sm:$0xff] %v696
                  %v698 = vld [vmem:[%s486 + $0xac8] sm:$0xff]
                  %699 = vst [vmem:[%s487 + $0x348] sm:$0xff] %v698
                  %v700 = vld [vmem:[%s486 + $0xad0] sm:$0xff]
                  %701 = vst [vmem:[%s487 + $0x350] sm:$0xff] %v700
                  %v702 = vld [vmem:[%s486 + $0xad8] sm:$0xff]
                  %703 = vst [vmem:[%s487 + $0x358] sm:$0xff] %v702
                  %v704 = vld [vmem:[%s486 + $0xae0] sm:$0xff]
                  %705 = vst [vmem:[%s487 + $0x360] sm:$0xff] %v704
                  %v706 = vld [vmem:[%s486 + $0xae8] sm:$0xff]
                  %707 = vst [vmem:[%s487 + $0x368] sm:$0xff] %v706
                  %v708 = vld [vmem:[%s486 + $0xaf0] sm:$0xff]
                  %709 = vst [vmem:[%s487 + $0x370] sm:$0xff] %v708
                  %v710 = vld [vmem:[%s486 + $0xaf8] sm:$0xff]
                  %711 = vst [vmem:[%s487 + $0x378] sm:$0xff] %v710
                  %v712 = vld [vmem:[%s486 + $0xb00] sm:$0xff]
                  %713 = vst [vmem:[%s487 + $0x380] sm:$0xff] %v712
                  %v714 = vld [vmem:[%s486 + $0xb08] sm:$0xff]
                  %715 = vst [vmem:[%s487 + $0x388] sm:$0xff] %v714
                  %v716 = vld [vmem:[%s486 + $0xb10] sm:$0xff]
                  %717 = vst [vmem:[%s487 + $0x390] sm:$0xff] %v716
                  %v718 = vld [vmem:[%s486 + $0xb18] sm:$0xff]
                  %719 = vst [vmem:[%s487 + $0x398] sm:$0xff] %v718
                  %v720 = vld [vmem:[%s486 + $0xb20] sm:$0xff]
                  %721 = vst [vmem:[%s487 + $0x3a0] sm:$0xff] %v720
                  %v722 = vld [vmem:[%s486 + $0xb28] sm:$0xff]
                  %723 = vst [vmem:[%s487 + $0x3a8] sm:$0xff] %v722
                  %v724 = vld [vmem:[%s486 + $0xb30] sm:$0xff]
                  %725 = vst [vmem:[%s487 + $0x3b0] sm:$0xff] %v724
                  %v726 = vld [vmem:[%s486 + $0xb38] sm:$0xff]
                  %727 = vst [vmem:[%s487 + $0x3b8] sm:$0xff] %v726
                  %v728 = vld [vmem:[%s486 + $0xb40] sm:$0xff]
                  %729 = vst [vmem:[%s487 + $0x3c0] sm:$0xff] %v728
                  %v730 = vld [vmem:[%s486 + $0xb48] sm:$0xff]
                  %731 = vst [vmem:[%s487 + $0x3c8] sm:$0xff] %v730
                  %v732 = vld [vmem:[%s486 + $0xb50] sm:$0xff]
                  %733 = vst [vmem:[%s487 + $0x3d0] sm:$0xff] %v732
                  %v734 = vld [vmem:[%s486 + $0xb58] sm:$0xff]
                  %735 = vst [vmem:[%s487 + $0x3d8] sm:$0xff] %v734
                  %v736 = vld [vmem:[%s486 + $0xb60] sm:$0xff]
                  %737 = vst [vmem:[%s487 + $0x3e0] sm:$0xff] %v736
                  %v738 = vld [vmem:[%s486 + $0xb68] sm:$0xff]
                  %739 = vst [vmem:[%s487 + $0x3e8] sm:$0xff] %v738
                  %v740 = vld [vmem:[%s486 + $0xb70] sm:$0xff]
                  %741 = vst [vmem:[%s487 + $0x3f0] sm:$0xff] %v740
                  %v742 = vld [vmem:[%s486 + $0xb78] sm:$0xff]
                  %743 = vst [vmem:[%s487 + $0x3f8] sm:$0xff] %v742
                  %v744 = vld [vmem:[%s486 + $0xb80] sm:$0xff]
                  %745 = vst [vmem:[%s487 + $0x400] sm:$0xff] %v744
                  %v746 = vld [vmem:[%s486 + $0xb88] sm:$0xff]
                  %747 = vst [vmem:[%s487 + $0x408] sm:$0xff] %v746
                  %v748 = vld [vmem:[%s486 + $0xb90] sm:$0xff]
                  %749 = vst [vmem:[%s487 + $0x410] sm:$0xff] %v748
                  %v750 = vld [vmem:[%s486 + $0xb98] sm:$0xff]
                  %751 = vst [vmem:[%s487 + $0x418] sm:$0xff] %v750
                  %v752 = vld [vmem:[%s486 + $0xba0] sm:$0xff]
                  %753 = vst [vmem:[%s487 + $0x420] sm:$0xff] %v752
                  %v754 = vld [vmem:[%s486 + $0xba8] sm:$0xff]
                  %755 = vst [vmem:[%s487 + $0x428] sm:$0xff] %v754
                  %v756 = vld [vmem:[%s486 + $0xbb0] sm:$0xff]
                  %757 = vst [vmem:[%s487 + $0x430] sm:$0xff] %v756
                  %v758 = vld [vmem:[%s486 + $0xbb8] sm:$0xff]
                  %759 = vst [vmem:[%s487 + $0x438] sm:$0xff] %v758
                  %v760 = vld [vmem:[%s486 + $0xbc0] sm:$0xff]
                  %761 = vst [vmem:[%s487 + $0x440] sm:$0xff] %v760
                  %v762 = vld [vmem:[%s486 + $0xbc8] sm:$0xff]
                  %763 = vst [vmem:[%s487 + $0x448] sm:$0xff] %v762
                  %v764 = vld [vmem:[%s486 + $0xbd0] sm:$0xff]
                  %765 = vst [vmem:[%s487 + $0x450] sm:$0xff] %v764
                  %v766 = vld [vmem:[%s486 + $0xbd8] sm:$0xff]
                  %767 = vst [vmem:[%s487 + $0x458] sm:$0xff] %v766
                  %v768 = vld [vmem:[%s486 + $0xbe0] sm:$0xff]
                  %769 = vst [vmem:[%s487 + $0x460] sm:$0xff] %v768
                  %v770 = vld [vmem:[%s486 + $0xbe8] sm:$0xff]
                  %771 = vst [vmem:[%s487 + $0x468] sm:$0xff] %v770
                  %v772 = vld [vmem:[%s486 + $0xbf0] sm:$0xff]
                  %773 = vst [vmem:[%s487 + $0x470] sm:$0xff] %v772
                  %v774 = vld [vmem:[%s486 + $0xbf8] sm:$0xff]
                  %775 = vst [vmem:[%s487 + $0x478] sm:$0xff] %v774
                  %v776 = vld [vmem:[%s486 + $0xc00] sm:$0xff]
                  %777 = vst [vmem:[%s487 + $0x480] sm:$0xff] %v776
                  %v778 = vld [vmem:[%s486 + $0xc08] sm:$0xff]
                  %779 = vst [vmem:[%s487 + $0x488] sm:$0xff] %v778
                  %v780 = vld [vmem:[%s486 + $0xc10] sm:$0xff]
                  %781 = vst [vmem:[%s487 + $0x490] sm:$0xff] %v780
                  %v782 = vld [vmem:[%s486 + $0xc18] sm:$0xff]
                  %783 = vst [vmem:[%s487 + $0x498] sm:$0xff] %v782
                  %v784 = vld [vmem:[%s486 + $0xc20] sm:$0xff]
                  %785 = vst [vmem:[%s487 + $0x4a0] sm:$0xff] %v784
                  %v786 = vld [vmem:[%s486 + $0xc28] sm:$0xff]
                  %787 = vst [vmem:[%s487 + $0x4a8] sm:$0xff] %v786
                  %v788 = vld [vmem:[%s486 + $0xc30] sm:$0xff]
                  %789 = vst [vmem:[%s487 + $0x4b0] sm:$0xff] %v788
                  %v790 = vld [vmem:[%s486 + $0xc38] sm:$0xff]
                  %791 = vst [vmem:[%s487 + $0x4b8] sm:$0xff] %v790
                  %v792 = vld [vmem:[%s486 + $0xc40] sm:$0xff]
                  %793 = vst [vmem:[%s487 + $0x4c0] sm:$0xff] %v792
                  %v794 = vld [vmem:[%s486 + $0xc48] sm:$0xff]
                  %795 = vst [vmem:[%s487 + $0x4c8] sm:$0xff] %v794
                  %v796 = vld [vmem:[%s486 + $0xc50] sm:$0xff]
                  %797 = vst [vmem:[%s487 + $0x4d0] sm:$0xff] %v796
                  %v798 = vld [vmem:[%s486 + $0xc58] sm:$0xff]
                  %799 = vst [vmem:[%s487 + $0x4d8] sm:$0xff] %v798
                  %v800 = vld [vmem:[%s486 + $0xc60] sm:$0xff]
                  %801 = vst [vmem:[%s487 + $0x4e0] sm:$0xff] %v800
                  %v802 = vld [vmem:[%s486 + $0xc68] sm:$0xff]
                  %803 = vst [vmem:[%s487 + $0x4e8] sm:$0xff] %v802
                  %v804 = vld [vmem:[%s486 + $0xc70] sm:$0xff]
                  %805 = vst [vmem:[%s487 + $0x4f0] sm:$0xff] %v804
                  %v806 = vld [vmem:[%s486 + $0xc78] sm:$0xff]
                  %807 = vst [vmem:[%s487 + $0x4f8] sm:$0xff] %v806
                $region52: #{conv_block_forward.2} parent=46 // loop_footer
                  %s485 = sadd.s32 1, %s481
                $region53: #{conv_block_forward.2} parent=46 // loop_footer_branch
                  %480 = sbr.rel target = $region49
                $region54: #{conv_block_forward.2} parent=46 // loop_exit
                  _
              $region47: #{conv_block_forward.2} parent=31 // pred_fallthru
                _
              // Predicated region
              $region55: #{conv_block_forward.2} parent=31 // pred_check
                _
              $region56: #{conv_block_forward.2} parent=31 // pred_check_branch
                %809 = sbr.rel target = $region58
              $region57: #{conv_block_forward.2} parent=31 // pred_region
                _
              $region58: #{conv_block_forward.2} parent=31 // pred_fallthru
                _
            $region32: #{conv_block_forward.2} parent=27 // pred_fallthru
              _
            // Predicated region
            $region33: #{conv_block_forward.2} parent=27 // pred_check
              _
            $region34: #{conv_block_forward.2} parent=27 // pred_check_branch
              %147 = sbr.rel target = $region36
            $region35: #{conv_block_forward.2} parent=27 // pred_region
              %s149 = ssub.s32 256, 1
              loop: start=0, step=1, limit=1
              $region37: #{conv_block_forward.2} parent=35 // loop_pre_header
                _
              $region38: #{conv_block_forward.2} parent=35 // loop_header
                %s151 = sphi 0, %s155
                %p152 = scmp.ge.s32.totalorder %s151, 1
                %s156 = sphi %s141, %s141
                %s157 = sphi %s137, %s137
              $region39: #{conv_block_forward.2} parent=35 // loop_header_branch
                %154 = sbr.rel (%p152) target = $region43
              $region40: #{conv_block_forward.2} parent=35 // loop_body
                %v158 = vld [vmem:[%s156] sm:%s149]
                %159 = vst [vmem:[%s157] sm:%s149] %v158
                %v160 = vld [vmem:[%s156 + $0x8] sm:%s149]
                %161 = vst [vmem:[%s157 + $0x8] sm:%s149] %v160
                %v162 = vld [vmem:[%s156 + $0x10] sm:%s149]
                %163 = vst [vmem:[%s157 + $0x10] sm:%s149] %v162
                %v164 = vld [vmem:[%s156 + $0x18] sm:%s149]
                %165 = vst [vmem:[%s157 + $0x18] sm:%s149] %v164
                %v166 = vld [vmem:[%s156 + $0x20] sm:%s149]
                %167 = vst [vmem:[%s157 + $0x20] sm:%s149] %v166
                %v168 = vld [vmem:[%s156 + $0x28] sm:%s149]
                %169 = vst [vmem:[%s157 + $0x28] sm:%s149] %v168
                %v170 = vld [vmem:[%s156 + $0x30] sm:%s149]
                %171 = vst [vmem:[%s157 + $0x30] sm:%s149] %v170
                %v172 = vld [vmem:[%s156 + $0x38] sm:%s149]
                %173 = vst [vmem:[%s157 + $0x38] sm:%s149] %v172
                %v174 = vld [vmem:[%s156 + $0x40] sm:%s149]
                %175 = vst [vmem:[%s157 + $0x40] sm:%s149] %v174
                %v176 = vld [vmem:[%s156 + $0x48] sm:%s149]
                %177 = vst [vmem:[%s157 + $0x48] sm:%s149] %v176
                %v178 = vld [vmem:[%s156 + $0x50] sm:%s149]
                %179 = vst [vmem:[%s157 + $0x50] sm:%s149] %v178
                %v180 = vld [vmem:[%s156 + $0x58] sm:%s149]
                %181 = vst [vmem:[%s157 + $0x58] sm:%s149] %v180
                %v182 = vld [vmem:[%s156 + $0x60] sm:%s149]
                %183 = vst [vmem:[%s157 + $0x60] sm:%s149] %v182
                %v184 = vld [vmem:[%s156 + $0x68] sm:%s149]
                %185 = vst [vmem:[%s157 + $0x68] sm:%s149] %v184
                %v186 = vld [vmem:[%s156 + $0x70] sm:%s149]
                %187 = vst [vmem:[%s157 + $0x70] sm:%s149] %v186
                %v188 = vld [vmem:[%s156 + $0x78] sm:%s149]
                %189 = vst [vmem:[%s157 + $0x78] sm:%s149] %v188
                %v190 = vld [vmem:[%s156 + $0x80] sm:%s149]
                %191 = vst [vmem:[%s157 + $0x80] sm:%s149] %v190
                %v192 = vld [vmem:[%s156 + $0x88] sm:%s149]
                %193 = vst [vmem:[%s157 + $0x88] sm:%s149] %v192
                %v194 = vld [vmem:[%s156 + $0x90] sm:%s149]
                %195 = vst [vmem:[%s157 + $0x90] sm:%s149] %v194
                %v196 = vld [vmem:[%s156 + $0x98] sm:%s149]
                %197 = vst [vmem:[%s157 + $0x98] sm:%s149] %v196
                %v198 = vld [vmem:[%s156 + $0xa0] sm:%s149]
                %199 = vst [vmem:[%s157 + $0xa0] sm:%s149] %v198
                %v200 = vld [vmem:[%s156 + $0xa8] sm:%s149]
                %201 = vst [vmem:[%s157 + $0xa8] sm:%s149] %v200
                %v202 = vld [vmem:[%s156 + $0xb0] sm:%s149]
                %203 = vst [vmem:[%s157 + $0xb0] sm:%s149] %v202
                %v204 = vld [vmem:[%s156 + $0xb8] sm:%s149]
                %205 = vst [vmem:[%s157 + $0xb8] sm:%s149] %v204
                %v206 = vld [vmem:[%s156 + $0xc0] sm:%s149]
                %207 = vst [vmem:[%s157 + $0xc0] sm:%s149] %v206
                %v208 = vld [vmem:[%s156 + $0xc8] sm:%s149]
                %209 = vst [vmem:[%s157 + $0xc8] sm:%s149] %v208
                %v210 = vld [vmem:[%s156 + $0xd0] sm:%s149]
                %211 = vst [vmem:[%s157 + $0xd0] sm:%s149] %v210
                %v212 = vld [vmem:[%s156 + $0xd8] sm:%s149]
                %213 = vst [vmem:[%s157 + $0xd8] sm:%s149] %v212
                %v214 = vld [vmem:[%s156 + $0xe0] sm:%s149]
                %215 = vst [vmem:[%s157 + $0xe0] sm:%s149] %v214
                %v216 = vld [vmem:[%s156 + $0xe8] sm:%s149]
                %217 = vst [vmem:[%s157 + $0xe8] sm:%s149] %v216
                %v218 = vld [vmem:[%s156 + $0xf0] sm:%s149]
                %219 = vst [vmem:[%s157 + $0xf0] sm:%s149] %v218
                %v220 = vld [vmem:[%s156 + $0xf8] sm:%s149]
                %221 = vst [vmem:[%s157 + $0xf8] sm:%s149] %v220
                %v222 = vld [vmem:[%s156 + $0x100] sm:%s149]
                %223 = vst [vmem:[%s157 + $0x100] sm:%s149] %v222
                %v224 = vld [vmem:[%s156 + $0x108] sm:%s149]
                %225 = vst [vmem:[%s157 + $0x108] sm:%s149] %v224
                %v226 = vld [vmem:[%s156 + $0x110] sm:%s149]
                %227 = vst [vmem:[%s157 + $0x110] sm:%s149] %v226
                %v228 = vld [vmem:[%s156 + $0x118] sm:%s149]
                %229 = vst [vmem:[%s157 + $0x118] sm:%s149] %v228
                %v230 = vld [vmem:[%s156 + $0x120] sm:%s149]
                %231 = vst [vmem:[%s157 + $0x120] sm:%s149] %v230
                %v232 = vld [vmem:[%s156 + $0x128] sm:%s149]
                %233 = vst [vmem:[%s157 + $0x128] sm:%s149] %v232
                %v234 = vld [vmem:[%s156 + $0x130] sm:%s149]
                %235 = vst [vmem:[%s157 + $0x130] sm:%s149] %v234
                %v236 = vld [vmem:[%s156 + $0x138] sm:%s149]
                %237 = vst [vmem:[%s157 + $0x138] sm:%s149] %v236
                %v238 = vld [vmem:[%s156 + $0x140] sm:%s149]
                %239 = vst [vmem:[%s157 + $0x140] sm:%s149] %v238
                %v240 = vld [vmem:[%s156 + $0x148] sm:%s149]
                %241 = vst [vmem:[%s157 + $0x148] sm:%s149] %v240
                %v242 = vld [vmem:[%s156 + $0x150] sm:%s149]
                %243 = vst [vmem:[%s157 + $0x150] sm:%s149] %v242
                %v244 = vld [vmem:[%s156 + $0x158] sm:%s149]
                %245 = vst [vmem:[%s157 + $0x158] sm:%s149] %v244
                %v246 = vld [vmem:[%s156 + $0x160] sm:%s149]
                %247 = vst [vmem:[%s157 + $0x160] sm:%s149] %v246
                %v248 = vld [vmem:[%s156 + $0x168] sm:%s149]
                %249 = vst [vmem:[%s157 + $0x168] sm:%s149] %v248
                %v250 = vld [vmem:[%s156 + $0x170] sm:%s149]
                %251 = vst [vmem:[%s157 + $0x170] sm:%s149] %v250
                %v252 = vld [vmem:[%s156 + $0x178] sm:%s149]
                %253 = vst [vmem:[%s157 + $0x178] sm:%s149] %v252
                %v254 = vld [vmem:[%s156 + $0x180] sm:%s149]
                %255 = vst [vmem:[%s157 + $0x180] sm:%s149] %v254
                %v256 = vld [vmem:[%s156 + $0x188] sm:%s149]
                %257 = vst [vmem:[%s157 + $0x188] sm:%s149] %v256
                %v258 = vld [vmem:[%s156 + $0x190] sm:%s149]
                %259 = vst [vmem:[%s157 + $0x190] sm:%s149] %v258
                %v260 = vld [vmem:[%s156 + $0x198] sm:%s149]
                %261 = vst [vmem:[%s157 + $0x198] sm:%s149] %v260
                %v262 = vld [vmem:[%s156 + $0x1a0] sm:%s149]
                %263 = vst [vmem:[%s157 + $0x1a0] sm:%s149] %v262
                %v264 = vld [vmem:[%s156 + $0x1a8] sm:%s149]
                %265 = vst [vmem:[%s157 + $0x1a8] sm:%s149] %v264
                %v266 = vld [vmem:[%s156 + $0x1b0] sm:%s149]
                %267 = vst [vmem:[%s157 + $0x1b0] sm:%s149] %v266
                %v268 = vld [vmem:[%s156 + $0x1b8] sm:%s149]
                %269 = vst [vmem:[%s157 + $0x1b8] sm:%s149] %v268
                %v270 = vld [vmem:[%s156 + $0x1c0] sm:%s149]
                %271 = vst [vmem:[%s157 + $0x1c0] sm:%s149] %v270
                %v272 = vld [vmem:[%s156 + $0x1c8] sm:%s149]
                %273 = vst [vmem:[%s157 + $0x1c8] sm:%s149] %v272
                %v274 = vld [vmem:[%s156 + $0x1d0] sm:%s149]
                %275 = vst [vmem:[%s157 + $0x1d0] sm:%s149] %v274
                %v276 = vld [vmem:[%s156 + $0x1d8] sm:%s149]
                %277 = vst [vmem:[%s157 + $0x1d8] sm:%s149] %v276
                %v278 = vld [vmem:[%s156 + $0x1e0] sm:%s149]
                %279 = vst [vmem:[%s157 + $0x1e0] sm:%s149] %v278
                %v280 = vld [vmem:[%s156 + $0x1e8] sm:%s149]
                %281 = vst [vmem:[%s157 + $0x1e8] sm:%s149] %v280
                %v282 = vld [vmem:[%s156 + $0x1f0] sm:%s149]
                %283 = vst [vmem:[%s157 + $0x1f0] sm:%s149] %v282
                %v284 = vld [vmem:[%s156 + $0x1f8] sm:%s149]
                %285 = vst [vmem:[%s157 + $0x1f8] sm:%s149] %v284
                %v286 = vld [vmem:[%s156 + $0x200] sm:%s149]
                %287 = vst [vmem:[%s157 + $0x200] sm:%s149] %v286
                %v288 = vld [vmem:[%s156 + $0x208] sm:%s149]
                %289 = vst [vmem:[%s157 + $0x208] sm:%s149] %v288
                %v290 = vld [vmem:[%s156 + $0x210] sm:%s149]
                %291 = vst [vmem:[%s157 + $0x210] sm:%s149] %v290
                %v292 = vld [vmem:[%s156 + $0x218] sm:%s149]
                %293 = vst [vmem:[%s157 + $0x218] sm:%s149] %v292
                %v294 = vld [vmem:[%s156 + $0x220] sm:%s149]
                %295 = vst [vmem:[%s157 + $0x220] sm:%s149] %v294
                %v296 = vld [vmem:[%s156 + $0x228] sm:%s149]
                %297 = vst [vmem:[%s157 + $0x228] sm:%s149] %v296
                %v298 = vld [vmem:[%s156 + $0x230] sm:%s149]
                %299 = vst [vmem:[%s157 + $0x230] sm:%s149] %v298
                %v300 = vld [vmem:[%s156 + $0x238] sm:%s149]
                %301 = vst [vmem:[%s157 + $0x238] sm:%s149] %v300
                %v302 = vld [vmem:[%s156 + $0x240] sm:%s149]
                %303 = vst [vmem:[%s157 + $0x240] sm:%s149] %v302
                %v304 = vld [vmem:[%s156 + $0x248] sm:%s149]
                %305 = vst [vmem:[%s157 + $0x248] sm:%s149] %v304
                %v306 = vld [vmem:[%s156 + $0x250] sm:%s149]
                %307 = vst [vmem:[%s157 + $0x250] sm:%s149] %v306
                %v308 = vld [vmem:[%s156 + $0x258] sm:%s149]
                %309 = vst [vmem:[%s157 + $0x258] sm:%s149] %v308
                %v310 = vld [vmem:[%s156 + $0x260] sm:%s149]
                %311 = vst [vmem:[%s157 + $0x260] sm:%s149] %v310
                %v312 = vld [vmem:[%s156 + $0x268] sm:%s149]
                %313 = vst [vmem:[%s157 + $0x268] sm:%s149] %v312
                %v314 = vld [vmem:[%s156 + $0x270] sm:%s149]
                %315 = vst [vmem:[%s157 + $0x270] sm:%s149] %v314
                %v316 = vld [vmem:[%s156 + $0x278] sm:%s149]
                %317 = vst [vmem:[%s157 + $0x278] sm:%s149] %v316
                %v318 = vld [vmem:[%s156 + $0xa00] sm:%s149]
                %319 = vst [vmem:[%s157 + $0x280] sm:%s149] %v318
                %v320 = vld [vmem:[%s156 + $0xa08] sm:%s149]
                %321 = vst [vmem:[%s157 + $0x288] sm:%s149] %v320
                %v322 = vld [vmem:[%s156 + $0xa10] sm:%s149]
                %323 = vst [vmem:[%s157 + $0x290] sm:%s149] %v322
                %v324 = vld [vmem:[%s156 + $0xa18] sm:%s149]
                %325 = vst [vmem:[%s157 + $0x298] sm:%s149] %v324
                %v326 = vld [vmem:[%s156 + $0xa20] sm:%s149]
                %327 = vst [vmem:[%s157 + $0x2a0] sm:%s149] %v326
                %v328 = vld [vmem:[%s156 + $0xa28] sm:%s149]
                %329 = vst [vmem:[%s157 + $0x2a8] sm:%s149] %v328
                %v330 = vld [vmem:[%s156 + $0xa30] sm:%s149]
                %331 = vst [vmem:[%s157 + $0x2b0] sm:%s149] %v330
                %v332 = vld [vmem:[%s156 + $0xa38] sm:%s149]
                %333 = vst [vmem:[%s157 + $0x2b8] sm:%s149] %v332
                %v334 = vld [vmem:[%s156 + $0xa40] sm:%s149]
                %335 = vst [vmem:[%s157 + $0x2c0] sm:%s149] %v334
                %v336 = vld [vmem:[%s156 + $0xa48] sm:%s149]
                %337 = vst [vmem:[%s157 + $0x2c8] sm:%s149] %v336
                %v338 = vld [vmem:[%s156 + $0xa50] sm:%s149]
                %339 = vst [vmem:[%s157 + $0x2d0] sm:%s149] %v338
                %v340 = vld [vmem:[%s156 + $0xa58] sm:%s149]
                %341 = vst [vmem:[%s157 + $0x2d8] sm:%s149] %v340
                %v342 = vld [vmem:[%s156 + $0xa60] sm:%s149]
                %343 = vst [vmem:[%s157 + $0x2e0] sm:%s149] %v342
                %v344 = vld [vmem:[%s156 + $0xa68] sm:%s149]
                %345 = vst [vmem:[%s157 + $0x2e8] sm:%s149] %v344
                %v346 = vld [vmem:[%s156 + $0xa70] sm:%s149]
                %347 = vst [vmem:[%s157 + $0x2f0] sm:%s149] %v346
                %v348 = vld [vmem:[%s156 + $0xa78] sm:%s149]
                %349 = vst [vmem:[%s157 + $0x2f8] sm:%s149] %v348
                %v350 = vld [vmem:[%s156 + $0xa80] sm:%s149]
                %351 = vst [vmem:[%s157 + $0x300] sm:%s149] %v350
                %v352 = vld [vmem:[%s156 + $0xa88] sm:%s149]
                %353 = vst [vmem:[%s157 + $0x308] sm:%s149] %v352
                %v354 = vld [vmem:[%s156 + $0xa90] sm:%s149]
                %355 = vst [vmem:[%s157 + $0x310] sm:%s149] %v354
                %v356 = vld [vmem:[%s156 + $0xa98] sm:%s149]
                %357 = vst [vmem:[%s157 + $0x318] sm:%s149] %v356
                %v358 = vld [vmem:[%s156 + $0xaa0] sm:%s149]
                %359 = vst [vmem:[%s157 + $0x320] sm:%s149] %v358
                %v360 = vld [vmem:[%s156 + $0xaa8] sm:%s149]
                %361 = vst [vmem:[%s157 + $0x328] sm:%s149] %v360
                %v362 = vld [vmem:[%s156 + $0xab0] sm:%s149]
                %363 = vst [vmem:[%s157 + $0x330] sm:%s149] %v362
                %v364 = vld [vmem:[%s156 + $0xab8] sm:%s149]
                %365 = vst [vmem:[%s157 + $0x338] sm:%s149] %v364
                %v366 = vld [vmem:[%s156 + $0xac0] sm:%s149]
                %367 = vst [vmem:[%s157 + $0x340] sm:%s149] %v366
                %v368 = vld [vmem:[%s156 + $0xac8] sm:%s149]
                %369 = vst [vmem:[%s157 + $0x348] sm:%s149] %v368
                %v370 = vld [vmem:[%s156 + $0xad0] sm:%s149]
                %371 = vst [vmem:[%s157 + $0x350] sm:%s149] %v370
                %v372 = vld [vmem:[%s156 + $0xad8] sm:%s149]
                %373 = vst [vmem:[%s157 + $0x358] sm:%s149] %v372
                %v374 = vld [vmem:[%s156 + $0xae0] sm:%s149]
                %375 = vst [vmem:[%s157 + $0x360] sm:%s149] %v374
                %v376 = vld [vmem:[%s156 + $0xae8] sm:%s149]
                %377 = vst [vmem:[%s157 + $0x368] sm:%s149] %v376
                %v378 = vld [vmem:[%s156 + $0xaf0] sm:%s149]
                %379 = vst [vmem:[%s157 + $0x370] sm:%s149] %v378
                %v380 = vld [vmem:[%s156 + $0xaf8] sm:%s149]
                %381 = vst [vmem:[%s157 + $0x378] sm:%s149] %v380
                %v382 = vld [vmem:[%s156 + $0xb00] sm:%s149]
                %383 = vst [vmem:[%s157 + $0x380] sm:%s149] %v382
                %v384 = vld [vmem:[%s156 + $0xb08] sm:%s149]
                %385 = vst [vmem:[%s157 + $0x388] sm:%s149] %v384
                %v386 = vld [vmem:[%s156 + $0xb10] sm:%s149]
                %387 = vst [vmem:[%s157 + $0x390] sm:%s149] %v386
                %v388 = vld [vmem:[%s156 + $0xb18] sm:%s149]
                %389 = vst [vmem:[%s157 + $0x398] sm:%s149] %v388
                %v390 = vld [vmem:[%s156 + $0xb20] sm:%s149]
                %391 = vst [vmem:[%s157 + $0x3a0] sm:%s149] %v390
                %v392 = vld [vmem:[%s156 + $0xb28] sm:%s149]
                %393 = vst [vmem:[%s157 + $0x3a8] sm:%s149] %v392
                %v394 = vld [vmem:[%s156 + $0xb30] sm:%s149]
                %395 = vst [vmem:[%s157 + $0x3b0] sm:%s149] %v394
                %v396 = vld [vmem:[%s156 + $0xb38] sm:%s149]
                %397 = vst [vmem:[%s157 + $0x3b8] sm:%s149] %v396
                %v398 = vld [vmem:[%s156 + $0xb40] sm:%s149]
                %399 = vst [vmem:[%s157 + $0x3c0] sm:%s149] %v398
                %v400 = vld [vmem:[%s156 + $0xb48] sm:%s149]
                %401 = vst [vmem:[%s157 + $0x3c8] sm:%s149] %v400
                %v402 = vld [vmem:[%s156 + $0xb50] sm:%s149]
                %403 = vst [vmem:[%s157 + $0x3d0] sm:%s149] %v402
                %v404 = vld [vmem:[%s156 + $0xb58] sm:%s149]
                %405 = vst [vmem:[%s157 + $0x3d8] sm:%s149] %v404
                %v406 = vld [vmem:[%s156 + $0xb60] sm:%s149]
                %407 = vst [vmem:[%s157 + $0x3e0] sm:%s149] %v406
                %v408 = vld [vmem:[%s156 + $0xb68] sm:%s149]
                %409 = vst [vmem:[%s157 + $0x3e8] sm:%s149] %v408
                %v410 = vld [vmem:[%s156 + $0xb70] sm:%s149]
                %411 = vst [vmem:[%s157 + $0x3f0] sm:%s149] %v410
                %v412 = vld [vmem:[%s156 + $0xb78] sm:%s149]
                %413 = vst [vmem:[%s157 + $0x3f8] sm:%s149] %v412
                %v414 = vld [vmem:[%s156 + $0xb80] sm:%s149]
                %415 = vst [vmem:[%s157 + $0x400] sm:%s149] %v414
                %v416 = vld [vmem:[%s156 + $0xb88] sm:%s149]
                %417 = vst [vmem:[%s157 + $0x408] sm:%s149] %v416
                %v418 = vld [vmem:[%s156 + $0xb90] sm:%s149]
                %419 = vst [vmem:[%s157 + $0x410] sm:%s149] %v418
                %v420 = vld [vmem:[%s156 + $0xb98] sm:%s149]
                %421 = vst [vmem:[%s157 + $0x418] sm:%s149] %v420
                %v422 = vld [vmem:[%s156 + $0xba0] sm:%s149]
                %423 = vst [vmem:[%s157 + $0x420] sm:%s149] %v422
                %v424 = vld [vmem:[%s156 + $0xba8] sm:%s149]
                %425 = vst [vmem:[%s157 + $0x428] sm:%s149] %v424
                %v426 = vld [vmem:[%s156 + $0xbb0] sm:%s149]
                %427 = vst [vmem:[%s157 + $0x430] sm:%s149] %v426
                %v428 = vld [vmem:[%s156 + $0xbb8] sm:%s149]
                %429 = vst [vmem:[%s157 + $0x438] sm:%s149] %v428
                %v430 = vld [vmem:[%s156 + $0xbc0] sm:%s149]
                %431 = vst [vmem:[%s157 + $0x440] sm:%s149] %v430
                %v432 = vld [vmem:[%s156 + $0xbc8] sm:%s149]
                %433 = vst [vmem:[%s157 + $0x448] sm:%s149] %v432
                %v434 = vld [vmem:[%s156 + $0xbd0] sm:%s149]
                %435 = vst [vmem:[%s157 + $0x450] sm:%s149] %v434
                %v436 = vld [vmem:[%s156 + $0xbd8] sm:%s149]
                %437 = vst [vmem:[%s157 + $0x458] sm:%s149] %v436
                %v438 = vld [vmem:[%s156 + $0xbe0] sm:%s149]
                %439 = vst [vmem:[%s157 + $0x460] sm:%s149] %v438
                %v440 = vld [vmem:[%s156 + $0xbe8] sm:%s149]
                %441 = vst [vmem:[%s157 + $0x468] sm:%s149] %v440
                %v442 = vld [vmem:[%s156 + $0xbf0] sm:%s149]
                %443 = vst [vmem:[%s157 + $0x470] sm:%s149] %v442
                %v444 = vld [vmem:[%s156 + $0xbf8] sm:%s149]
                %445 = vst [vmem:[%s157 + $0x478] sm:%s149] %v444
                %v446 = vld [vmem:[%s156 + $0xc00] sm:%s149]
                %447 = vst [vmem:[%s157 + $0x480] sm:%s149] %v446
                %v448 = vld [vmem:[%s156 + $0xc08] sm:%s149]
                %449 = vst [vmem:[%s157 + $0x488] sm:%s149] %v448
                %v450 = vld [vmem:[%s156 + $0xc10] sm:%s149]
                %451 = vst [vmem:[%s157 + $0x490] sm:%s149] %v450
                %v452 = vld [vmem:[%s156 + $0xc18] sm:%s149]
                %453 = vst [vmem:[%s157 + $0x498] sm:%s149] %v452
                %v454 = vld [vmem:[%s156 + $0xc20] sm:%s149]
                %455 = vst [vmem:[%s157 + $0x4a0] sm:%s149] %v454
                %v456 = vld [vmem:[%s156 + $0xc28] sm:%s149]
                %457 = vst [vmem:[%s157 + $0x4a8] sm:%s149] %v456
                %v458 = vld [vmem:[%s156 + $0xc30] sm:%s149]
                %459 = vst [vmem:[%s157 + $0x4b0] sm:%s149] %v458
                %v460 = vld [vmem:[%s156 + $0xc38] sm:%s149]
                %461 = vst [vmem:[%s157 + $0x4b8] sm:%s149] %v460
                %v462 = vld [vmem:[%s156 + $0xc40] sm:%s149]
                %463 = vst [vmem:[%s157 + $0x4c0] sm:%s149] %v462
                %v464 = vld [vmem:[%s156 + $0xc48] sm:%s149]
                %465 = vst [vmem:[%s157 + $0x4c8] sm:%s149] %v464
                %v466 = vld [vmem:[%s156 + $0xc50] sm:%s149]
                %467 = vst [vmem:[%s157 + $0x4d0] sm:%s149] %v466
                %v468 = vld [vmem:[%s156 + $0xc58] sm:%s149]
                %469 = vst [vmem:[%s157 + $0x4d8] sm:%s149] %v468
                %v470 = vld [vmem:[%s156 + $0xc60] sm:%s149]
                %471 = vst [vmem:[%s157 + $0x4e0] sm:%s149] %v470
                %v472 = vld [vmem:[%s156 + $0xc68] sm:%s149]
                %473 = vst [vmem:[%s157 + $0x4e8] sm:%s149] %v472
                %v474 = vld [vmem:[%s156 + $0xc70] sm:%s149]
                %475 = vst [vmem:[%s157 + $0x4f0] sm:%s149] %v474
                %v476 = vld [vmem:[%s156 + $0xc78] sm:%s149]
                %477 = vst [vmem:[%s157 + $0x4f8] sm:%s149] %v476
              $region41: #{conv_block_forward.2} parent=35 // loop_footer
                %s155 = sadd.s32 1, %s151
              $region42: #{conv_block_forward.2} parent=35 // loop_footer_branch
                %150 = sbr.rel target = $region38
              $region43: #{conv_block_forward.2} parent=35 // loop_exit
                _
            $region36: #{conv_block_forward.2} parent=27 // pred_fallthru
              _
          $region28: #{conv_block_forward.2} parent=23 // pred_fallthru
            _
          %810 = vnop
        $region24: #{conv_block_forward.2} parent=19 // pred_fallthru
          _
      $region20: #{conv_block_forward.2} parent=5 // pred_fallthru
        _
      %p811 = scmp.le.s32.totalorder 1, %s10
      %p812 = scmp.lt.s32.totalorder %s10, 5
      %p813 = pnand %p811, %p812
      %p814 = pneg %p813
      // Predicated region
      $region59: #{conv_block_forward.2} parent=5 // pred_check
        _
      $region60: #{conv_block_forward.2} parent=5 // pred_check_branch
        %816 = sbr.rel (%p813) target = $region62
      $region61: #{conv_block_forward.2} parent=5 // pred_region
        %s817 = ssub.s32 %s10, 1
        %s818 = sand.u32 %s23, 1
        %s819 = sand.u32 %s23, 1
        %s820 = smul.addr %s819, 1280
        %s821 = scalar_lea.vmem [#allocation2], %s820
        // Predicated region
        $region63: #{conv_block_forward.2} parent=61 // pred_check
          %p822 = pneg %p36
        $region64: #{conv_block_forward.2} parent=61 // pred_check_branch
          %824 = sbr.rel (%p822) target = $region66
        $region65: #{conv_block_forward.2} parent=61 // pred_region
          _
        $region66: #{conv_block_forward.2} parent=61 // pred_fallthru
          _
        %s825 = sand.u32 %s23, 1
        %s826 = sand.u32 %s23, 1
        %s827 = smul.addr %s826, 1280
        %s828 = scalar_lea.vmem [#allocation2], %s827
        %p829 = pneg %p36
        %p830 = pneg %p33
        %p831 = pneg %p57
        %p832 = pneg %p54
        %p833 = pneg %p83
        %p834 = pneg %p80
        %s835 = smul.u32 64, %s15
        %p836 = scmp.lt.s32.totalorder %s835, 255
        %s837 = scalar_select %p836, %s835, 255
        %s838 = smul.addr %s837, 4
        %s839 = scalar_lea.vmem %s2, %s838
        %p840 = pneg %p109
        %p841 = pneg %p106
        %p842 = scmp.lt.s32.totalorder %s15, 3
        %s843 = scalar_select %p842, %s15, 3
        %s844 = smul.addr %s843, 8
        %s845 = scalar_lea.vmem %s3, %s844
        %s846 = smul.u32 16, %s15
        %s847 = smul.u32 64, %s15
        %p848 = scmp.lt.s32.totalorder %s847, 255
        %s849 = scalar_select %p848, %s847, 255
        %s850 = smul.addr %s849, 4
        %s851 = scalar_lea.vmem %s2, %s850
        %s852 = smul.u32 64, %s15
        %p853 = scmp.lt.s32.totalorder %s15, 3
        %s854 = scalar_select %p853, %s15, 3
        %s855 = smul.addr %s854, 8
        %s856 = scalar_lea.vmem %s3, %s855
        %v858 = vld [vmem:[%s821] sm:$0xff]
        %v859 = vld [vmem:[%s821 + $0x8] sm:$0xff]
        %v860 = vld [vmem:[%s821 + $0x10] sm:$0xff]
        %v861 = vld [vmem:[%s821 + $0x18] sm:$0xff]
        %v862 = vld [vmem:[%s821 + $0x28] sm:$0xff]
        %v863 = vld [vmem:[%s821 + $0x30] sm:$0xff]
        %v864 = vld [vmem:[%s821 + $0x38] sm:$0xff]
        %v865 = vld [vmem:[%s821 + $0x40] sm:$0xff]
        %v866 = vld [vmem:[%s821 + $0x50] sm:$0xff]
        %v867 = vld [vmem:[%s821 + $0x58] sm:$0xff]
        %v868 = vld [vmem:[%s821 + $0x60] sm:$0xff]
        %v869 = vld [vmem:[%s821 + $0x68] sm:$0xff]
        %v870 = vld [vmem:[%s821 + $0x78] sm:$0xff]
        %v871 = vld [vmem:[%s821 + $0x80] sm:$0xff]
        %v872 = vld [vmem:[%s821 + $0x88] sm:$0xff]
        %v873 = vld [vmem:[%s821 + $0x90] sm:$0xff]
        %v874 = vld [vmem:[%s1] sm:$0xf]
        %v875 = vld [vmem:[%s1 + $0x4] sm:$0xf]
        %v876 = vld [vmem:[%s1 + $0x8] sm:$0xf]
        %v877 = vld [vmem:[%s1 + $0xc] sm:$0xf]
        %v878 = vld [vmem:[%s1 + $0x10] sm:$0xf]
        %v879 = vld [vmem:[%s1 + $0x14] sm:$0xf]
        %v880 = vld [vmem:[%s1 + $0x18] sm:$0xf]
        %v881 = vld [vmem:[%s1 + $0x1c] sm:$0xf]
        %v882 = vld [vmem:[%s1 + $0x20] sm:$0xf]
        %v883 = vld [vmem:[%s1 + $0x24] sm:$0xf]
        %v884 = vld [vmem:[%s1 + $0x28] sm:$0xf]
        %v885 = vld [vmem:[%s1 + $0x2c] sm:$0xf]
        %v886 = vld [vmem:[%s1 + $0x30] sm:$0xf]
        %v887 = vld [vmem:[%s1 + $0x34] sm:$0xf]
        %v888 = vld [vmem:[%s1 + $0x38] sm:$0xf]
        %v889 = vld [vmem:[%s1 + $0x3c] sm:$0xf]
        %v890 = vld [vmem:[%s1 + $0x40] sm:$0xf]
        %v891 = vld [vmem:[%s1 + $0x44] sm:$0xf]
        %v892 = vld [vmem:[%s1 + $0x48] sm:$0xf]
        %v893 = vld [vmem:[%s1 + $0x4c] sm:$0xf]
        %v894 = vld [vmem:[%s1 + $0x50] sm:$0xf]
        %v895 = vld [vmem:[%s1 + $0x54] sm:$0xf]
        %v896 = vld [vmem:[%s1 + $0x58] sm:$0xf]
        %v897 = vld [vmem:[%s1 + $0x5c] sm:$0xf]
        %s898 = scalar_lea.vmem %s821, 640 [#allocation2]
        %v899 = vld [vmem:[%s898] sm:$0xff]
        %v900 = vld [vmem:[%s898 + $0x8] sm:$0xff]
        %v901 = vld [vmem:[%s898 + $0x10] sm:$0xff]
        %v902 = vld [vmem:[%s898 + $0x18] sm:$0xff]
        %v903 = vld [vmem:[%s898 + $0x28] sm:$0xff]
        %v904 = vld [vmem:[%s898 + $0x30] sm:$0xff]
        %v905 = vld [vmem:[%s898 + $0x38] sm:$0xff]
        %v906 = vld [vmem:[%s898 + $0x40] sm:$0xff]
        %v907 = vld [vmem:[%s898 + $0x50] sm:$0xff]
        %v908 = vld [vmem:[%s898 + $0x58] sm:$0xff]
        %v909 = vld [vmem:[%s898 + $0x60] sm:$0xff]
        %v910 = vld [vmem:[%s898 + $0x68] sm:$0xff]
        %v911 = vld [vmem:[%s898 + $0x78] sm:$0xff]
        %v912 = vld [vmem:[%s898 + $0x80] sm:$0xff]
        %v913 = vld [vmem:[%s898 + $0x88] sm:$0xff]
        %v914 = vld [vmem:[%s898 + $0x90] sm:$0xff]
        %s915 = scalar_lea.vmem %s1, 96
        %v916 = vld [vmem:[%s915] sm:$0xf]
        %v917 = vld [vmem:[%s915 + $0x4] sm:$0xf]
        %v918 = vld [vmem:[%s915 + $0x8] sm:$0xf]
        %v919 = vld [vmem:[%s915 + $0xc] sm:$0xf]
        %v920 = vld [vmem:[%s915 + $0x10] sm:$0xf]
        %v921 = vld [vmem:[%s915 + $0x14] sm:$0xf]
        %v922 = vld [vmem:[%s915 + $0x18] sm:$0xf]
        %v923 = vld [vmem:[%s915 + $0x1c] sm:$0xf]
        %v924 = vld [vmem:[%s915 + $0x20] sm:$0xf]
        %v925 = vld [vmem:[%s915 + $0x24] sm:$0xf]
        %v926 = vld [vmem:[%s915 + $0x28] sm:$0xf]
        %v927 = vld [vmem:[%s915 + $0x2c] sm:$0xf]
        %v928 = vld [vmem:[%s915 + $0x30] sm:$0xf]
        %v929 = vld [vmem:[%s915 + $0x34] sm:$0xf]
        %v930 = vld [vmem:[%s915 + $0x38] sm:$0xf]
        %v931 = vld [vmem:[%s915 + $0x3c] sm:$0xf]
        %v932 = vld [vmem:[%s915 + $0x40] sm:$0xf]
        %v933 = vld [vmem:[%s915 + $0x44] sm:$0xf]
        %v934 = vld [vmem:[%s915 + $0x48] sm:$0xf]
        %v935 = vld [vmem:[%s915 + $0x4c] sm:$0xf]
        %v936 = vld [vmem:[%s915 + $0x50] sm:$0xf]
        %v937 = vld [vmem:[%s915 + $0x54] sm:$0xf]
        %v938 = vld [vmem:[%s915 + $0x58] sm:$0xf]
        %v939 = vld [vmem:[%s915 + $0x5c] sm:$0xf]
        %v956 = vunpack.c.l.b16 %v899
        %v957 = vunpack.c.h.b16 %v899
        %v958 = vunpack.c.l.b16 %v900
        %v959 = vunpack.c.h.b16 %v900
        %v960 = vunpack.c.l.b16 %v901
        %v961 = vunpack.c.h.b16 %v901
        %v962 = vunpack.c.l.b16 %v902
        %v963 = vunpack.c.h.b16 %v902
        %v964 = vunpack.c.l.b16 %v903
        %v965 = vunpack.c.h.b16 %v903
        %v966 = vunpack.c.l.b16 %v904
        %v967 = vunpack.c.h.b16 %v904
        %v968 = vunpack.c.l.b16 %v905
        %v969 = vunpack.c.h.b16 %v905
        %v970 = vunpack.c.l.b16 %v906
        %v971 = vunpack.c.h.b16 %v906
        %v972 = vunpack.c.l.b16 %v907
        %v973 = vunpack.c.h.b16 %v907
        %v974 = vunpack.c.l.b16 %v908
        %v975 = vunpack.c.h.b16 %v908
        %v976 = vunpack.c.l.b16 %v909
        %v977 = vunpack.c.h.b16 %v909
        %v978 = vunpack.c.l.b16 %v910
        %v979 = vunpack.c.h.b16 %v910
        %v980 = vunpack.c.l.b16 %v911
        %v981 = vunpack.c.h.b16 %v911
        %v982 = vunpack.c.l.b16 %v912
        %v983 = vunpack.c.h.b16 %v912
        %v984 = vunpack.c.l.b16 %v913
        %v985 = vunpack.c.h.b16 %v913
        %v986 = vunpack.c.l.b16 %v914
        %v987 = vunpack.c.h.b16 %v914
        %v988 = vpack.c.b16 %v958, %v956
        %v989 = vpack.c.b16 %v959, %v957
        %v990 = vpack.c.b16 %v962, %v960
        %v991 = vpack.c.b16 %v963, %v961
        %v992 = vpack.c.b16 %v966, %v964
        %v993 = vpack.c.b16 %v967, %v965
        %v994 = vpack.c.b16 %v970, %v968
        %v995 = vpack.c.b16 %v971, %v969
        %v996 = vpack.c.b16 %v974, %v972
        %v997 = vpack.c.b16 %v975, %v973
        %v998 = vpack.c.b16 %v978, %v976
        %v999 = vpack.c.b16 %v979, %v977
        %v1000 = vpack.c.b16 %v982, %v980
        %v1001 = vpack.c.b16 %v983, %v981
        %v1002 = vpack.c.b16 %v986, %v984
        %v1003 = vpack.c.b16 %v987, %v985
        %v1036 = vunpack.c.l.b16 %v916
        %v1037 = vunpack.c.l.b16 %v917
        %v1038 = vunpack.c.l.b16 %v918
        %v1039 = vunpack.c.l.b16 %v919
        %v1040 = vunpack.c.l.b16 %v920
        %v1041 = vunpack.c.l.b16 %v921
        %v1042 = vunpack.c.l.b16 %v922
        %v1043 = vunpack.c.l.b16 %v923
        %v1044 = vunpack.c.l.b16 %v924
        %v1045 = vunpack.c.l.b16 %v925
        %v1046 = vunpack.c.l.b16 %v926
        %v1047 = vunpack.c.l.b16 %v927
        %v1048 = vunpack.c.l.b16 %v928
        %v1049 = vunpack.c.l.b16 %v929
        %v1050 = vunpack.c.l.b16 %v930
        %v1051 = vunpack.c.l.b16 %v931
        %v1052 = vunpack.c.l.b16 %v932
        %v1053 = vunpack.c.l.b16 %v933
        %v1054 = vunpack.c.l.b16 %v934
        %v1055 = vunpack.c.l.b16 %v935
        %v1056 = vunpack.c.l.b16 %v936
        %v1057 = vunpack.c.l.b16 %v937
        %v1058 = vunpack.c.l.b16 %v938
        %v1059 = vunpack.c.l.b16 %v939
        %v1060 = vpack.c.b16 %v1037, %v1036
        %v1061 = vpack.c.b16 %v1039, %v1038
        %v1062 = vpack.c.b16 %v1041, %v1040
        %v1063 = vpack.c.b16 %v1043, %v1042
        %v1064 = vpack.c.b16 %v1045, %v1044
        %v1065 = vpack.c.b16 %v1047, %v1046
        %v1066 = vpack.c.b16 %v1049, %v1048
        %v1067 = vpack.c.b16 %v1051, %v1050
        %v1068 = vpack.c.b16 %v1053, %v1052
        %v1069 = vpack.c.b16 %v1055, %v1054
        %v1070 = vpack.c.b16 %v1057, %v1056
        %v1071 = vpack.c.b16 %v1059, %v1058
        %vm1084 = vcmask 523264
        %v1086 = vsel %vm1084, %v989, 0
        %v1089 = vsel %vm1084, %v991, 0
        %v1092 = vsel %vm1084, %v993, 0
        %v1095 = vsel %vm1084, %v995, 0
        %v1098 = vsel %vm1084, %v997, 0
        %v1101 = vsel %vm1084, %v999, 0
        %v1104 = vsel %vm1084, %v1001, 0
        %v1107 = vsel %vm1084, %v1003, 0
        %1109 = vmatpush.bf16.msra.mxu0 %v1067
        %1110 = vmatpush.bf16.msra.mxu0 %v1066
        %1111 = vmatpush.bf16.msra.mxu0 %v1065
        %1112 = vmatpush.bf16.msra.mxu0 %v1064
        %1113 = vmatpush.bf16.msra.mxu0 %v1063
        %1114 = vmatpush.bf16.msra.mxu0 %v1062
        %1115 = vmatpush.bf16.msra.mxu0 %v1061
        %1116 = vmatpush.bf16.msra.mxu0 %v1060
        %1117 = vmatmul.bf16.gmra.mxu0 %v988
        %v1118 = vpop.f32.mrf.mxu0
        %v1119 = vadd.f32 0.0, %v1118
        %v1120 = vpop.f32.mrf.mxu0
        %v1121 = vadd.f32 0.0, %v1120
        %1122 = vmatmul.bf16.gmra.mxu0 %v990
        %v1123 = vpop.f32.mrf.mxu0
        %v1124 = vadd.f32 0.0, %v1123
        %v1125 = vpop.f32.mrf.mxu0
        %v1126 = vadd.f32 0.0, %v1125
        %1127 = vmatmul.bf16.gmra.mxu0 %v992
        %v1128 = vpop.f32.mrf.mxu0
        %v1129 = vadd.f32 0.0, %v1128
        %v1130 = vpop.f32.mrf.mxu0
        %v1131 = vadd.f32 0.0, %v1130
        %1132 = vmatmul.bf16.gmra.mxu0 %v994
        %v1133 = vpop.f32.mrf.mxu0
        %v1134 = vadd.f32 0.0, %v1133
        %v1135 = vpop.f32.mrf.mxu0
        %v1136 = vadd.f32 0.0, %v1135
        %1137 = vmatmul.bf16.gmra.mxu0 %v996
        %v1138 = vpop.f32.mrf.mxu0
        %v1139 = vadd.f32 0.0, %v1138
        %v1140 = vpop.f32.mrf.mxu0
        %v1141 = vadd.f32 0.0, %v1140
        %1142 = vmatmul.bf16.gmra.mxu0 %v998
        %v1143 = vpop.f32.mrf.mxu0
        %v1144 = vadd.f32 0.0, %v1143
        %v1145 = vpop.f32.mrf.mxu0
        %v1146 = vadd.f32 0.0, %v1145
        %1147 = vmatmul.bf16.gmra.mxu0 %v1000
        %v1148 = vpop.f32.mrf.mxu0
        %v1149 = vadd.f32 0.0, %v1148
        %v1150 = vpop.f32.mrf.mxu0
        %v1151 = vadd.f32 0.0, %v1150
        %1152 = vmatmul.bf16.gmra.mxu0 %v1002
        %v1153 = vpop.f32.mrf.mxu0
        %v1154 = vadd.f32 0.0, %v1153
        %v1155 = vpop.f32.mrf.mxu0
        %v1156 = vadd.f32 0.0, %v1155
        %1157 = vdwg.mxu0
        %1158 = vmatpush.bf16.msra.mxu0 0
        %1159 = vmatpush.bf16.msra.mxu0 0
        %1160 = vmatpush.bf16.msra.mxu0 0
        %1161 = vmatpush.bf16.msra.mxu0 0
        %1162 = vmatpush.bf16.msra.mxu0 %v1071
        %1163 = vmatpush.bf16.msra.mxu0 %v1070
        %1164 = vmatpush.bf16.msra.mxu0 %v1069
        %1165 = vmatpush.bf16.msra.mxu0 %v1068
        %1166 = vmatmul.bf16.gmra.mxu0 %v1086
        %v1167 = vpop.f32.mrf.mxu0
        %v1168 = vadd.f32 %v1119, %v1167
        %v1169 = vpop.f32.mrf.mxu0
        %v1170 = vadd.f32 %v1121, %v1169
        %1171 = vmatmul.bf16.gmra.mxu0 %v1089
        %v1172 = vpop.f32.mrf.mxu0
        %v1173 = vadd.f32 %v1124, %v1172
        %v1174 = vpop.f32.mrf.mxu0
        %v1175 = vadd.f32 %v1126, %v1174
        %1176 = vmatmul.bf16.gmra.mxu0 %v1092
        %v1177 = vpop.f32.mrf.mxu0
        %v1178 = vadd.f32 %v1129, %v1177
        %v1179 = vpop.f32.mrf.mxu0
        %v1180 = vadd.f32 %v1131, %v1179
        %1181 = vmatmul.bf16.gmra.mxu0 %v1095
        %v1182 = vpop.f32.mrf.mxu0
        %v1183 = vadd.f32 %v1134, %v1182
        %v1184 = vpop.f32.mrf.mxu0
        %v1185 = vadd.f32 %v1136, %v1184
        %1186 = vmatmul.bf16.gmra.mxu0 %v1098
        %v1187 = vpop.f32.mrf.mxu0
        %v1188 = vadd.f32 %v1139, %v1187
        %v1189 = vpop.f32.mrf.mxu0
        %v1190 = vadd.f32 %v1141, %v1189
        %1191 = vmatmul.bf16.gmra.mxu0 %v1101
        %v1192 = vpop.f32.mrf.mxu0
        %v1193 = vadd.f32 %v1144, %v1192
        %v1194 = vpop.f32.mrf.mxu0
        %v1195 = vadd.f32 %v1146, %v1194
        %1196 = vmatmul.bf16.gmra.mxu0 %v1104
        %v1197 = vpop.f32.mrf.mxu0
        %v1198 = vadd.f32 %v1149, %v1197
        %v1199 = vpop.f32.mrf.mxu0
        %v1200 = vadd.f32 %v1151, %v1199
        %1201 = vmatmul.bf16.gmra.mxu0 %v1107
        %v1202 = vpop.f32.mrf.mxu0
        %v1203 = vadd.f32 %v1154, %v1202
        %v1204 = vpop.f32.mrf.mxu0
        %v1205 = vadd.f32 %v1156, %v1204
        %1206 = vdwg.mxu0
        %v1223 = vunpack.c.l.b16 %v858
        %v1224 = vunpack.c.h.b16 %v858
        %v1225 = vunpack.c.l.b16 %v859
        %v1226 = vunpack.c.h.b16 %v859
        %v1227 = vunpack.c.l.b16 %v860
        %v1228 = vunpack.c.h.b16 %v860
        %v1229 = vunpack.c.l.b16 %v861
        %v1230 = vunpack.c.h.b16 %v861
        %v1231 = vunpack.c.l.b16 %v862
        %v1232 = vunpack.c.h.b16 %v862
        %v1233 = vunpack.c.l.b16 %v863
        %v1234 = vunpack.c.h.b16 %v863
        %v1235 = vunpack.c.l.b16 %v864
        %v1236 = vunpack.c.h.b16 %v864
        %v1237 = vunpack.c.l.b16 %v865
        %v1238 = vunpack.c.h.b16 %v865
        %v1239 = vunpack.c.l.b16 %v866
        %v1240 = vunpack.c.h.b16 %v866
        %v1241 = vunpack.c.l.b16 %v867
        %v1242 = vunpack.c.h.b16 %v867
        %v1243 = vunpack.c.l.b16 %v868
        %v1244 = vunpack.c.h.b16 %v868
        %v1245 = vunpack.c.l.b16 %v869
        %v1246 = vunpack.c.h.b16 %v869
        %v1247 = vunpack.c.l.b16 %v870
        %v1248 = vunpack.c.h.b16 %v870
        %v1249 = vunpack.c.l.b16 %v871
        %v1250 = vunpack.c.h.b16 %v871
        %v1251 = vunpack.c.l.b16 %v872
        %v1252 = vunpack.c.h.b16 %v872
        %v1253 = vunpack.c.l.b16 %v873
        %v1254 = vunpack.c.h.b16 %v873
        %v1255 = vpack.c.b16 %v1225, %v1223
        %v1256 = vpack.c.b16 %v1226, %v1224
        %v1257 = vpack.c.b16 %v1229, %v1227
        %v1258 = vpack.c.b16 %v1230, %v1228
        %v1259 = vpack.c.b16 %v1233, %v1231
        %v1260 = vpack.c.b16 %v1234, %v1232
        %v1261 = vpack.c.b16 %v1237, %v1235
        %v1262 = vpack.c.b16 %v1238, %v1236
        %v1263 = vpack.c.b16 %v1241, %v1239
        %v1264 = vpack.c.b16 %v1242, %v1240
        %v1265 = vpack.c.b16 %v1245, %v1243
        %v1266 = vpack.c.b16 %v1246, %v1244
        %v1267 = vpack.c.b16 %v1249, %v1247
        %v1268 = vpack.c.b16 %v1250, %v1248
        %v1269 = vpack.c.b16 %v1253, %v1251
        %v1270 = vpack.c.b16 %v1254, %v1252
        %v1303 = vunpack.c.l.b16 %v874
        %v1304 = vunpack.c.l.b16 %v875
        %v1305 = vunpack.c.l.b16 %v876
        %v1306 = vunpack.c.l.b16 %v877
        %v1307 = vunpack.c.l.b16 %v878
        %v1308 = vunpack.c.l.b16 %v879
        %v1309 = vunpack.c.l.b16 %v880
        %v1310 = vunpack.c.l.b16 %v881
        %v1311 = vunpack.c.l.b16 %v882
        %v1312 = vunpack.c.l.b16 %v883
        %v1313 = vunpack.c.l.b16 %v884
        %v1314 = vunpack.c.l.b16 %v885
        %v1315 = vunpack.c.l.b16 %v886
        %v1316 = vunpack.c.l.b16 %v887
        %v1317 = vunpack.c.l.b16 %v888
        %v1318 = vunpack.c.l.b16 %v889
        %v1319 = vunpack.c.l.b16 %v890
        %v1320 = vunpack.c.l.b16 %v891
        %v1321 = vunpack.c.l.b16 %v892
        %v1322 = vunpack.c.l.b16 %v893
        %v1323 = vunpack.c.l.b16 %v894
        %v1324 = vunpack.c.l.b16 %v895
        %v1325 = vunpack.c.l.b16 %v896
        %v1326 = vunpack.c.l.b16 %v897
        %v1327 = vpack.c.b16 %v1304, %v1303
        %v1328 = vpack.c.b16 %v1306, %v1305
        %v1329 = vpack.c.b16 %v1308, %v1307
        %v1330 = vpack.c.b16 %v1310, %v1309
        %v1331 = vpack.c.b16 %v1312, %v1311
        %v1332 = vpack.c.b16 %v1314, %v1313
        %v1333 = vpack.c.b16 %v1316, %v1315
        %v1334 = vpack.c.b16 %v1318, %v1317
        %v1335 = vpack.c.b16 %v1320, %v1319
        %v1336 = vpack.c.b16 %v1322, %v1321
        %v1337 = vpack.c.b16 %v1324, %v1323
        %v1338 = vpack.c.b16 %v1326, %v1325
        %v1352 = vsel %vm1084, %v1256, 0
        %v1355 = vsel %vm1084, %v1258, 0
        %v1358 = vsel %vm1084, %v1260, 0
        %v1361 = vsel %vm1084, %v1262, 0
        %v1364 = vsel %vm1084, %v1264, 0
        %v1367 = vsel %vm1084, %v1266, 0
        %v1370 = vsel %vm1084, %v1268, 0
        %v1373 = vsel %vm1084, %v1270, 0
        %1375 = vmatpush.bf16.msra.mxu0 %v1334
        %1376 = vmatpush.bf16.msra.mxu0 %v1333
        %1377 = vmatpush.bf16.msra.mxu0 %v1332
        %1378 = vmatpush.bf16.msra.mxu0 %v1331
        %1379 = vmatpush.bf16.msra.mxu0 %v1330
        %1380 = vmatpush.bf16.msra.mxu0 %v1329
        %1381 = vmatpush.bf16.msra.mxu0 %v1328
        %1382 = vmatpush.bf16.msra.mxu0 %v1327
        %1383 = vmatmul.bf16.gmra.mxu0 %v1255
        %v1384 = vpop.f32.mrf.mxu0
        %v1385 = vadd.f32 %v1168, %v1384
        %v1386 = vpop.f32.mrf.mxu0
        %v1387 = vadd.f32 %v1170, %v1386
        %1388 = vmatmul.bf16.gmra.mxu0 %v1257
        %v1389 = vpop.f32.mrf.mxu0
        %v1390 = vadd.f32 %v1173, %v1389
        %v1391 = vpop.f32.mrf.mxu0
        %v1392 = vadd.f32 %v1175, %v1391
        %1393 = vmatmul.bf16.gmra.mxu0 %v1259
        %v1394 = vpop.f32.mrf.mxu0
        %v1395 = vadd.f32 %v1178, %v1394
        %v1396 = vpop.f32.mrf.mxu0
        %v1397 = vadd.f32 %v1180, %v1396
        %1398 = vmatmul.bf16.gmra.mxu0 %v1261
        %v1399 = vpop.f32.mrf.mxu0
        %v1400 = vadd.f32 %v1183, %v1399
        %v1401 = vpop.f32.mrf.mxu0
        %v1402 = vadd.f32 %v1185, %v1401
        %1403 = vmatmul.bf16.gmra.mxu0 %v1263
        %v1404 = vpop.f32.mrf.mxu0
        %v1405 = vadd.f32 %v1188, %v1404
        %v1406 = vpop.f32.mrf.mxu0
        %v1407 = vadd.f32 %v1190, %v1406
        %1408 = vmatmul.bf16.gmra.mxu0 %v1265
        %v1409 = vpop.f32.mrf.mxu0
        %v1410 = vadd.f32 %v1193, %v1409
        %v1411 = vpop.f32.mrf.mxu0
        %v1412 = vadd.f32 %v1195, %v1411
        %1413 = vmatmul.bf16.gmra.mxu0 %v1267
        %v1414 = vpop.f32.mrf.mxu0
        %v1415 = vadd.f32 %v1198, %v1414
        %v1416 = vpop.f32.mrf.mxu0
        %v1417 = vadd.f32 %v1200, %v1416
        %1418 = vmatmul.bf16.gmra.mxu0 %v1269
        %v1419 = vpop.f32.mrf.mxu0
        %v1420 = vadd.f32 %v1203, %v1419
        %v1421 = vpop.f32.mrf.mxu0
        %v1422 = vadd.f32 %v1205, %v1421
        %1423 = vdwg.mxu0
        %1424 = vmatpush.bf16.msra.mxu0 0
        %1425 = vmatpush.bf16.msra.mxu0 0
        %1426 = vmatpush.bf16.msra.mxu0 0
        %1427 = vmatpush.bf16.msra.mxu0 0
        %1428 = vmatpush.bf16.msra.mxu0 %v1338
        %1429 = vmatpush.bf16.msra.mxu0 %v1337
        %1430 = vmatpush.bf16.msra.mxu0 %v1336
        %1431 = vmatpush.bf16.msra.mxu0 %v1335
        %1432 = vmatmul.bf16.gmra.mxu0 %v1352
        %v1433 = vpop.f32.mrf.mxu0
        %v1434 = vadd.f32 %v1385, %v1433
        %v1435 = vpop.f32.mrf.mxu0
        %v1436 = vadd.f32 %v1387, %v1435
        %1437 = vmatmul.bf16.gmra.mxu0 %v1355
        %v1438 = vpop.f32.mrf.mxu0
        %v1439 = vadd.f32 %v1390, %v1438
        %v1440 = vpop.f32.mrf.mxu0
        %v1441 = vadd.f32 %v1392, %v1440
        %1442 = vmatmul.bf16.gmra.mxu0 %v1358
        %v1443 = vpop.f32.mrf.mxu0
        %v1444 = vadd.f32 %v1395, %v1443
        %v1445 = vpop.f32.mrf.mxu0
        %v1446 = vadd.f32 %v1397, %v1445
        %1447 = vmatmul.bf16.gmra.mxu0 %v1361
        %v1448 = vpop.f32.mrf.mxu0
        %v1449 = vadd.f32 %v1400, %v1448
        %v1450 = vpop.f32.mrf.mxu0
        %v1451 = vadd.f32 %v1402, %v1450
        %1452 = vmatmul.bf16.gmra.mxu0 %v1364
        %v1453 = vpop.f32.mrf.mxu0
        %v1454 = vadd.f32 %v1405, %v1453
        %v1455 = vpop.f32.mrf.mxu0
        %v1456 = vadd.f32 %v1407, %v1455
        %1457 = vmatmul.bf16.gmra.mxu0 %v1367
        %v1458 = vpop.f32.mrf.mxu0
        %v1459 = vadd.f32 %v1410, %v1458
        %v1460 = vpop.f32.mrf.mxu0
        %v1461 = vadd.f32 %v1412, %v1460
        %1462 = vmatmul.bf16.gmra.mxu0 %v1370
        %v1463 = vpop.f32.mrf.mxu0
        %v1464 = vadd.f32 %v1415, %v1463
        %v1465 = vpop.f32.mrf.mxu0
        %v1466 = vadd.f32 %v1417, %v1465
        %1467 = vmatmul.bf16.gmra.mxu0 %v1373
        %v1468 = vpop.f32.mrf.mxu0
        %v1469 = vadd.f32 %v1420, %v1468
        %v1470 = vpop.f32.mrf.mxu0
        %v1471 = vadd.f32 %v1422, %v1470
        %1472 = vdwg.mxu0
        %v1473 = vld [vmem:[%s821] sm:$0xff]
        %v1474 = vld [vmem:[%s821 + $0x8] sm:$0xff]
        %v1475 = vld [vmem:[%s821 + $0x10] sm:$0xff]
        %v1476 = vld [vmem:[%s821 + $0x18] sm:$0xff]
        %v1477 = vld [vmem:[%s821 + $0x20] sm:$0x11]
        %v1478 = vld [vmem:[%s821 + $0x28] sm:$0xff]
        %v1479 = vld [vmem:[%s821 + $0x30] sm:$0xff]
        %v1480 = vld [vmem:[%s821 + $0x38] sm:$0xff]
        %v1481 = vld [vmem:[%s821 + $0x40] sm:$0xff]
        %v1482 = vld [vmem:[%s821 + $0x48] sm:$0x11]
        %v1483 = vld [vmem:[%s821 + $0x50] sm:$0xff]
        %v1484 = vld [vmem:[%s821 + $0x58] sm:$0xff]
        %v1485 = vld [vmem:[%s821 + $0x60] sm:$0xff]
        %v1486 = vld [vmem:[%s821 + $0x68] sm:$0xff]
        %v1487 = vld [vmem:[%s821 + $0x70] sm:$0x11]
        %v1488 = vld [vmem:[%s821 + $0x78] sm:$0xff]
        %v1489 = vld [vmem:[%s821 + $0x80] sm:$0xff]
        %v1490 = vld [vmem:[%s821 + $0x88] sm:$0xff]
        %v1491 = vld [vmem:[%s821 + $0x90] sm:$0xff]
        %v1492 = vld [vmem:[%s821 + $0x98] sm:$0x11]
        %vm1493 = vsmask.f32 3328
        %vm1494 = vsmask.f32 7440
        %vm1495 = vmor %vm1493, %vm1494
        %v1497 = vshrl.u32 %v1473, 16
        %v1499 = vrot.slane %v1497, 4
        %v1500 = vshll.u32 %v1473, 16
        %v1502 = vrot.slane %v1500, 5
        %v1503 = vor.u32 %v1499, %v1502
        %v1504 = vrot.slane %v1503, 4
        %v1506 = vshll.u32 %v1474, 16
        %v1508 = vrot.slane %v1506, 5
        %v1509 = vsel %vm1495, %v1504, %v1508
        %v1510 = vshrl.u32 %v1474, 16
        %v1512 = vrot.slane %v1510, 4
        %v1513 = vor.u32 %v1512, %v1508
        %v1514 = vrot.slane %v1513, 4
        %v1516 = vshll.u32 %v1475, 16
        %v1518 = vrot.slane %v1516, 5
        %v1519 = vsel %vm1495, %v1514, %v1518
        %v1520 = vshrl.u32 %v1475, 16
        %v1522 = vrot.slane %v1520, 4
        %v1523 = vor.u32 %v1522, %v1518
        %v1524 = vrot.slane %v1523, 4
        %v1526 = vshll.u32 %v1476, 16
        %v1528 = vrot.slane %v1526, 5
        %v1529 = vsel %vm1495, %v1524, %v1528
        %v1530 = vshrl.u32 %v1476, 16
        %v1532 = vrot.slane %v1530, 4
        %v1533 = vor.u32 %v1532, %v1528
        %v1534 = vrot.slane %v1533, 4
        %v1536 = vshll.u32 %v1477, 16
        %v1538 = vrot.slane %v1536, 5
        %v1539 = vsel %vm1495, %v1534, %v1538
        %v1541 = vshrl.u32 %v1478, 16
        %v1543 = vrot.slane %v1541, 4
        %v1544 = vshll.u32 %v1478, 16
        %v1546 = vrot.slane %v1544, 5
        %v1547 = vor.u32 %v1543, %v1546
        %v1548 = vrot.slane %v1547, 4
        %v1550 = vshll.u32 %v1479, 16
        %v1552 = vrot.slane %v1550, 5
        %v1553 = vsel %vm1495, %v1548, %v1552
        %v1554 = vshrl.u32 %v1479, 16
        %v1556 = vrot.slane %v1554, 4
        %v1557 = vor.u32 %v1556, %v1552
        %v1558 = vrot.slane %v1557, 4
        %v1560 = vshll.u32 %v1480, 16
        %v1562 = vrot.slane %v1560, 5
        %v1563 = vsel %vm1495, %v1558, %v1562
        %v1564 = vshrl.u32 %v1480, 16
        %v1566 = vrot.slane %v1564, 4
        %v1567 = vor.u32 %v1566, %v1562
        %v1568 = vrot.slane %v1567, 4
        %v1570 = vshll.u32 %v1481, 16
        %v1572 = vrot.slane %v1570, 5
        %v1573 = vsel %vm1495, %v1568, %v1572
        %v1574 = vshrl.u32 %v1481, 16
        %v1576 = vrot.slane %v1574, 4
        %v1577 = vor.u32 %v1576, %v1572
        %v1578 = vrot.slane %v1577, 4
        %v1580 = vshll.u32 %v1482, 16
        %v1582 = vrot.slane %v1580, 5
        %v1583 = vsel %vm1495, %v1578, %v1582
        %v1585 = vshrl.u32 %v1483, 16
        %v1587 = vrot.slane %v1585, 4
        %v1588 = vshll.u32 %v1483, 16
        %v1590 = vrot.slane %v1588, 5
        %v1591 = vor.u32 %v1587, %v1590
        %v1592 = vrot.slane %v1591, 4
        %v1594 = vshll.u32 %v1484, 16
        %v1596 = vrot.slane %v1594, 5
        %v1597 = vsel %vm1495, %v1592, %v1596
        %v1598 = vshrl.u32 %v1484, 16
        %v1600 = vrot.slane %v1598, 4
        %v1601 = vor.u32 %v1600, %v1596
        %v1602 = vrot.slane %v1601, 4
        %v1604 = vshll.u32 %v1485, 16
        %v1606 = vrot.slane %v1604, 5
        %v1607 = vsel %vm1495, %v1602, %v1606
        %v1608 = vshrl.u32 %v1485, 16
        %v1610 = vrot.slane %v1608, 4
        %v1611 = vor.u32 %v1610, %v1606
        %v1612 = vrot.slane %v1611, 4
        %v1614 = vshll.u32 %v1486, 16
        %v1616 = vrot.slane %v1614, 5
        %v1617 = vsel %vm1495, %v1612, %v1616
        %v1618 = vshrl.u32 %v1486, 16
        %v1620 = vrot.slane %v1618, 4
        %v1621 = vor.u32 %v1620, %v1616
        %v1622 = vrot.slane %v1621, 4
        %v1624 = vshll.u32 %v1487, 16
        %v1626 = vrot.slane %v1624, 5
        %v1627 = vsel %vm1495, %v1622, %v1626
        %v1629 = vshrl.u32 %v1488, 16
        %v1631 = vrot.slane %v1629, 4
        %v1632 = vshll.u32 %v1488, 16
        %v1634 = vrot.slane %v1632, 5
        %v1635 = vor.u32 %v1631, %v1634
        %v1636 = vrot.slane %v1635, 4
        %v1638 = vshll.u32 %v1489, 16
        %v1640 = vrot.slane %v1638, 5
        %v1641 = vsel %vm1495, %v1636, %v1640
        %v1642 = vshrl.u32 %v1489, 16
        %v1644 = vrot.slane %v1642, 4
        %v1645 = vor.u32 %v1644, %v1640
        %v1646 = vrot.slane %v1645, 4
        %v1648 = vshll.u32 %v1490, 16
        %v1650 = vrot.slane %v1648, 5
        %v1651 = vsel %vm1495, %v1646, %v1650
        %v1652 = vshrl.u32 %v1490, 16
        %v1654 = vrot.slane %v1652, 4
        %v1655 = vor.u32 %v1654, %v1650
        %v1656 = vrot.slane %v1655, 4
        %v1658 = vshll.u32 %v1491, 16
        %v1660 = vrot.slane %v1658, 5
        %v1661 = vsel %vm1495, %v1656, %v1660
        %v1662 = vshrl.u32 %v1491, 16
        %v1664 = vrot.slane %v1662, 4
        %v1665 = vor.u32 %v1664, %v1660
        %v1666 = vrot.slane %v1665, 4
        %v1668 = vshll.u32 %v1492, 16
        %v1670 = vrot.slane %v1668, 5
        %v1671 = vsel %vm1495, %v1666, %v1670
        %s1672 = scalar_lea.vmem %s1, 192
        %v1673 = vld [vmem:[%s1672] sm:$0xf]
        %v1674 = vld [vmem:[%s1672 + $0x4] sm:$0xf]
        %v1675 = vld [vmem:[%s1672 + $0x8] sm:$0xf]
        %v1676 = vld [vmem:[%s1672 + $0xc] sm:$0xf]
        %v1677 = vld [vmem:[%s1672 + $0x10] sm:$0xf]
        %v1678 = vld [vmem:[%s1672 + $0x14] sm:$0xf]
        %v1679 = vld [vmem:[%s1672 + $0x18] sm:$0xf]
        %v1680 = vld [vmem:[%s1672 + $0x1c] sm:$0xf]
        %v1681 = vld [vmem:[%s1672 + $0x20] sm:$0xf]
        %v1682 = vld [vmem:[%s1672 + $0x24] sm:$0xf]
        %v1683 = vld [vmem:[%s1672 + $0x28] sm:$0xf]
        %v1684 = vld [vmem:[%s1672 + $0x2c] sm:$0xf]
        %v1685 = vld [vmem:[%s1672 + $0x30] sm:$0xf]
        %v1686 = vld [vmem:[%s1672 + $0x34] sm:$0xf]
        %v1687 = vld [vmem:[%s1672 + $0x38] sm:$0xf]
        %v1688 = vld [vmem:[%s1672 + $0x3c] sm:$0xf]
        %v1689 = vld [vmem:[%s1672 + $0x40] sm:$0xf]
        %v1690 = vld [vmem:[%s1672 + $0x44] sm:$0xf]
        %v1691 = vld [vmem:[%s1672 + $0x48] sm:$0xf]
        %v1692 = vld [vmem:[%s1672 + $0x4c] sm:$0xf]
        %v1693 = vld [vmem:[%s1672 + $0x50] sm:$0xf]
        %v1694 = vld [vmem:[%s1672 + $0x54] sm:$0xf]
        %v1695 = vld [vmem:[%s1672 + $0x58] sm:$0xf]
        %v1696 = vld [vmem:[%s1672 + $0x5c] sm:$0xf]
        %v1697 = vunpack.c.l.b16 %v1509
        %v1698 = vunpack.c.h.b16 %v1509
        %v1699 = vunpack.c.l.b16 %v1519
        %v1700 = vunpack.c.h.b16 %v1519
        %v1701 = vunpack.c.l.b16 %v1529
        %v1702 = vunpack.c.h.b16 %v1529
        %v1703 = vunpack.c.l.b16 %v1539
        %v1704 = vunpack.c.h.b16 %v1539
        %v1705 = vunpack.c.l.b16 %v1553
        %v1706 = vunpack.c.h.b16 %v1553
        %v1707 = vunpack.c.l.b16 %v1563
        %v1708 = vunpack.c.h.b16 %v1563
        %v1709 = vunpack.c.l.b16 %v1573
        %v1710 = vunpack.c.h.b16 %v1573
        %v1711 = vunpack.c.l.b16 %v1583
        %v1712 = vunpack.c.h.b16 %v1583
        %v1713 = vunpack.c.l.b16 %v1597
        %v1714 = vunpack.c.h.b16 %v1597
        %v1715 = vunpack.c.l.b16 %v1607
        %v1716 = vunpack.c.h.b16 %v1607
        %v1717 = vunpack.c.l.b16 %v1617
        %v1718 = vunpack.c.h.b16 %v1617
        %v1719 = vunpack.c.l.b16 %v1627
        %v1720 = vunpack.c.h.b16 %v1627
        %v1721 = vunpack.c.l.b16 %v1641
        %v1722 = vunpack.c.h.b16 %v1641
        %v1723 = vunpack.c.l.b16 %v1651
        %v1724 = vunpack.c.h.b16 %v1651
        %v1725 = vunpack.c.l.b16 %v1661
        %v1726 = vunpack.c.h.b16 %v1661
        %v1727 = vunpack.c.l.b16 %v1671
        %v1728 = vunpack.c.h.b16 %v1671
        %v1729 = vpack.c.b16 %v1699, %v1697
        %v1730 = vpack.c.b16 %v1700, %v1698
        %v1731 = vpack.c.b16 %v1703, %v1701
        %v1732 = vpack.c.b16 %v1704, %v1702
        %v1733 = vpack.c.b16 %v1707, %v1705
        %v1734 = vpack.c.b16 %v1708, %v1706
        %v1735 = vpack.c.b16 %v1711, %v1709
        %v1736 = vpack.c.b16 %v1712, %v1710
        %v1737 = vpack.c.b16 %v1715, %v1713
        %v1738 = vpack.c.b16 %v1716, %v1714
        %v1739 = vpack.c.b16 %v1719, %v1717
        %v1740 = vpack.c.b16 %v1720, %v1718
        %v1741 = vpack.c.b16 %v1723, %v1721
        %v1742 = vpack.c.b16 %v1724, %v1722
        %v1743 = vpack.c.b16 %v1727, %v1725
        %v1744 = vpack.c.b16 %v1728, %v1726
        %v1777 = vunpack.c.l.b16 %v1673
        %v1778 = vunpack.c.l.b16 %v1674
        %v1779 = vunpack.c.l.b16 %v1675
        %v1780 = vunpack.c.l.b16 %v1676
        %v1781 = vunpack.c.l.b16 %v1677
        %v1782 = vunpack.c.l.b16 %v1678
        %v1783 = vunpack.c.l.b16 %v1679
        %v1784 = vunpack.c.l.b16 %v1680
        %v1785 = vunpack.c.l.b16 %v1681
        %v1786 = vunpack.c.l.b16 %v1682
        %v1787 = vunpack.c.l.b16 %v1683
        %v1788 = vunpack.c.l.b16 %v1684
        %v1789 = vunpack.c.l.b16 %v1685
        %v1790 = vunpack.c.l.b16 %v1686
        %v1791 = vunpack.c.l.b16 %v1687
        %v1792 = vunpack.c.l.b16 %v1688
        %v1793 = vunpack.c.l.b16 %v1689
        %v1794 = vunpack.c.l.b16 %v1690
        %v1795 = vunpack.c.l.b16 %v1691
        %v1796 = vunpack.c.l.b16 %v1692
        %v1797 = vunpack.c.l.b16 %v1693
        %v1798 = vunpack.c.l.b16 %v1694
        %v1799 = vunpack.c.l.b16 %v1695
        %v1800 = vunpack.c.l.b16 %v1696
        %v1801 = vpack.c.b16 %v1778, %v1777
        %v1802 = vpack.c.b16 %v1780, %v1779
        %v1803 = vpack.c.b16 %v1782, %v1781
        %v1804 = vpack.c.b16 %v1784, %v1783
        %v1805 = vpack.c.b16 %v1786, %v1785
        %v1806 = vpack.c.b16 %v1788, %v1787
        %v1807 = vpack.c.b16 %v1790, %v1789
        %v1808 = vpack.c.b16 %v1792, %v1791
        %v1809 = vpack.c.b16 %v1794, %v1793
        %v1810 = vpack.c.b16 %v1796, %v1795
        %v1811 = vpack.c.b16 %v1798, %v1797
        %v1812 = vpack.c.b16 %v1800, %v1799
        %v1826 = vsel %vm1084, %v1730, 0
        %v1829 = vsel %vm1084, %v1732, 0
        %v1832 = vsel %vm1084, %v1734, 0
        %v1835 = vsel %vm1084, %v1736, 0
        %v1838 = vsel %vm1084, %v1738, 0
        %v1841 = vsel %vm1084, %v1740, 0
        %v1844 = vsel %vm1084, %v1742, 0
        %v1847 = vsel %vm1084, %v1744, 0
        %1849 = vmatpush.bf16.msra.mxu0 %v1808
        %1850 = vmatpush.bf16.msra.mxu0 %v1807
        %1851 = vmatpush.bf16.msra.mxu0 %v1806
        %1852 = vmatpush.bf16.msra.mxu0 %v1805
        %1853 = vmatpush.bf16.msra.mxu0 %v1804
        %1854 = vmatpush.bf16.msra.mxu0 %v1803
        %1855 = vmatpush.bf16.msra.mxu0 %v1802
        %1856 = vmatpush.bf16.msra.mxu0 %v1801
        %1857 = vmatmul.bf16.gmra.mxu0 %v1729
        %v1858 = vpop.f32.mrf.mxu0
        %v1859 = vadd.f32 0.0, %v1858
        %v1860 = vpop.f32.mrf.mxu0
        %v1861 = vadd.f32 0.0, %v1860
        %1862 = vmatmul.bf16.gmra.mxu0 %v1731
        %v1863 = vpop.f32.mrf.mxu0
        %v1864 = vadd.f32 0.0, %v1863
        %v1865 = vpop.f32.mrf.mxu0
        %v1866 = vadd.f32 0.0, %v1865
        %1867 = vmatmul.bf16.gmra.mxu0 %v1733
        %v1868 = vpop.f32.mrf.mxu0
        %v1869 = vadd.f32 0.0, %v1868
        %v1870 = vpop.f32.mrf.mxu0
        %v1871 = vadd.f32 0.0, %v1870
        %1872 = vmatmul.bf16.gmra.mxu0 %v1735
        %v1873 = vpop.f32.mrf.mxu0
        %v1874 = vadd.f32 0.0, %v1873
        %v1875 = vpop.f32.mrf.mxu0
        %v1876 = vadd.f32 0.0, %v1875
        %1877 = vmatmul.bf16.gmra.mxu0 %v1737
        %v1878 = vpop.f32.mrf.mxu0
        %v1879 = vadd.f32 0.0, %v1878
        %v1880 = vpop.f32.mrf.mxu0
        %v1881 = vadd.f32 0.0, %v1880
        %1882 = vmatmul.bf16.gmra.mxu0 %v1739
        %v1883 = vpop.f32.mrf.mxu0
        %v1884 = vadd.f32 0.0, %v1883
        %v1885 = vpop.f32.mrf.mxu0
        %v1886 = vadd.f32 0.0, %v1885
        %1887 = vmatmul.bf16.gmra.mxu0 %v1741
        %v1888 = vpop.f32.mrf.mxu0
        %v1889 = vadd.f32 0.0, %v1888
        %v1890 = vpop.f32.mrf.mxu0
        %v1891 = vadd.f32 0.0, %v1890
        %1892 = vmatmul.bf16.gmra.mxu0 %v1743
        %v1893 = vpop.f32.mrf.mxu0
        %v1894 = vadd.f32 0.0, %v1893
        %v1895 = vpop.f32.mrf.mxu0
        %v1896 = vadd.f32 0.0, %v1895
        %1897 = vdwg.mxu0
        %1898 = vmatpush.bf16.msra.mxu0 0
        %1899 = vmatpush.bf16.msra.mxu0 0
        %1900 = vmatpush.bf16.msra.mxu0 0
        %1901 = vmatpush.bf16.msra.mxu0 0
        %1902 = vmatpush.bf16.msra.mxu0 %v1812
        %1903 = vmatpush.bf16.msra.mxu0 %v1811
        %1904 = vmatpush.bf16.msra.mxu0 %v1810
        %1905 = vmatpush.bf16.msra.mxu0 %v1809
        %1906 = vmatmul.bf16.gmra.mxu0 %v1826
        %v1907 = vpop.f32.mrf.mxu0
        %v1908 = vadd.f32 %v1859, %v1907
        %v1909 = vpop.f32.mrf.mxu0
        %v1910 = vadd.f32 %v1861, %v1909
        %1911 = vmatmul.bf16.gmra.mxu0 %v1829
        %v1912 = vpop.f32.mrf.mxu0
        %v1913 = vadd.f32 %v1864, %v1912
        %v1914 = vpop.f32.mrf.mxu0
        %v1915 = vadd.f32 %v1866, %v1914
        %1916 = vmatmul.bf16.gmra.mxu0 %v1832
        %v1917 = vpop.f32.mrf.mxu0
        %v1918 = vadd.f32 %v1869, %v1917
        %v1919 = vpop.f32.mrf.mxu0
        %v1920 = vadd.f32 %v1871, %v1919
        %1921 = vmatmul.bf16.gmra.mxu0 %v1835
        %v1922 = vpop.f32.mrf.mxu0
        %v1923 = vadd.f32 %v1874, %v1922
        %v1924 = vpop.f32.mrf.mxu0
        %v1925 = vadd.f32 %v1876, %v1924
        %1926 = vmatmul.bf16.gmra.mxu0 %v1838
        %v1927 = vpop.f32.mrf.mxu0
        %v1928 = vadd.f32 %v1879, %v1927
        %v1929 = vpop.f32.mrf.mxu0
        %v1930 = vadd.f32 %v1881, %v1929
        %1931 = vmatmul.bf16.gmra.mxu0 %v1841
        %v1932 = vpop.f32.mrf.mxu0
        %v1933 = vadd.f32 %v1884, %v1932
        %v1934 = vpop.f32.mrf.mxu0
        %v1935 = vadd.f32 %v1886, %v1934
        %1936 = vmatmul.bf16.gmra.mxu0 %v1844
        %v1937 = vpop.f32.mrf.mxu0
        %v1938 = vadd.f32 %v1889, %v1937
        %v1939 = vpop.f32.mrf.mxu0
        %v1940 = vadd.f32 %v1891, %v1939
        %1941 = vmatmul.bf16.gmra.mxu0 %v1847
        %v1942 = vpop.f32.mrf.mxu0
        %v1943 = vadd.f32 %v1894, %v1942
        %v1944 = vpop.f32.mrf.mxu0
        %v1945 = vadd.f32 %v1896, %v1944
        %1946 = vdwg.mxu0
        %v1947 = vadd.f32 %v1434, %v1908
        %v1948 = vadd.f32 %v1436, %v1910
        %v1949 = vadd.f32 %v1439, %v1913
        %v1950 = vadd.f32 %v1441, %v1915
        %v1951 = vadd.f32 %v1444, %v1918
        %v1952 = vadd.f32 %v1446, %v1920
        %v1953 = vadd.f32 %v1449, %v1923
        %v1954 = vadd.f32 %v1451, %v1925
        %v1955 = vadd.f32 %v1454, %v1928
        %v1956 = vadd.f32 %v1456, %v1930
        %v1957 = vadd.f32 %v1459, %v1933
        %v1958 = vadd.f32 %v1461, %v1935
        %v1959 = vadd.f32 %v1464, %v1938
        %v1960 = vadd.f32 %v1466, %v1940
        %v1961 = vadd.f32 %v1469, %v1943
        %v1962 = vadd.f32 %v1471, %v1945
        %v1963 = vpack.c.bf16 %v1947, %v1947
        %v1964 = vpack.c.bf16 %v1948, %v1948
        %v1965 = vpack.c.bf16 %v1949, %v1949
        %v1966 = vpack.c.bf16 %v1950, %v1950
        %v1967 = vpack.c.bf16 %v1951, %v1951
        %v1968 = vpack.c.bf16 %v1952, %v1952
        %v1969 = vpack.c.bf16 %v1953, %v1953
        %v1970 = vpack.c.bf16 %v1954, %v1954
        %v1971 = vpack.c.bf16 %v1955, %v1955
        %v1972 = vpack.c.bf16 %v1956, %v1956
        %v1973 = vpack.c.bf16 %v1957, %v1957
        %v1974 = vpack.c.bf16 %v1958, %v1958
        %v1975 = vpack.c.bf16 %v1959, %v1959
        %v1976 = vpack.c.bf16 %v1960, %v1960
        %v1977 = vpack.c.bf16 %v1961, %v1961
        %v1978 = vpack.c.bf16 %v1962, %v1962
        %1979 = vst [vmem:[%s851] sm:$0xf] %v1963
        %1980 = vst [vmem:[%s851 + $0x4] sm:$0xf] %v1964
        %1981 = vst [vmem:[%s851 + $0x8] sm:$0xf] %v1965
        %1982 = vst [vmem:[%s851 + $0xc] sm:$0xf] %v1966
        %1983 = vst [vmem:[%s851 + $0x10] sm:$0xf] %v1967
        %1984 = vst [vmem:[%s851 + $0x14] sm:$0xf] %v1968
        %1985 = vst [vmem:[%s851 + $0x18] sm:$0xf] %v1969
        %1986 = vst [vmem:[%s851 + $0x1c] sm:$0xf] %v1970
        %1987 = vst [vmem:[%s851 + $0x20] sm:$0xf] %v1971
        %1988 = vst [vmem:[%s851 + $0x24] sm:$0xf] %v1972
        %1989 = vst [vmem:[%s851 + $0x28] sm:$0xf] %v1973
        %1990 = vst [vmem:[%s851 + $0x2c] sm:$0xf] %v1974
        %1991 = vst [vmem:[%s851 + $0x30] sm:$0xf] %v1975
        %1992 = vst [vmem:[%s851 + $0x34] sm:$0xf] %v1976
        %1993 = vst [vmem:[%s851 + $0x38] sm:$0xf] %v1977
        %1994 = vst [vmem:[%s851 + $0x3c] sm:$0xf] %v1978
        %v1995 = vadd.f32 %v1947, %v1948
        %v1996 = vadd.f32 %v1995, %v1949
        %v1997 = vadd.f32 %v1996, %v1950
        %v1998 = vadd.f32 %v1997, %v1951
        %v1999 = vadd.f32 %v1998, %v1952
        %v2000 = vadd.f32 %v1999, %v1953
        %v2001 = vadd.f32 %v2000, %v1954
        %v2002 = vadd.f32 %v2001, %v1955
        %v2003 = vadd.f32 %v2002, %v1956
        %v2004 = vadd.f32 %v2003, %v1957
        %v2005 = vadd.f32 %v2004, %v1958
        %v2006 = vadd.f32 %v2005, %v1959
        %v2007 = vadd.f32 %v2006, %v1960
        %v2008 = vadd.f32 %v2007, %v1961
        %v2009 = vadd.f32 %v2008, %v1962
        %v2010 = vrot.slane %v2009, 4
        %v2011 = vadd.f32 %v2009, %v2010
        %v2012 = vrot.slane %v2011, 2
        %v2013 = vadd.f32 %v2011, %v2012
        %v2014 = vrot.slane %v2013, 1
        %v2015 = vadd.f32 %v2013, %v2014
        %v2016 = vadd.f32 %v2015, 0.0
        %v2017 = vmul.f32 %v1947, %v1947
        %v2018 = vmul.f32 %v1948, %v1948
        %v2019 = vmul.f32 %v1949, %v1949
        %v2020 = vmul.f32 %v1950, %v1950
        %v2021 = vmul.f32 %v1951, %v1951
        %v2022 = vmul.f32 %v1952, %v1952
        %v2023 = vmul.f32 %v1953, %v1953
        %v2024 = vmul.f32 %v1954, %v1954
        %v2025 = vmul.f32 %v1955, %v1955
        %v2026 = vmul.f32 %v1956, %v1956
        %v2027 = vmul.f32 %v1957, %v1957
        %v2028 = vmul.f32 %v1958, %v1958
        %v2029 = vmul.f32 %v1959, %v1959
        %v2030 = vmul.f32 %v1960, %v1960
        %v2031 = vmul.f32 %v1961, %v1961
        %v2032 = vmul.f32 %v1962, %v1962
        %v2033 = vadd.f32 %v2017, %v2018
        %v2034 = vadd.f32 %v2033, %v2019
        %v2035 = vadd.f32 %v2034, %v2020
        %v2036 = vadd.f32 %v2035, %v2021
        %v2037 = vadd.f32 %v2036, %v2022
        %v2038 = vadd.f32 %v2037, %v2023
        %v2039 = vadd.f32 %v2038, %v2024
        %v2040 = vadd.f32 %v2039, %v2025
        %v2041 = vadd.f32 %v2040, %v2026
        %v2042 = vadd.f32 %v2041, %v2027
        %v2043 = vadd.f32 %v2042, %v2028
        %v2044 = vadd.f32 %v2043, %v2029
        %v2045 = vadd.f32 %v2044, %v2030
        %v2046 = vadd.f32 %v2045, %v2031
        %v2047 = vadd.f32 %v2046, %v2032
        %v2048 = vrot.slane %v2047, 4
        %v2049 = vadd.f32 %v2047, %v2048
        %v2050 = vrot.slane %v2049, 2
        %v2051 = vadd.f32 %v2049, %v2050
        %v2052 = vrot.slane %v2051, 1
        %v2053 = vadd.f32 %v2051, %v2052
        %v2054 = vadd.f32 %v2053, 0.0
        %s2055 = scalar_lea.vmem %s821, 160 [#allocation2]
        %v2056 = vld [vmem:[%s2055] sm:$0xff]
        %v2057 = vld [vmem:[%s2055 + $0x8] sm:$0xff]
        %v2058 = vld [vmem:[%s2055 + $0x10] sm:$0xff]
        %v2059 = vld [vmem:[%s2055 + $0x18] sm:$0xff]
        %v2060 = vld [vmem:[%s2055 + $0x28] sm:$0xff]
        %v2061 = vld [vmem:[%s2055 + $0x30] sm:$0xff]
        %v2062 = vld [vmem:[%s2055 + $0x38] sm:$0xff]
        %v2063 = vld [vmem:[%s2055 + $0x40] sm:$0xff]
        %v2064 = vld [vmem:[%s2055 + $0x50] sm:$0xff]
        %v2065 = vld [vmem:[%s2055 + $0x58] sm:$0xff]
        %v2066 = vld [vmem:[%s2055 + $0x60] sm:$0xff]
        %v2067 = vld [vmem:[%s2055 + $0x68] sm:$0xff]
        %v2068 = vld [vmem:[%s2055 + $0x78] sm:$0xff]
        %v2069 = vld [vmem:[%s2055 + $0x80] sm:$0xff]
        %v2070 = vld [vmem:[%s2055 + $0x88] sm:$0xff]
        %v2071 = vld [vmem:[%s2055 + $0x90] sm:$0xff]
        %v2072 = vld [vmem:[%s1] sm:$0xf]
        %v2073 = vld [vmem:[%s1 + $0x4] sm:$0xf]
        %v2074 = vld [vmem:[%s1 + $0x8] sm:$0xf]
        %v2075 = vld [vmem:[%s1 + $0xc] sm:$0xf]
        %v2076 = vld [vmem:[%s1 + $0x10] sm:$0xf]
        %v2077 = vld [vmem:[%s1 + $0x14] sm:$0xf]
        %v2078 = vld [vmem:[%s1 + $0x18] sm:$0xf]
        %v2079 = vld [vmem:[%s1 + $0x1c] sm:$0xf]
        %v2080 = vld [vmem:[%s1 + $0x20] sm:$0xf]
        %v2081 = vld [vmem:[%s1 + $0x24] sm:$0xf]
        %v2082 = vld [vmem:[%s1 + $0x28] sm:$0xf]
        %v2083 = vld [vmem:[%s1 + $0x2c] sm:$0xf]
        %v2084 = vld [vmem:[%s1 + $0x30] sm:$0xf]
        %v2085 = vld [vmem:[%s1 + $0x34] sm:$0xf]
        %v2086 = vld [vmem:[%s1 + $0x38] sm:$0xf]
        %v2087 = vld [vmem:[%s1 + $0x3c] sm:$0xf]
        %v2088 = vld [vmem:[%s1 + $0x40] sm:$0xf]
        %v2089 = vld [vmem:[%s1 + $0x44] sm:$0xf]
        %v2090 = vld [vmem:[%s1 + $0x48] sm:$0xf]
        %v2091 = vld [vmem:[%s1 + $0x4c] sm:$0xf]
        %v2092 = vld [vmem:[%s1 + $0x50] sm:$0xf]
        %v2093 = vld [vmem:[%s1 + $0x54] sm:$0xf]
        %v2094 = vld [vmem:[%s1 + $0x58] sm:$0xf]
        %v2095 = vld [vmem:[%s1 + $0x5c] sm:$0xf]
        %s2096 = scalar_lea.vmem %s821, 800 [#allocation2]
        %v2097 = vld [vmem:[%s2096] sm:$0xff]
        %v2098 = vld [vmem:[%s2096 + $0x8] sm:$0xff]
        %v2099 = vld [vmem:[%s2096 + $0x10] sm:$0xff]
        %v2100 = vld [vmem:[%s2096 + $0x18] sm:$0xff]
        %v2101 = vld [vmem:[%s2096 + $0x28] sm:$0xff]
        %v2102 = vld [vmem:[%s2096 + $0x30] sm:$0xff]
        %v2103 = vld [vmem:[%s2096 + $0x38] sm:$0xff]
        %v2104 = vld [vmem:[%s2096 + $0x40] sm:$0xff]
        %v2105 = vld [vmem:[%s2096 + $0x50] sm:$0xff]
        %v2106 = vld [vmem:[%s2096 + $0x58] sm:$0xff]
        %v2107 = vld [vmem:[%s2096 + $0x60] sm:$0xff]
        %v2108 = vld [vmem:[%s2096 + $0x68] sm:$0xff]
        %v2109 = vld [vmem:[%s2096 + $0x78] sm:$0xff]
        %v2110 = vld [vmem:[%s2096 + $0x80] sm:$0xff]
        %v2111 = vld [vmem:[%s2096 + $0x88] sm:$0xff]
        %v2112 = vld [vmem:[%s2096 + $0x90] sm:$0xff]
        %v2113 = vld [vmem:[%s915] sm:$0xf]
        %v2114 = vld [vmem:[%s915 + $0x4] sm:$0xf]
        %v2115 = vld [vmem:[%s915 + $0x8] sm:$0xf]
        %v2116 = vld [vmem:[%s915 + $0xc] sm:$0xf]
        %v2117 = vld [vmem:[%s915 + $0x10] sm:$0xf]
        %v2118 = vld [vmem:[%s915 + $0x14] sm:$0xf]
        %v2119 = vld [vmem:[%s915 + $0x18] sm:$0xf]
        %v2120 = vld [vmem:[%s915 + $0x1c] sm:$0xf]
        %v2121 = vld [vmem:[%s915 + $0x20] sm:$0xf]
        %v2122 = vld [vmem:[%s915 + $0x24] sm:$0xf]
        %v2123 = vld [vmem:[%s915 + $0x28] sm:$0xf]
        %v2124 = vld [vmem:[%s915 + $0x2c] sm:$0xf]
        %v2125 = vld [vmem:[%s915 + $0x30] sm:$0xf]
        %v2126 = vld [vmem:[%s915 + $0x34] sm:$0xf]
        %v2127 = vld [vmem:[%s915 + $0x38] sm:$0xf]
        %v2128 = vld [vmem:[%s915 + $0x3c] sm:$0xf]
        %v2129 = vld [vmem:[%s915 + $0x40] sm:$0xf]
        %v2130 = vld [vmem:[%s915 + $0x44] sm:$0xf]
        %v2131 = vld [vmem:[%s915 + $0x48] sm:$0xf]
        %v2132 = vld [vmem:[%s915 + $0x4c] sm:$0xf]
        %v2133 = vld [vmem:[%s915 + $0x50] sm:$0xf]
        %v2134 = vld [vmem:[%s915 + $0x54] sm:$0xf]
        %v2135 = vld [vmem:[%s915 + $0x58] sm:$0xf]
        %v2136 = vld [vmem:[%s915 + $0x5c] sm:$0xf]
        %v2153 = vunpack.c.l.b16 %v2097
        %v2154 = vunpack.c.h.b16 %v2097
        %v2155 = vunpack.c.l.b16 %v2098
        %v2156 = vunpack.c.h.b16 %v2098
        %v2157 = vunpack.c.l.b16 %v2099
        %v2158 = vunpack.c.h.b16 %v2099
        %v2159 = vunpack.c.l.b16 %v2100
        %v2160 = vunpack.c.h.b16 %v2100
        %v2161 = vunpack.c.l.b16 %v2101
        %v2162 = vunpack.c.h.b16 %v2101
        %v2163 = vunpack.c.l.b16 %v2102
        %v2164 = vunpack.c.h.b16 %v2102
        %v2165 = vunpack.c.l.b16 %v2103
        %v2166 = vunpack.c.h.b16 %v2103
        %v2167 = vunpack.c.l.b16 %v2104
        %v2168 = vunpack.c.h.b16 %v2104
        %v2169 = vunpack.c.l.b16 %v2105
        %v2170 = vunpack.c.h.b16 %v2105
        %v2171 = vunpack.c.l.b16 %v2106
        %v2172 = vunpack.c.h.b16 %v2106
        %v2173 = vunpack.c.l.b16 %v2107
        %v2174 = vunpack.c.h.b16 %v2107
        %v2175 = vunpack.c.l.b16 %v2108
        %v2176 = vunpack.c.h.b16 %v2108
        %v2177 = vunpack.c.l.b16 %v2109
        %v2178 = vunpack.c.h.b16 %v2109
        %v2179 = vunpack.c.l.b16 %v2110
        %v2180 = vunpack.c.h.b16 %v2110
        %v2181 = vunpack.c.l.b16 %v2111
        %v2182 = vunpack.c.h.b16 %v2111
        %v2183 = vunpack.c.l.b16 %v2112
        %v2184 = vunpack.c.h.b16 %v2112
        %v2185 = vpack.c.b16 %v2155, %v2153
        %v2186 = vpack.c.b16 %v2156, %v2154
        %v2187 = vpack.c.b16 %v2159, %v2157
        %v2188 = vpack.c.b16 %v2160, %v2158
        %v2189 = vpack.c.b16 %v2163, %v2161
        %v2190 = vpack.c.b16 %v2164, %v2162
        %v2191 = vpack.c.b16 %v2167, %v2165
        %v2192 = vpack.c.b16 %v2168, %v2166
        %v2193 = vpack.c.b16 %v2171, %v2169
        %v2194 = vpack.c.b16 %v2172, %v2170
        %v2195 = vpack.c.b16 %v2175, %v2173
        %v2196 = vpack.c.b16 %v2176, %v2174
        %v2197 = vpack.c.b16 %v2179, %v2177
        %v2198 = vpack.c.b16 %v2180, %v2178
        %v2199 = vpack.c.b16 %v2183, %v2181
        %v2200 = vpack.c.b16 %v2184, %v2182
        %v2233 = vunpack.c.l.b16 %v2113
        %v2234 = vunpack.c.l.b16 %v2114
        %v2235 = vunpack.c.l.b16 %v2115
        %v2236 = vunpack.c.l.b16 %v2116
        %v2237 = vunpack.c.l.b16 %v2117
        %v2238 = vunpack.c.l.b16 %v2118
        %v2239 = vunpack.c.l.b16 %v2119
        %v2240 = vunpack.c.l.b16 %v2120
        %v2241 = vunpack.c.l.b16 %v2121
        %v2242 = vunpack.c.l.b16 %v2122
        %v2243 = vunpack.c.l.b16 %v2123
        %v2244 = vunpack.c.l.b16 %v2124
        %v2245 = vunpack.c.l.b16 %v2125
        %v2246 = vunpack.c.l.b16 %v2126
        %v2247 = vunpack.c.l.b16 %v2127
        %v2248 = vunpack.c.l.b16 %v2128
        %v2249 = vunpack.c.l.b16 %v2129
        %v2250 = vunpack.c.l.b16 %v2130
        %v2251 = vunpack.c.l.b16 %v2131
        %v2252 = vunpack.c.l.b16 %v2132
        %v2253 = vunpack.c.l.b16 %v2133
        %v2254 = vunpack.c.l.b16 %v2134
        %v2255 = vunpack.c.l.b16 %v2135
        %v2256 = vunpack.c.l.b16 %v2136
        %v2257 = vpack.c.b16 %v2234, %v2233
        %v2258 = vpack.c.b16 %v2236, %v2235
        %v2259 = vpack.c.b16 %v2238, %v2237
        %v2260 = vpack.c.b16 %v2240, %v2239
        %v2261 = vpack.c.b16 %v2242, %v2241
        %v2262 = vpack.c.b16 %v2244, %v2243
        %v2263 = vpack.c.b16 %v2246, %v2245
        %v2264 = vpack.c.b16 %v2248, %v2247
        %v2265 = vpack.c.b16 %v2250, %v2249
        %v2266 = vpack.c.b16 %v2252, %v2251
        %v2267 = vpack.c.b16 %v2254, %v2253
        %v2268 = vpack.c.b16 %v2256, %v2255
        %v2282 = vsel %vm1084, %v2186, 0
        %v2285 = vsel %vm1084, %v2188, 0
        %v2288 = vsel %vm1084, %v2190, 0
        %v2291 = vsel %vm1084, %v2192, 0
        %v2294 = vsel %vm1084, %v2194, 0
        %v2297 = vsel %vm1084, %v2196, 0
        %v2300 = vsel %vm1084, %v2198, 0
        %v2303 = vsel %vm1084, %v2200, 0
        %2305 = vmatpush.bf16.msra.mxu0 %v2264
        %2306 = vmatpush.bf16.msra.mxu0 %v2263
        %2307 = vmatpush.bf16.msra.mxu0 %v2262
        %2308 = vmatpush.bf16.msra.mxu0 %v2261
        %2309 = vmatpush.bf16.msra.mxu0 %v2260
        %2310 = vmatpush.bf16.msra.mxu0 %v2259
        %2311 = vmatpush.bf16.msra.mxu0 %v2258
        %2312 = vmatpush.bf16.msra.mxu0 %v2257
        %2313 = vmatmul.bf16.gmra.mxu0 %v2185
        %v2314 = vpop.f32.mrf.mxu0
        %v2315 = vadd.f32 0.0, %v2314
        %v2316 = vpop.f32.mrf.mxu0
        %v2317 = vadd.f32 0.0, %v2316
        %2318 = vmatmul.bf16.gmra.mxu0 %v2187
        %v2319 = vpop.f32.mrf.mxu0
        %v2320 = vadd.f32 0.0, %v2319
        %v2321 = vpop.f32.mrf.mxu0
        %v2322 = vadd.f32 0.0, %v2321
        %2323 = vmatmul.bf16.gmra.mxu0 %v2189
        %v2324 = vpop.f32.mrf.mxu0
        %v2325 = vadd.f32 0.0, %v2324
        %v2326 = vpop.f32.mrf.mxu0
        %v2327 = vadd.f32 0.0, %v2326
        %2328 = vmatmul.bf16.gmra.mxu0 %v2191
        %v2329 = vpop.f32.mrf.mxu0
        %v2330 = vadd.f32 0.0, %v2329
        %v2331 = vpop.f32.mrf.mxu0
        %v2332 = vadd.f32 0.0, %v2331
        %2333 = vmatmul.bf16.gmra.mxu0 %v2193
        %v2334 = vpop.f32.mrf.mxu0
        %v2335 = vadd.f32 0.0, %v2334
        %v2336 = vpop.f32.mrf.mxu0
        %v2337 = vadd.f32 0.0, %v2336
        %2338 = vmatmul.bf16.gmra.mxu0 %v2195
        %v2339 = vpop.f32.mrf.mxu0
        %v2340 = vadd.f32 0.0, %v2339
        %v2341 = vpop.f32.mrf.mxu0
        %v2342 = vadd.f32 0.0, %v2341
        %2343 = vmatmul.bf16.gmra.mxu0 %v2197
        %v2344 = vpop.f32.mrf.mxu0
        %v2345 = vadd.f32 0.0, %v2344
        %v2346 = vpop.f32.mrf.mxu0
        %v2347 = vadd.f32 0.0, %v2346
        %2348 = vmatmul.bf16.gmra.mxu0 %v2199
        %v2349 = vpop.f32.mrf.mxu0
        %v2350 = vadd.f32 0.0, %v2349
        %v2351 = vpop.f32.mrf.mxu0
        %v2352 = vadd.f32 0.0, %v2351
        %2353 = vdwg.mxu0
        %2354 = vmatpush.bf16.msra.mxu0 0
        %2355 = vmatpush.bf16.msra.mxu0 0
        %2356 = vmatpush.bf16.msra.mxu0 0
        %2357 = vmatpush.bf16.msra.mxu0 0
        %2358 = vmatpush.bf16.msra.mxu0 %v2268
        %2359 = vmatpush.bf16.msra.mxu0 %v2267
        %2360 = vmatpush.bf16.msra.mxu0 %v2266
        %2361 = vmatpush.bf16.msra.mxu0 %v2265
        %2362 = vmatmul.bf16.gmra.mxu0 %v2282
        %v2363 = vpop.f32.mrf.mxu0
        %v2364 = vadd.f32 %v2315, %v2363
        %v2365 = vpop.f32.mrf.mxu0
        %v2366 = vadd.f32 %v2317, %v2365
        %2367 = vmatmul.bf16.gmra.mxu0 %v2285
        %v2368 = vpop.f32.mrf.mxu0
        %v2369 = vadd.f32 %v2320, %v2368
        %v2370 = vpop.f32.mrf.mxu0
        %v2371 = vadd.f32 %v2322, %v2370
        %2372 = vmatmul.bf16.gmra.mxu0 %v2288
        %v2373 = vpop.f32.mrf.mxu0
        %v2374 = vadd.f32 %v2325, %v2373
        %v2375 = vpop.f32.mrf.mxu0
        %v2376 = vadd.f32 %v2327, %v2375
        %2377 = vmatmul.bf16.gmra.mxu0 %v2291
        %v2378 = vpop.f32.mrf.mxu0
        %v2379 = vadd.f32 %v2330, %v2378
        %v2380 = vpop.f32.mrf.mxu0
        %v2381 = vadd.f32 %v2332, %v2380
        %2382 = vmatmul.bf16.gmra.mxu0 %v2294
        %v2383 = vpop.f32.mrf.mxu0
        %v2384 = vadd.f32 %v2335, %v2383
        %v2385 = vpop.f32.mrf.mxu0
        %v2386 = vadd.f32 %v2337, %v2385
        %2387 = vmatmul.bf16.gmra.mxu0 %v2297
        %v2388 = vpop.f32.mrf.mxu0
        %v2389 = vadd.f32 %v2340, %v2388
        %v2390 = vpop.f32.mrf.mxu0
        %v2391 = vadd.f32 %v2342, %v2390
        %2392 = vmatmul.bf16.gmra.mxu0 %v2300
        %v2393 = vpop.f32.mrf.mxu0
        %v2394 = vadd.f32 %v2345, %v2393
        %v2395 = vpop.f32.mrf.mxu0
        %v2396 = vadd.f32 %v2347, %v2395
        %2397 = vmatmul.bf16.gmra.mxu0 %v2303
        %v2398 = vpop.f32.mrf.mxu0
        %v2399 = vadd.f32 %v2350, %v2398
        %v2400 = vpop.f32.mrf.mxu0
        %v2401 = vadd.f32 %v2352, %v2400
        %2402 = vdwg.mxu0
        %v2419 = vunpack.c.l.b16 %v2056
        %v2420 = vunpack.c.h.b16 %v2056
        %v2421 = vunpack.c.l.b16 %v2057
        %v2422 = vunpack.c.h.b16 %v2057
        %v2423 = vunpack.c.l.b16 %v2058
        %v2424 = vunpack.c.h.b16 %v2058
        %v2425 = vunpack.c.l.b16 %v2059
        %v2426 = vunpack.c.h.b16 %v2059
        %v2427 = vunpack.c.l.b16 %v2060
        %v2428 = vunpack.c.h.b16 %v2060
        %v2429 = vunpack.c.l.b16 %v2061
        %v2430 = vunpack.c.h.b16 %v2061
        %v2431 = vunpack.c.l.b16 %v2062
        %v2432 = vunpack.c.h.b16 %v2062
        %v2433 = vunpack.c.l.b16 %v2063
        %v2434 = vunpack.c.h.b16 %v2063
        %v2435 = vunpack.c.l.b16 %v2064
        %v2436 = vunpack.c.h.b16 %v2064
        %v2437 = vunpack.c.l.b16 %v2065
        %v2438 = vunpack.c.h.b16 %v2065
        %v2439 = vunpack.c.l.b16 %v2066
        %v2440 = vunpack.c.h.b16 %v2066
        %v2441 = vunpack.c.l.b16 %v2067
        %v2442 = vunpack.c.h.b16 %v2067
        %v2443 = vunpack.c.l.b16 %v2068
        %v2444 = vunpack.c.h.b16 %v2068
        %v2445 = vunpack.c.l.b16 %v2069
        %v2446 = vunpack.c.h.b16 %v2069
        %v2447 = vunpack.c.l.b16 %v2070
        %v2448 = vunpack.c.h.b16 %v2070
        %v2449 = vunpack.c.l.b16 %v2071
        %v2450 = vunpack.c.h.b16 %v2071
        %v2451 = vpack.c.b16 %v2421, %v2419
        %v2452 = vpack.c.b16 %v2422, %v2420
        %v2453 = vpack.c.b16 %v2425, %v2423
        %v2454 = vpack.c.b16 %v2426, %v2424
        %v2455 = vpack.c.b16 %v2429, %v2427
        %v2456 = vpack.c.b16 %v2430, %v2428
        %v2457 = vpack.c.b16 %v2433, %v2431
        %v2458 = vpack.c.b16 %v2434, %v2432
        %v2459 = vpack.c.b16 %v2437, %v2435
        %v2460 = vpack.c.b16 %v2438, %v2436
        %v2461 = vpack.c.b16 %v2441, %v2439
        %v2462 = vpack.c.b16 %v2442, %v2440
        %v2463 = vpack.c.b16 %v2445, %v2443
        %v2464 = vpack.c.b16 %v2446, %v2444
        %v2465 = vpack.c.b16 %v2449, %v2447
        %v2466 = vpack.c.b16 %v2450, %v2448
        %v2499 = vunpack.c.l.b16 %v2072
        %v2500 = vunpack.c.l.b16 %v2073
        %v2501 = vunpack.c.l.b16 %v2074
        %v2502 = vunpack.c.l.b16 %v2075
        %v2503 = vunpack.c.l.b16 %v2076
        %v2504 = vunpack.c.l.b16 %v2077
        %v2505 = vunpack.c.l.b16 %v2078
        %v2506 = vunpack.c.l.b16 %v2079
        %v2507 = vunpack.c.l.b16 %v2080
        %v2508 = vunpack.c.l.b16 %v2081
        %v2509 = vunpack.c.l.b16 %v2082
        %v2510 = vunpack.c.l.b16 %v2083
        %v2511 = vunpack.c.l.b16 %v2084
        %v2512 = vunpack.c.l.b16 %v2085
        %v2513 = vunpack.c.l.b16 %v2086
        %v2514 = vunpack.c.l.b16 %v2087
        %v2515 = vunpack.c.l.b16 %v2088
        %v2516 = vunpack.c.l.b16 %v2089
        %v2517 = vunpack.c.l.b16 %v2090
        %v2518 = vunpack.c.l.b16 %v2091
        %v2519 = vunpack.c.l.b16 %v2092
        %v2520 = vunpack.c.l.b16 %v2093
        %v2521 = vunpack.c.l.b16 %v2094
        %v2522 = vunpack.c.l.b16 %v2095
        %v2523 = vpack.c.b16 %v2500, %v2499
        %v2524 = vpack.c.b16 %v2502, %v2501
        %v2525 = vpack.c.b16 %v2504, %v2503
        %v2526 = vpack.c.b16 %v2506, %v2505
        %v2527 = vpack.c.b16 %v2508, %v2507
        %v2528 = vpack.c.b16 %v2510, %v2509
        %v2529 = vpack.c.b16 %v2512, %v2511
        %v2530 = vpack.c.b16 %v2514, %v2513
        %v2531 = vpack.c.b16 %v2516, %v2515
        %v2532 = vpack.c.b16 %v2518, %v2517
        %v2533 = vpack.c.b16 %v2520, %v2519
        %v2534 = vpack.c.b16 %v2522, %v2521
        %v2548 = vsel %vm1084, %v2452, 0
        %v2551 = vsel %vm1084, %v2454, 0
        %v2554 = vsel %vm1084, %v2456, 0
        %v2557 = vsel %vm1084, %v2458, 0
        %v2560 = vsel %vm1084, %v2460, 0
        %v2563 = vsel %vm1084, %v2462, 0
        %v2566 = vsel %vm1084, %v2464, 0
        %v2569 = vsel %vm1084, %v2466, 0
        %2571 = vmatpush.bf16.msra.mxu0 %v2530
        %2572 = vmatpush.bf16.msra.mxu0 %v2529
        %2573 = vmatpush.bf16.msra.mxu0 %v2528
        %2574 = vmatpush.bf16.msra.mxu0 %v2527
        %2575 = vmatpush.bf16.msra.mxu0 %v2526
        %2576 = vmatpush.bf16.msra.mxu0 %v2525
        %2577 = vmatpush.bf16.msra.mxu0 %v2524
        %2578 = vmatpush.bf16.msra.mxu0 %v2523
        %2579 = vmatmul.bf16.gmra.mxu0 %v2451
        %v2580 = vpop.f32.mrf.mxu0
        %v2581 = vadd.f32 %v2364, %v2580
        %v2582 = vpop.f32.mrf.mxu0
        %v2583 = vadd.f32 %v2366, %v2582
        %2584 = vmatmul.bf16.gmra.mxu0 %v2453
        %v2585 = vpop.f32.mrf.mxu0
        %v2586 = vadd.f32 %v2369, %v2585
        %v2587 = vpop.f32.mrf.mxu0
        %v2588 = vadd.f32 %v2371, %v2587
        %2589 = vmatmul.bf16.gmra.mxu0 %v2455
        %v2590 = vpop.f32.mrf.mxu0
        %v2591 = vadd.f32 %v2374, %v2590
        %v2592 = vpop.f32.mrf.mxu0
        %v2593 = vadd.f32 %v2376, %v2592
        %2594 = vmatmul.bf16.gmra.mxu0 %v2457
        %v2595 = vpop.f32.mrf.mxu0
        %v2596 = vadd.f32 %v2379, %v2595
        %v2597 = vpop.f32.mrf.mxu0
        %v2598 = vadd.f32 %v2381, %v2597
        %2599 = vmatmul.bf16.gmra.mxu0 %v2459
        %v2600 = vpop.f32.mrf.mxu0
        %v2601 = vadd.f32 %v2384, %v2600
        %v2602 = vpop.f32.mrf.mxu0
        %v2603 = vadd.f32 %v2386, %v2602
        %2604 = vmatmul.bf16.gmra.mxu0 %v2461
        %v2605 = vpop.f32.mrf.mxu0
        %v2606 = vadd.f32 %v2389, %v2605
        %v2607 = vpop.f32.mrf.mxu0
        %v2608 = vadd.f32 %v2391, %v2607
        %2609 = vmatmul.bf16.gmra.mxu0 %v2463
        %v2610 = vpop.f32.mrf.mxu0
        %v2611 = vadd.f32 %v2394, %v2610
        %v2612 = vpop.f32.mrf.mxu0
        %v2613 = vadd.f32 %v2396, %v2612
        %2614 = vmatmul.bf16.gmra.mxu0 %v2465
        %v2615 = vpop.f32.mrf.mxu0
        %v2616 = vadd.f32 %v2399, %v2615
        %v2617 = vpop.f32.mrf.mxu0
        %v2618 = vadd.f32 %v2401, %v2617
        %2619 = vdwg.mxu0
        %2620 = vmatpush.bf16.msra.mxu0 0
        %2621 = vmatpush.bf16.msra.mxu0 0
        %2622 = vmatpush.bf16.msra.mxu0 0
        %2623 = vmatpush.bf16.msra.mxu0 0
        %2624 = vmatpush.bf16.msra.mxu0 %v2534
        %2625 = vmatpush.bf16.msra.mxu0 %v2533
        %2626 = vmatpush.bf16.msra.mxu0 %v2532
        %2627 = vmatpush.bf16.msra.mxu0 %v2531
        %2628 = vmatmul.bf16.gmra.mxu0 %v2548
        %v2629 = vpop.f32.mrf.mxu0
        %v2630 = vadd.f32 %v2581, %v2629
        %v2631 = vpop.f32.mrf.mxu0
        %v2632 = vadd.f32 %v2583, %v2631
        %2633 = vmatmul.bf16.gmra.mxu0 %v2551
        %v2634 = vpop.f32.mrf.mxu0
        %v2635 = vadd.f32 %v2586, %v2634
        %v2636 = vpop.f32.mrf.mxu0
        %v2637 = vadd.f32 %v2588, %v2636
        %2638 = vmatmul.bf16.gmra.mxu0 %v2554
        %v2639 = vpop.f32.mrf.mxu0
        %v2640 = vadd.f32 %v2591, %v2639
        %v2641 = vpop.f32.mrf.mxu0
        %v2642 = vadd.f32 %v2593, %v2641
        %2643 = vmatmul.bf16.gmra.mxu0 %v2557
        %v2644 = vpop.f32.mrf.mxu0
        %v2645 = vadd.f32 %v2596, %v2644
        %v2646 = vpop.f32.mrf.mxu0
        %v2647 = vadd.f32 %v2598, %v2646
        %2648 = vmatmul.bf16.gmra.mxu0 %v2560
        %v2649 = vpop.f32.mrf.mxu0
        %v2650 = vadd.f32 %v2601, %v2649
        %v2651 = vpop.f32.mrf.mxu0
        %v2652 = vadd.f32 %v2603, %v2651
        %2653 = vmatmul.bf16.gmra.mxu0 %v2563
        %v2654 = vpop.f32.mrf.mxu0
        %v2655 = vadd.f32 %v2606, %v2654
        %v2656 = vpop.f32.mrf.mxu0
        %v2657 = vadd.f32 %v2608, %v2656
        %2658 = vmatmul.bf16.gmra.mxu0 %v2566
        %v2659 = vpop.f32.mrf.mxu0
        %v2660 = vadd.f32 %v2611, %v2659
        %v2661 = vpop.f32.mrf.mxu0
        %v2662 = vadd.f32 %v2613, %v2661
        %2663 = vmatmul.bf16.gmra.mxu0 %v2569
        %v2664 = vpop.f32.mrf.mxu0
        %v2665 = vadd.f32 %v2616, %v2664
        %v2666 = vpop.f32.mrf.mxu0
        %v2667 = vadd.f32 %v2618, %v2666
        %2668 = vdwg.mxu0
        %v2669 = vld [vmem:[%s2055] sm:$0xff]
        %v2670 = vld [vmem:[%s2055 + $0x8] sm:$0xff]
        %v2671 = vld [vmem:[%s2055 + $0x10] sm:$0xff]
        %v2672 = vld [vmem:[%s2055 + $0x18] sm:$0xff]
        %v2673 = vld [vmem:[%s2055 + $0x20] sm:$0x11]
        %v2674 = vld [vmem:[%s2055 + $0x28] sm:$0xff]
        %v2675 = vld [vmem:[%s2055 + $0x30] sm:$0xff]
        %v2676 = vld [vmem:[%s2055 + $0x38] sm:$0xff]
        %v2677 = vld [vmem:[%s2055 + $0x40] sm:$0xff]
        %v2678 = vld [vmem:[%s2055 + $0x48] sm:$0x11]
        %v2679 = vld [vmem:[%s2055 + $0x50] sm:$0xff]
        %v2680 = vld [vmem:[%s2055 + $0x58] sm:$0xff]
        %v2681 = vld [vmem:[%s2055 + $0x60] sm:$0xff]
        %v2682 = vld [vmem:[%s2055 + $0x68] sm:$0xff]
        %v2683 = vld [vmem:[%s2055 + $0x70] sm:$0x11]
        %v2684 = vld [vmem:[%s2055 + $0x78] sm:$0xff]
        %v2685 = vld [vmem:[%s2055 + $0x80] sm:$0xff]
        %v2686 = vld [vmem:[%s2055 + $0x88] sm:$0xff]
        %v2687 = vld [vmem:[%s2055 + $0x90] sm:$0xff]
        %v2688 = vld [vmem:[%s2055 + $0x98] sm:$0x11]
        %v2690 = vshrl.u32 %v2669, 16
        %v2692 = vrot.slane %v2690, 4
        %v2693 = vshll.u32 %v2669, 16
        %v2695 = vrot.slane %v2693, 5
        %v2696 = vor.u32 %v2692, %v2695
        %v2697 = vrot.slane %v2696, 4
        %v2699 = vshll.u32 %v2670, 16
        %v2701 = vrot.slane %v2699, 5
        %v2702 = vsel %vm1495, %v2697, %v2701
        %v2703 = vshrl.u32 %v2670, 16
        %v2705 = vrot.slane %v2703, 4
        %v2706 = vor.u32 %v2705, %v2701
        %v2707 = vrot.slane %v2706, 4
        %v2709 = vshll.u32 %v2671, 16
        %v2711 = vrot.slane %v2709, 5
        %v2712 = vsel %vm1495, %v2707, %v2711
        %v2713 = vshrl.u32 %v2671, 16
        %v2715 = vrot.slane %v2713, 4
        %v2716 = vor.u32 %v2715, %v2711
        %v2717 = vrot.slane %v2716, 4
        %v2719 = vshll.u32 %v2672, 16
        %v2721 = vrot.slane %v2719, 5
        %v2722 = vsel %vm1495, %v2717, %v2721
        %v2723 = vshrl.u32 %v2672, 16
        %v2725 = vrot.slane %v2723, 4
        %v2726 = vor.u32 %v2725, %v2721
        %v2727 = vrot.slane %v2726, 4
        %v2729 = vshll.u32 %v2673, 16
        %v2731 = vrot.slane %v2729, 5
        %v2732 = vsel %vm1495, %v2727, %v2731
        %v2734 = vshrl.u32 %v2674, 16
        %v2736 = vrot.slane %v2734, 4
        %v2737 = vshll.u32 %v2674, 16
        %v2739 = vrot.slane %v2737, 5
        %v2740 = vor.u32 %v2736, %v2739
        %v2741 = vrot.slane %v2740, 4
        %v2743 = vshll.u32 %v2675, 16
        %v2745 = vrot.slane %v2743, 5
        %v2746 = vsel %vm1495, %v2741, %v2745
        %v2747 = vshrl.u32 %v2675, 16
        %v2749 = vrot.slane %v2747, 4
        %v2750 = vor.u32 %v2749, %v2745
        %v2751 = vrot.slane %v2750, 4
        %v2753 = vshll.u32 %v2676, 16
        %v2755 = vrot.slane %v2753, 5
        %v2756 = vsel %vm1495, %v2751, %v2755
        %v2757 = vshrl.u32 %v2676, 16
        %v2759 = vrot.slane %v2757, 4
        %v2760 = vor.u32 %v2759, %v2755
        %v2761 = vrot.slane %v2760, 4
        %v2763 = vshll.u32 %v2677, 16
        %v2765 = vrot.slane %v2763, 5
        %v2766 = vsel %vm1495, %v2761, %v2765
        %v2767 = vshrl.u32 %v2677, 16
        %v2769 = vrot.slane %v2767, 4
        %v2770 = vor.u32 %v2769, %v2765
        %v2771 = vrot.slane %v2770, 4
        %v2773 = vshll.u32 %v2678, 16
        %v2775 = vrot.slane %v2773, 5
        %v2776 = vsel %vm1495, %v2771, %v2775
        %v2778 = vshrl.u32 %v2679, 16
        %v2780 = vrot.slane %v2778, 4
        %v2781 = vshll.u32 %v2679, 16
        %v2783 = vrot.slane %v2781, 5
        %v2784 = vor.u32 %v2780, %v2783
        %v2785 = vrot.slane %v2784, 4
        %v2787 = vshll.u32 %v2680, 16
        %v2789 = vrot.slane %v2787, 5
        %v2790 = vsel %vm1495, %v2785, %v2789
        %v2791 = vshrl.u32 %v2680, 16
        %v2793 = vrot.slane %v2791, 4
        %v2794 = vor.u32 %v2793, %v2789
        %v2795 = vrot.slane %v2794, 4
        %v2797 = vshll.u32 %v2681, 16
        %v2799 = vrot.slane %v2797, 5
        %v2800 = vsel %vm1495, %v2795, %v2799
        %v2801 = vshrl.u32 %v2681, 16
        %v2803 = vrot.slane %v2801, 4
        %v2804 = vor.u32 %v2803, %v2799
        %v2805 = vrot.slane %v2804, 4
        %v2807 = vshll.u32 %v2682, 16
        %v2809 = vrot.slane %v2807, 5
        %v2810 = vsel %vm1495, %v2805, %v2809
        %v2811 = vshrl.u32 %v2682, 16
        %v2813 = vrot.slane %v2811, 4
        %v2814 = vor.u32 %v2813, %v2809
        %v2815 = vrot.slane %v2814, 4
        %v2817 = vshll.u32 %v2683, 16
        %v2819 = vrot.slane %v2817, 5
        %v2820 = vsel %vm1495, %v2815, %v2819
        %v2822 = vshrl.u32 %v2684, 16
        %v2824 = vrot.slane %v2822, 4
        %v2825 = vshll.u32 %v2684, 16
        %v2827 = vrot.slane %v2825, 5
        %v2828 = vor.u32 %v2824, %v2827
        %v2829 = vrot.slane %v2828, 4
        %v2831 = vshll.u32 %v2685, 16
        %v2833 = vrot.slane %v2831, 5
        %v2834 = vsel %vm1495, %v2829, %v2833
        %v2835 = vshrl.u32 %v2685, 16
        %v2837 = vrot.slane %v2835, 4
        %v2838 = vor.u32 %v2837, %v2833
        %v2839 = vrot.slane %v2838, 4
        %v2841 = vshll.u32 %v2686, 16
        %v2843 = vrot.slane %v2841, 5
        %v2844 = vsel %vm1495, %v2839, %v2843
        %v2845 = vshrl.u32 %v2686, 16
        %v2847 = vrot.slane %v2845, 4
        %v2848 = vor.u32 %v2847, %v2843
        %v2849 = vrot.slane %v2848, 4
        %v2851 = vshll.u32 %v2687, 16
        %v2853 = vrot.slane %v2851, 5
        %v2854 = vsel %vm1495, %v2849, %v2853
        %v2855 = vshrl.u32 %v2687, 16
        %v2857 = vrot.slane %v2855, 4
        %v2858 = vor.u32 %v2857, %v2853
        %v2859 = vrot.slane %v2858, 4
        %v2861 = vshll.u32 %v2688, 16
        %v2863 = vrot.slane %v2861, 5
        %v2864 = vsel %vm1495, %v2859, %v2863
        %v2865 = vld [vmem:[%s1672] sm:$0xf]
        %v2866 = vld [vmem:[%s1672 + $0x4] sm:$0xf]
        %v2867 = vld [vmem:[%s1672 + $0x8] sm:$0xf]
        %v2868 = vld [vmem:[%s1672 + $0xc] sm:$0xf]
        %v2869 = vld [vmem:[%s1672 + $0x10] sm:$0xf]
        %v2870 = vld [vmem:[%s1672 + $0x14] sm:$0xf]
        %v2871 = vld [vmem:[%s1672 + $0x18] sm:$0xf]
        %v2872 = vld [vmem:[%s1672 + $0x1c] sm:$0xf]
        %v2873 = vld [vmem:[%s1672 + $0x20] sm:$0xf]
        %v2874 = vld [vmem:[%s1672 + $0x24] sm:$0xf]
        %v2875 = vld [vmem:[%s1672 + $0x28] sm:$0xf]
        %v2876 = vld [vmem:[%s1672 + $0x2c] sm:$0xf]
        %v2877 = vld [vmem:[%s1672 + $0x30] sm:$0xf]
        %v2878 = vld [vmem:[%s1672 + $0x34] sm:$0xf]
        %v2879 = vld [vmem:[%s1672 + $0x38] sm:$0xf]
        %v2880 = vld [vmem:[%s1672 + $0x3c] sm:$0xf]
        %v2881 = vld [vmem:[%s1672 + $0x40] sm:$0xf]
        %v2882 = vld [vmem:[%s1672 + $0x44] sm:$0xf]
        %v2883 = vld [vmem:[%s1672 + $0x48] sm:$0xf]
        %v2884 = vld [vmem:[%s1672 + $0x4c] sm:$0xf]
        %v2885 = vld [vmem:[%s1672 + $0x50] sm:$0xf]
        %v2886 = vld [vmem:[%s1672 + $0x54] sm:$0xf]
        %v2887 = vld [vmem:[%s1672 + $0x58] sm:$0xf]
        %v2888 = vld [vmem:[%s1672 + $0x5c] sm:$0xf]
        %v2889 = vunpack.c.l.b16 %v2702
        %v2890 = vunpack.c.h.b16 %v2702
        %v2891 = vunpack.c.l.b16 %v2712
        %v2892 = vunpack.c.h.b16 %v2712
        %v2893 = vunpack.c.l.b16 %v2722
        %v2894 = vunpack.c.h.b16 %v2722
        %v2895 = vunpack.c.l.b16 %v2732
        %v2896 = vunpack.c.h.b16 %v2732
        %v2897 = vunpack.c.l.b16 %v2746
        %v2898 = vunpack.c.h.b16 %v2746
        %v2899 = vunpack.c.l.b16 %v2756
        %v2900 = vunpack.c.h.b16 %v2756
        %v2901 = vunpack.c.l.b16 %v2766
        %v2902 = vunpack.c.h.b16 %v2766
        %v2903 = vunpack.c.l.b16 %v2776
        %v2904 = vunpack.c.h.b16 %v2776
        %v2905 = vunpack.c.l.b16 %v2790
        %v2906 = vunpack.c.h.b16 %v2790
        %v2907 = vunpack.c.l.b16 %v2800
        %v2908 = vunpack.c.h.b16 %v2800
        %v2909 = vunpack.c.l.b16 %v2810
        %v2910 = vunpack.c.h.b16 %v2810
        %v2911 = vunpack.c.l.b16 %v2820
        %v2912 = vunpack.c.h.b16 %v2820
        %v2913 = vunpack.c.l.b16 %v2834
        %v2914 = vunpack.c.h.b16 %v2834
        %v2915 = vunpack.c.l.b16 %v2844
        %v2916 = vunpack.c.h.b16 %v2844
        %v2917 = vunpack.c.l.b16 %v2854
        %v2918 = vunpack.c.h.b16 %v2854
        %v2919 = vunpack.c.l.b16 %v2864
        %v2920 = vunpack.c.h.b16 %v2864
        %v2921 = vpack.c.b16 %v2891, %v2889
        %v2922 = vpack.c.b16 %v2892, %v2890
        %v2923 = vpack.c.b16 %v2895, %v2893
        %v2924 = vpack.c.b16 %v2896, %v2894
        %v2925 = vpack.c.b16 %v2899, %v2897
        %v2926 = vpack.c.b16 %v2900, %v2898
        %v2927 = vpack.c.b16 %v2903, %v2901
        %v2928 = vpack.c.b16 %v2904, %v2902
        %v2929 = vpack.c.b16 %v2907, %v2905
        %v2930 = vpack.c.b16 %v2908, %v2906
        %v2931 = vpack.c.b16 %v2911, %v2909
        %v2932 = vpack.c.b16 %v2912, %v2910
        %v2933 = vpack.c.b16 %v2915, %v2913
        %v2934 = vpack.c.b16 %v2916, %v2914
        %v2935 = vpack.c.b16 %v2919, %v2917
        %v2936 = vpack.c.b16 %v2920, %v2918
        %v2969 = vunpack.c.l.b16 %v2865
        %v2970 = vunpack.c.l.b16 %v2866
        %v2971 = vunpack.c.l.b16 %v2867
        %v2972 = vunpack.c.l.b16 %v2868
        %v2973 = vunpack.c.l.b16 %v2869
        %v2974 = vunpack.c.l.b16 %v2870
        %v2975 = vunpack.c.l.b16 %v2871
        %v2976 = vunpack.c.l.b16 %v2872
        %v2977 = vunpack.c.l.b16 %v2873
        %v2978 = vunpack.c.l.b16 %v2874
        %v2979 = vunpack.c.l.b16 %v2875
        %v2980 = vunpack.c.l.b16 %v2876
        %v2981 = vunpack.c.l.b16 %v2877
        %v2982 = vunpack.c.l.b16 %v2878
        %v2983 = vunpack.c.l.b16 %v2879
        %v2984 = vunpack.c.l.b16 %v2880
        %v2985 = vunpack.c.l.b16 %v2881
        %v2986 = vunpack.c.l.b16 %v2882
        %v2987 = vunpack.c.l.b16 %v2883
        %v2988 = vunpack.c.l.b16 %v2884
        %v2989 = vunpack.c.l.b16 %v2885
        %v2990 = vunpack.c.l.b16 %v2886
        %v2991 = vunpack.c.l.b16 %v2887
        %v2992 = vunpack.c.l.b16 %v2888
        %v2993 = vpack.c.b16 %v2970, %v2969
        %v2994 = vpack.c.b16 %v2972, %v2971
        %v2995 = vpack.c.b16 %v2974, %v2973
        %v2996 = vpack.c.b16 %v2976, %v2975
        %v2997 = vpack.c.b16 %v2978, %v2977
        %v2998 = vpack.c.b16 %v2980, %v2979
        %v2999 = vpack.c.b16 %v2982, %v2981
        %v3000 = vpack.c.b16 %v2984, %v2983
        %v3001 = vpack.c.b16 %v2986, %v2985
        %v3002 = vpack.c.b16 %v2988, %v2987
        %v3003 = vpack.c.b16 %v2990, %v2989
        %v3004 = vpack.c.b16 %v2992, %v2991
        %v3018 = vsel %vm1084, %v2922, 0
        %v3021 = vsel %vm1084, %v2924, 0
        %v3024 = vsel %vm1084, %v2926, 0
        %v3027 = vsel %vm1084, %v2928, 0
        %v3030 = vsel %vm1084, %v2930, 0
        %v3033 = vsel %vm1084, %v2932, 0
        %v3036 = vsel %vm1084, %v2934, 0
        %v3039 = vsel %vm1084, %v2936, 0
        %3041 = vmatpush.bf16.msra.mxu0 %v3000
        %3042 = vmatpush.bf16.msra.mxu0 %v2999
        %3043 = vmatpush.bf16.msra.mxu0 %v2998
        %3044 = vmatpush.bf16.msra.mxu0 %v2997
        %3045 = vmatpush.bf16.msra.mxu0 %v2996
        %3046 = vmatpush.bf16.msra.mxu0 %v2995
        %3047 = vmatpush.bf16.msra.mxu0 %v2994
        %3048 = vmatpush.bf16.msra.mxu0 %v2993
        %3049 = vmatmul.bf16.gmra.mxu0 %v2921
        %v3050 = vpop.f32.mrf.mxu0
        %v3051 = vadd.f32 0.0, %v3050
        %v3052 = vpop.f32.mrf.mxu0
        %v3053 = vadd.f32 0.0, %v3052
        %3054 = vmatmul.bf16.gmra.mxu0 %v2923
        %v3055 = vpop.f32.mrf.mxu0
        %v3056 = vadd.f32 0.0, %v3055
        %v3057 = vpop.f32.mrf.mxu0
        %v3058 = vadd.f32 0.0, %v3057
        %3059 = vmatmul.bf16.gmra.mxu0 %v2925
        %v3060 = vpop.f32.mrf.mxu0
        %v3061 = vadd.f32 0.0, %v3060
        %v3062 = vpop.f32.mrf.mxu0
        %v3063 = vadd.f32 0.0, %v3062
        %3064 = vmatmul.bf16.gmra.mxu0 %v2927
        %v3065 = vpop.f32.mrf.mxu0
        %v3066 = vadd.f32 0.0, %v3065
        %v3067 = vpop.f32.mrf.mxu0
        %v3068 = vadd.f32 0.0, %v3067
        %3069 = vmatmul.bf16.gmra.mxu0 %v2929
        %v3070 = vpop.f32.mrf.mxu0
        %v3071 = vadd.f32 0.0, %v3070
        %v3072 = vpop.f32.mrf.mxu0
        %v3073 = vadd.f32 0.0, %v3072
        %3074 = vmatmul.bf16.gmra.mxu0 %v2931
        %v3075 = vpop.f32.mrf.mxu0
        %v3076 = vadd.f32 0.0, %v3075
        %v3077 = vpop.f32.mrf.mxu0
        %v3078 = vadd.f32 0.0, %v3077
        %3079 = vmatmul.bf16.gmra.mxu0 %v2933
        %v3080 = vpop.f32.mrf.mxu0
        %v3081 = vadd.f32 0.0, %v3080
        %v3082 = vpop.f32.mrf.mxu0
        %v3083 = vadd.f32 0.0, %v3082
        %3084 = vmatmul.bf16.gmra.mxu0 %v2935
        %v3085 = vpop.f32.mrf.mxu0
        %v3086 = vadd.f32 0.0, %v3085
        %v3087 = vpop.f32.mrf.mxu0
        %v3088 = vadd.f32 0.0, %v3087
        %3089 = vdwg.mxu0
        %3090 = vmatpush.bf16.msra.mxu0 0
        %3091 = vmatpush.bf16.msra.mxu0 0
        %3092 = vmatpush.bf16.msra.mxu0 0
        %3093 = vmatpush.bf16.msra.mxu0 0
        %3094 = vmatpush.bf16.msra.mxu0 %v3004
        %3095 = vmatpush.bf16.msra.mxu0 %v3003
        %3096 = vmatpush.bf16.msra.mxu0 %v3002
        %3097 = vmatpush.bf16.msra.mxu0 %v3001
        %3098 = vmatmul.bf16.gmra.mxu0 %v3018
        %v3099 = vpop.f32.mrf.mxu0
        %v3100 = vadd.f32 %v3051, %v3099
        %v3101 = vpop.f32.mrf.mxu0
        %v3102 = vadd.f32 %v3053, %v3101
        %3103 = vmatmul.bf16.gmra.mxu0 %v3021
        %v3104 = vpop.f32.mrf.mxu0
        %v3105 = vadd.f32 %v3056, %v3104
        %v3106 = vpop.f32.mrf.mxu0
        %v3107 = vadd.f32 %v3058, %v3106
        %3108 = vmatmul.bf16.gmra.mxu0 %v3024
        %v3109 = vpop.f32.mrf.mxu0
        %v3110 = vadd.f32 %v3061, %v3109
        %v3111 = vpop.f32.mrf.mxu0
        %v3112 = vadd.f32 %v3063, %v3111
        %3113 = vmatmul.bf16.gmra.mxu0 %v3027
        %v3114 = vpop.f32.mrf.mxu0
        %v3115 = vadd.f32 %v3066, %v3114
        %v3116 = vpop.f32.mrf.mxu0
        %v3117 = vadd.f32 %v3068, %v3116
        %3118 = vmatmul.bf16.gmra.mxu0 %v3030
        %v3119 = vpop.f32.mrf.mxu0
        %v3120 = vadd.f32 %v3071, %v3119
        %v3121 = vpop.f32.mrf.mxu0
        %v3122 = vadd.f32 %v3073, %v3121
        %3123 = vmatmul.bf16.gmra.mxu0 %v3033
        %v3124 = vpop.f32.mrf.mxu0
        %v3125 = vadd.f32 %v3076, %v3124
        %v3126 = vpop.f32.mrf.mxu0
        %v3127 = vadd.f32 %v3078, %v3126
        %3128 = vmatmul.bf16.gmra.mxu0 %v3036
        %v3129 = vpop.f32.mrf.mxu0
        %v3130 = vadd.f32 %v3081, %v3129
        %v3131 = vpop.f32.mrf.mxu0
        %v3132 = vadd.f32 %v3083, %v3131
        %3133 = vmatmul.bf16.gmra.mxu0 %v3039
        %v3134 = vpop.f32.mrf.mxu0
        %v3135 = vadd.f32 %v3086, %v3134
        %v3136 = vpop.f32.mrf.mxu0
        %v3137 = vadd.f32 %v3088, %v3136
        %3138 = vdwg.mxu0
        %v3139 = vadd.f32 %v2630, %v3100
        %v3140 = vadd.f32 %v2632, %v3102
        %v3141 = vadd.f32 %v2635, %v3105
        %v3142 = vadd.f32 %v2637, %v3107
        %v3143 = vadd.f32 %v2640, %v3110
        %v3144 = vadd.f32 %v2642, %v3112
        %v3145 = vadd.f32 %v2645, %v3115
        %v3146 = vadd.f32 %v2647, %v3117
        %v3147 = vadd.f32 %v2650, %v3120
        %v3148 = vadd.f32 %v2652, %v3122
        %v3149 = vadd.f32 %v2655, %v3125
        %v3150 = vadd.f32 %v2657, %v3127
        %v3151 = vadd.f32 %v2660, %v3130
        %v3152 = vadd.f32 %v2662, %v3132
        %v3153 = vadd.f32 %v2665, %v3135
        %v3154 = vadd.f32 %v2667, %v3137
        %v3155 = vpack.c.bf16 %v3139, %v3139
        %v3156 = vpack.c.bf16 %v3140, %v3140
        %v3157 = vpack.c.bf16 %v3141, %v3141
        %v3158 = vpack.c.bf16 %v3142, %v3142
        %v3159 = vpack.c.bf16 %v3143, %v3143
        %v3160 = vpack.c.bf16 %v3144, %v3144
        %v3161 = vpack.c.bf16 %v3145, %v3145
        %v3162 = vpack.c.bf16 %v3146, %v3146
        %v3163 = vpack.c.bf16 %v3147, %v3147
        %v3164 = vpack.c.bf16 %v3148, %v3148
        %v3165 = vpack.c.bf16 %v3149, %v3149
        %v3166 = vpack.c.bf16 %v3150, %v3150
        %v3167 = vpack.c.bf16 %v3151, %v3151
        %v3168 = vpack.c.bf16 %v3152, %v3152
        %v3169 = vpack.c.bf16 %v3153, %v3153
        %v3170 = vpack.c.bf16 %v3154, %v3154
        %3171 = vst [vmem:[%s851 + $0x40] sm:$0xf] %v3155
        %3172 = vst [vmem:[%s851 + $0x44] sm:$0xf] %v3156
        %3173 = vst [vmem:[%s851 + $0x48] sm:$0xf] %v3157
        %3174 = vst [vmem:[%s851 + $0x4c] sm:$0xf] %v3158
        %3175 = vst [vmem:[%s851 + $0x50] sm:$0xf] %v3159
        %3176 = vst [vmem:[%s851 + $0x54] sm:$0xf] %v3160
        %3177 = vst [vmem:[%s851 + $0x58] sm:$0xf] %v3161
        %3178 = vst [vmem:[%s851 + $0x5c] sm:$0xf] %v3162
        %3179 = vst [vmem:[%s851 + $0x60] sm:$0xf] %v3163
        %3180 = vst [vmem:[%s851 + $0x64] sm:$0xf] %v3164
        %3181 = vst [vmem:[%s851 + $0x68] sm:$0xf] %v3165
        %3182 = vst [vmem:[%s851 + $0x6c] sm:$0xf] %v3166
        %3183 = vst [vmem:[%s851 + $0x70] sm:$0xf] %v3167
        %3184 = vst [vmem:[%s851 + $0x74] sm:$0xf] %v3168
        %3185 = vst [vmem:[%s851 + $0x78] sm:$0xf] %v3169
        %3186 = vst [vmem:[%s851 + $0x7c] sm:$0xf] %v3170
        %v3187 = vadd.f32 %v3139, %v3140
        %v3188 = vadd.f32 %v3187, %v3141
        %v3189 = vadd.f32 %v3188, %v3142
        %v3190 = vadd.f32 %v3189, %v3143
        %v3191 = vadd.f32 %v3190, %v3144
        %v3192 = vadd.f32 %v3191, %v3145
        %v3193 = vadd.f32 %v3192, %v3146
        %v3194 = vadd.f32 %v3193, %v3147
        %v3195 = vadd.f32 %v3194, %v3148
        %v3196 = vadd.f32 %v3195, %v3149
        %v3197 = vadd.f32 %v3196, %v3150
        %v3198 = vadd.f32 %v3197, %v3151
        %v3199 = vadd.f32 %v3198, %v3152
        %v3200 = vadd.f32 %v3199, %v3153
        %v3201 = vadd.f32 %v3200, %v3154
        %v3202 = vrot.slane %v3201, 4
        %v3203 = vadd.f32 %v3201, %v3202
        %v3204 = vrot.slane %v3203, 2
        %v3205 = vadd.f32 %v3203, %v3204
        %v3206 = vrot.slane %v3205, 1
        %v3207 = vadd.f32 %v3205, %v3206
        %v3208 = vadd.f32 %v2016, %v3207
        %v3209 = vmul.f32 %v3139, %v3139
        %v3210 = vmul.f32 %v3140, %v3140
        %v3211 = vmul.f32 %v3141, %v3141
        %v3212 = vmul.f32 %v3142, %v3142
        %v3213 = vmul.f32 %v3143, %v3143
        %v3214 = vmul.f32 %v3144, %v3144
        %v3215 = vmul.f32 %v3145, %v3145
        %v3216 = vmul.f32 %v3146, %v3146
        %v3217 = vmul.f32 %v3147, %v3147
        %v3218 = vmul.f32 %v3148, %v3148
        %v3219 = vmul.f32 %v3149, %v3149
        %v3220 = vmul.f32 %v3150, %v3150
        %v3221 = vmul.f32 %v3151, %v3151
        %v3222 = vmul.f32 %v3152, %v3152
        %v3223 = vmul.f32 %v3153, %v3153
        %v3224 = vmul.f32 %v3154, %v3154
        %v3225 = vadd.f32 %v3209, %v3210
        %v3226 = vadd.f32 %v3225, %v3211
        %v3227 = vadd.f32 %v3226, %v3212
        %v3228 = vadd.f32 %v3227, %v3213
        %v3229 = vadd.f32 %v3228, %v3214
        %v3230 = vadd.f32 %v3229, %v3215
        %v3231 = vadd.f32 %v3230, %v3216
        %v3232 = vadd.f32 %v3231, %v3217
        %v3233 = vadd.f32 %v3232, %v3218
        %v3234 = vadd.f32 %v3233, %v3219
        %v3235 = vadd.f32 %v3234, %v3220
        %v3236 = vadd.f32 %v3235, %v3221
        %v3237 = vadd.f32 %v3236, %v3222
        %v3238 = vadd.f32 %v3237, %v3223
        %v3239 = vadd.f32 %v3238, %v3224
        %v3240 = vrot.slane %v3239, 4
        %v3241 = vadd.f32 %v3239, %v3240
        %v3242 = vrot.slane %v3241, 2
        %v3243 = vadd.f32 %v3241, %v3242
        %v3244 = vrot.slane %v3243, 1
        %v3245 = vadd.f32 %v3243, %v3244
        %v3246 = vadd.f32 %v2054, %v3245
        %s3247 = scalar_lea.vmem %s821, 320 [#allocation2]
        %v3248 = vld [vmem:[%s3247] sm:$0xff]
        %v3249 = vld [vmem:[%s3247 + $0x8] sm:$0xff]
        %v3250 = vld [vmem:[%s3247 + $0x10] sm:$0xff]
        %v3251 = vld [vmem:[%s3247 + $0x18] sm:$0xff]
        %v3252 = vld [vmem:[%s3247 + $0x28] sm:$0xff]
        %v3253 = vld [vmem:[%s3247 + $0x30] sm:$0xff]
        %v3254 = vld [vmem:[%s3247 + $0x38] sm:$0xff]
        %v3255 = vld [vmem:[%s3247 + $0x40] sm:$0xff]
        %v3256 = vld [vmem:[%s3247 + $0x50] sm:$0xff]
        %v3257 = vld [vmem:[%s3247 + $0x58] sm:$0xff]
        %v3258 = vld [vmem:[%s3247 + $0x60] sm:$0xff]
        %v3259 = vld [vmem:[%s3247 + $0x68] sm:$0xff]
        %v3260 = vld [vmem:[%s3247 + $0x78] sm:$0xff]
        %v3261 = vld [vmem:[%s3247 + $0x80] sm:$0xff]
        %v3262 = vld [vmem:[%s3247 + $0x88] sm:$0xff]
        %v3263 = vld [vmem:[%s3247 + $0x90] sm:$0xff]
        %v3264 = vld [vmem:[%s1] sm:$0xf]
        %v3265 = vld [vmem:[%s1 + $0x4] sm:$0xf]
        %v3266 = vld [vmem:[%s1 + $0x8] sm:$0xf]
        %v3267 = vld [vmem:[%s1 + $0xc] sm:$0xf]
        %v3268 = vld [vmem:[%s1 + $0x10] sm:$0xf]
        %v3269 = vld [vmem:[%s1 + $0x14] sm:$0xf]
        %v3270 = vld [vmem:[%s1 + $0x18] sm:$0xf]
        %v3271 = vld [vmem:[%s1 + $0x1c] sm:$0xf]
        %v3272 = vld [vmem:[%s1 + $0x20] sm:$0xf]
        %v3273 = vld [vmem:[%s1 + $0x24] sm:$0xf]
        %v3274 = vld [vmem:[%s1 + $0x28] sm:$0xf]
        %v3275 = vld [vmem:[%s1 + $0x2c] sm:$0xf]
        %v3276 = vld [vmem:[%s1 + $0x30] sm:$0xf]
        %v3277 = vld [vmem:[%s1 + $0x34] sm:$0xf]
        %v3278 = vld [vmem:[%s1 + $0x38] sm:$0xf]
        %v3279 = vld [vmem:[%s1 + $0x3c] sm:$0xf]
        %v3280 = vld [vmem:[%s1 + $0x40] sm:$0xf]
        %v3281 = vld [vmem:[%s1 + $0x44] sm:$0xf]
        %v3282 = vld [vmem:[%s1 + $0x48] sm:$0xf]
        %v3283 = vld [vmem:[%s1 + $0x4c] sm:$0xf]
        %v3284 = vld [vmem:[%s1 + $0x50] sm:$0xf]
        %v3285 = vld [vmem:[%s1 + $0x54] sm:$0xf]
        %v3286 = vld [vmem:[%s1 + $0x58] sm:$0xf]
        %v3287 = vld [vmem:[%s1 + $0x5c] sm:$0xf]
        %s3288 = scalar_lea.vmem %s821, 960 [#allocation2]
        %v3289 = vld [vmem:[%s3288] sm:$0xff]
        %v3290 = vld [vmem:[%s3288 + $0x8] sm:$0xff]
        %v3291 = vld [vmem:[%s3288 + $0x10] sm:$0xff]
        %v3292 = vld [vmem:[%s3288 + $0x18] sm:$0xff]
        %v3293 = vld [vmem:[%s3288 + $0x28] sm:$0xff]
        %v3294 = vld [vmem:[%s3288 + $0x30] sm:$0xff]
        %v3295 = vld [vmem:[%s3288 + $0x38] sm:$0xff]
        %v3296 = vld [vmem:[%s3288 + $0x40] sm:$0xff]
        %v3297 = vld [vmem:[%s3288 + $0x50] sm:$0xff]
        %v3298 = vld [vmem:[%s3288 + $0x58] sm:$0xff]
        %v3299 = vld [vmem:[%s3288 + $0x60] sm:$0xff]
        %v3300 = vld [vmem:[%s3288 + $0x68] sm:$0xff]
        %v3301 = vld [vmem:[%s3288 + $0x78] sm:$0xff]
        %v3302 = vld [vmem:[%s3288 + $0x80] sm:$0xff]
        %v3303 = vld [vmem:[%s3288 + $0x88] sm:$0xff]
        %v3304 = vld [vmem:[%s3288 + $0x90] sm:$0xff]
        %v3305 = vld [vmem:[%s915] sm:$0xf]
        %v3306 = vld [vmem:[%s915 + $0x4] sm:$0xf]
        %v3307 = vld [vmem:[%s915 + $0x8] sm:$0xf]
        %v3308 = vld [vmem:[%s915 + $0xc] sm:$0xf]
        %v3309 = vld [vmem:[%s915 + $0x10] sm:$0xf]
        %v3310 = vld [vmem:[%s915 + $0x14] sm:$0xf]
        %v3311 = vld [vmem:[%s915 + $0x18] sm:$0xf]
        %v3312 = vld [vmem:[%s915 + $0x1c] sm:$0xf]
        %v3313 = vld [vmem:[%s915 + $0x20] sm:$0xf]
        %v3314 = vld [vmem:[%s915 + $0x24] sm:$0xf]
        %v3315 = vld [vmem:[%s915 + $0x28] sm:$0xf]
        %v3316 = vld [vmem:[%s915 + $0x2c] sm:$0xf]
        %v3317 = vld [vmem:[%s915 + $0x30] sm:$0xf]
        %v3318 = vld [vmem:[%s915 + $0x34] sm:$0xf]
        %v3319 = vld [vmem:[%s915 + $0x38] sm:$0xf]
        %v3320 = vld [vmem:[%s915 + $0x3c] sm:$0xf]
        %v3321 = vld [vmem:[%s915 + $0x40] sm:$0xf]
        %v3322 = vld [vmem:[%s915 + $0x44] sm:$0xf]
        %v3323 = vld [vmem:[%s915 + $0x48] sm:$0xf]
        %v3324 = vld [vmem:[%s915 + $0x4c] sm:$0xf]
        %v3325 = vld [vmem:[%s915 + $0x50] sm:$0xf]
        %v3326 = vld [vmem:[%s915 + $0x54] sm:$0xf]
        %v3327 = vld [vmem:[%s915 + $0x58] sm:$0xf]
        %v3328 = vld [vmem:[%s915 + $0x5c] sm:$0xf]
        %v3345 = vunpack.c.l.b16 %v3289
        %v3346 = vunpack.c.h.b16 %v3289
        %v3347 = vunpack.c.l.b16 %v3290
        %v3348 = vunpack.c.h.b16 %v3290
        %v3349 = vunpack.c.l.b16 %v3291
        %v3350 = vunpack.c.h.b16 %v3291
        %v3351 = vunpack.c.l.b16 %v3292
        %v3352 = vunpack.c.h.b16 %v3292
        %v3353 = vunpack.c.l.b16 %v3293
        %v3354 = vunpack.c.h.b16 %v3293
        %v3355 = vunpack.c.l.b16 %v3294
        %v3356 = vunpack.c.h.b16 %v3294
        %v3357 = vunpack.c.l.b16 %v3295
        %v3358 = vunpack.c.h.b16 %v3295
        %v3359 = vunpack.c.l.b16 %v3296
        %v3360 = vunpack.c.h.b16 %v3296
        %v3361 = vunpack.c.l.b16 %v3297
        %v3362 = vunpack.c.h.b16 %v3297
        %v3363 = vunpack.c.l.b16 %v3298
        %v3364 = vunpack.c.h.b16 %v3298
        %v3365 = vunpack.c.l.b16 %v3299
        %v3366 = vunpack.c.h.b16 %v3299
        %v3367 = vunpack.c.l.b16 %v3300
        %v3368 = vunpack.c.h.b16 %v3300
        %v3369 = vunpack.c.l.b16 %v3301
        %v3370 = vunpack.c.h.b16 %v3301
        %v3371 = vunpack.c.l.b16 %v3302
        %v3372 = vunpack.c.h.b16 %v3302
        %v3373 = vunpack.c.l.b16 %v3303
        %v3374 = vunpack.c.h.b16 %v3303
        %v3375 = vunpack.c.l.b16 %v3304
        %v3376 = vunpack.c.h.b16 %v3304
        %v3377 = vpack.c.b16 %v3347, %v3345
        %v3378 = vpack.c.b16 %v3348, %v3346
        %v3379 = vpack.c.b16 %v3351, %v3349
        %v3380 = vpack.c.b16 %v3352, %v3350
        %v3381 = vpack.c.b16 %v3355, %v3353
        %v3382 = vpack.c.b16 %v3356, %v3354
        %v3383 = vpack.c.b16 %v3359, %v3357
        %v3384 = vpack.c.b16 %v3360, %v3358
        %v3385 = vpack.c.b16 %v3363, %v3361
        %v3386 = vpack.c.b16 %v3364, %v3362
        %v3387 = vpack.c.b16 %v3367, %v3365
        %v3388 = vpack.c.b16 %v3368, %v3366
        %v3389 = vpack.c.b16 %v3371, %v3369
        %v3390 = vpack.c.b16 %v3372, %v3370
        %v3391 = vpack.c.b16 %v3375, %v3373
        %v3392 = vpack.c.b16 %v3376, %v3374
        %v3425 = vunpack.c.l.b16 %v3305
        %v3426 = vunpack.c.l.b16 %v3306
        %v3427 = vunpack.c.l.b16 %v3307
        %v3428 = vunpack.c.l.b16 %v3308
        %v3429 = vunpack.c.l.b16 %v3309
        %v3430 = vunpack.c.l.b16 %v3310
        %v3431 = vunpack.c.l.b16 %v3311
        %v3432 = vunpack.c.l.b16 %v3312
        %v3433 = vunpack.c.l.b16 %v3313
        %v3434 = vunpack.c.l.b16 %v3314
        %v3435 = vunpack.c.l.b16 %v3315
        %v3436 = vunpack.c.l.b16 %v3316
        %v3437 = vunpack.c.l.b16 %v3317
        %v3438 = vunpack.c.l.b16 %v3318
        %v3439 = vunpack.c.l.b16 %v3319
        %v3440 = vunpack.c.l.b16 %v3320
        %v3441 = vunpack.c.l.b16 %v3321
        %v3442 = vunpack.c.l.b16 %v3322
        %v3443 = vunpack.c.l.b16 %v3323
        %v3444 = vunpack.c.l.b16 %v3324
        %v3445 = vunpack.c.l.b16 %v3325
        %v3446 = vunpack.c.l.b16 %v3326
        %v3447 = vunpack.c.l.b16 %v3327
        %v3448 = vunpack.c.l.b16 %v3328
        %v3449 = vpack.c.b16 %v3426, %v3425
        %v3450 = vpack.c.b16 %v3428, %v3427
        %v3451 = vpack.c.b16 %v3430, %v3429
        %v3452 = vpack.c.b16 %v3432, %v3431
        %v3453 = vpack.c.b16 %v3434, %v3433
        %v3454 = vpack.c.b16 %v3436, %v3435
        %v3455 = vpack.c.b16 %v3438, %v3437
        %v3456 = vpack.c.b16 %v3440, %v3439
        %v3457 = vpack.c.b16 %v3442, %v3441
        %v3458 = vpack.c.b16 %v3444, %v3443
        %v3459 = vpack.c.b16 %v3446, %v3445
        %v3460 = vpack.c.b16 %v3448, %v3447
        %v3474 = vsel %vm1084, %v3378, 0
        %v3477 = vsel %vm1084, %v3380, 0
        %v3480 = vsel %vm1084, %v3382, 0
        %v3483 = vsel %vm1084, %v3384, 0
        %v3486 = vsel %vm1084, %v3386, 0
        %v3489 = vsel %vm1084, %v3388, 0
        %v3492 = vsel %vm1084, %v3390, 0
        %v3495 = vsel %vm1084, %v3392, 0
        %3497 = vmatpush.bf16.msra.mxu0 %v3456
        %3498 = vmatpush.bf16.msra.mxu0 %v3455
        %3499 = vmatpush.bf16.msra.mxu0 %v3454
        %3500 = vmatpush.bf16.msra.mxu0 %v3453
        %3501 = vmatpush.bf16.msra.mxu0 %v3452
        %3502 = vmatpush.bf16.msra.mxu0 %v3451
        %3503 = vmatpush.bf16.msra.mxu0 %v3450
        %3504 = vmatpush.bf16.msra.mxu0 %v3449
        %3505 = vmatmul.bf16.gmra.mxu0 %v3377
        %v3506 = vpop.f32.mrf.mxu0
        %v3507 = vadd.f32 0.0, %v3506
        %v3508 = vpop.f32.mrf.mxu0
        %v3509 = vadd.f32 0.0, %v3508
        %3510 = vmatmul.bf16.gmra.mxu0 %v3379
        %v3511 = vpop.f32.mrf.mxu0
        %v3512 = vadd.f32 0.0, %v3511
        %v3513 = vpop.f32.mrf.mxu0
        %v3514 = vadd.f32 0.0, %v3513
        %3515 = vmatmul.bf16.gmra.mxu0 %v3381
        %v3516 = vpop.f32.mrf.mxu0
        %v3517 = vadd.f32 0.0, %v3516
        %v3518 = vpop.f32.mrf.mxu0
        %v3519 = vadd.f32 0.0, %v3518
        %3520 = vmatmul.bf16.gmra.mxu0 %v3383
        %v3521 = vpop.f32.mrf.mxu0
        %v3522 = vadd.f32 0.0, %v3521
        %v3523 = vpop.f32.mrf.mxu0
        %v3524 = vadd.f32 0.0, %v3523
        %3525 = vmatmul.bf16.gmra.mxu0 %v3385
        %v3526 = vpop.f32.mrf.mxu0
        %v3527 = vadd.f32 0.0, %v3526
        %v3528 = vpop.f32.mrf.mxu0
        %v3529 = vadd.f32 0.0, %v3528
        %3530 = vmatmul.bf16.gmra.mxu0 %v3387
        %v3531 = vpop.f32.mrf.mxu0
        %v3532 = vadd.f32 0.0, %v3531
        %v3533 = vpop.f32.mrf.mxu0
        %v3534 = vadd.f32 0.0, %v3533
        %3535 = vmatmul.bf16.gmra.mxu0 %v3389
        %v3536 = vpop.f32.mrf.mxu0
        %v3537 = vadd.f32 0.0, %v3536
        %v3538 = vpop.f32.mrf.mxu0
        %v3539 = vadd.f32 0.0, %v3538
        %3540 = vmatmul.bf16.gmra.mxu0 %v3391
        %v3541 = vpop.f32.mrf.mxu0
        %v3542 = vadd.f32 0.0, %v3541
        %v3543 = vpop.f32.mrf.mxu0
        %v3544 = vadd.f32 0.0, %v3543
        %3545 = vdwg.mxu0
        %3546 = vmatpush.bf16.msra.mxu0 0
        %3547 = vmatpush.bf16.msra.mxu0 0
        %3548 = vmatpush.bf16.msra.mxu0 0
        %3549 = vmatpush.bf16.msra.mxu0 0
        %3550 = vmatpush.bf16.msra.mxu0 %v3460
        %3551 = vmatpush.bf16.msra.mxu0 %v3459
        %3552 = vmatpush.bf16.msra.mxu0 %v3458
        %3553 = vmatpush.bf16.msra.mxu0 %v3457
        %3554 = vmatmul.bf16.gmra.mxu0 %v3474
        %v3555 = vpop.f32.mrf.mxu0
        %v3556 = vadd.f32 %v3507, %v3555
        %v3557 = vpop.f32.mrf.mxu0
        %v3558 = vadd.f32 %v3509, %v3557
        %3559 = vmatmul.bf16.gmra.mxu0 %v3477
        %v3560 = vpop.f32.mrf.mxu0
        %v3561 = vadd.f32 %v3512, %v3560
        %v3562 = vpop.f32.mrf.mxu0
        %v3563 = vadd.f32 %v3514, %v3562
        %3564 = vmatmul.bf16.gmra.mxu0 %v3480
        %v3565 = vpop.f32.mrf.mxu0
        %v3566 = vadd.f32 %v3517, %v3565
        %v3567 = vpop.f32.mrf.mxu0
        %v3568 = vadd.f32 %v3519, %v3567
        %3569 = vmatmul.bf16.gmra.mxu0 %v3483
        %v3570 = vpop.f32.mrf.mxu0
        %v3571 = vadd.f32 %v3522, %v3570
        %v3572 = vpop.f32.mrf.mxu0
        %v3573 = vadd.f32 %v3524, %v3572
        %3574 = vmatmul.bf16.gmra.mxu0 %v3486
        %v3575 = vpop.f32.mrf.mxu0
        %v3576 = vadd.f32 %v3527, %v3575
        %v3577 = vpop.f32.mrf.mxu0
        %v3578 = vadd.f32 %v3529, %v3577
        %3579 = vmatmul.bf16.gmra.mxu0 %v3489
        %v3580 = vpop.f32.mrf.mxu0
        %v3581 = vadd.f32 %v3532, %v3580
        %v3582 = vpop.f32.mrf.mxu0
        %v3583 = vadd.f32 %v3534, %v3582
        %3584 = vmatmul.bf16.gmra.mxu0 %v3492
        %v3585 = vpop.f32.mrf.mxu0
        %v3586 = vadd.f32 %v3537, %v3585
        %v3587 = vpop.f32.mrf.mxu0
        %v3588 = vadd.f32 %v3539, %v3587
        %3589 = vmatmul.bf16.gmra.mxu0 %v3495
        %v3590 = vpop.f32.mrf.mxu0
        %v3591 = vadd.f32 %v3542, %v3590
        %v3592 = vpop.f32.mrf.mxu0
        %v3593 = vadd.f32 %v3544, %v3592
        %3594 = vdwg.mxu0
        %v3611 = vunpack.c.l.b16 %v3248
        %v3612 = vunpack.c.h.b16 %v3248
        %v3613 = vunpack.c.l.b16 %v3249
        %v3614 = vunpack.c.h.b16 %v3249
        %v3615 = vunpack.c.l.b16 %v3250
        %v3616 = vunpack.c.h.b16 %v3250
        %v3617 = vunpack.c.l.b16 %v3251
        %v3618 = vunpack.c.h.b16 %v3251
        %v3619 = vunpack.c.l.b16 %v3252
        %v3620 = vunpack.c.h.b16 %v3252
        %v3621 = vunpack.c.l.b16 %v3253
        %v3622 = vunpack.c.h.b16 %v3253
        %v3623 = vunpack.c.l.b16 %v3254
        %v3624 = vunpack.c.h.b16 %v3254
        %v3625 = vunpack.c.l.b16 %v3255
        %v3626 = vunpack.c.h.b16 %v3255
        %v3627 = vunpack.c.l.b16 %v3256
        %v3628 = vunpack.c.h.b16 %v3256
        %v3629 = vunpack.c.l.b16 %v3257
        %v3630 = vunpack.c.h.b16 %v3257
        %v3631 = vunpack.c.l.b16 %v3258
        %v3632 = vunpack.c.h.b16 %v3258
        %v3633 = vunpack.c.l.b16 %v3259
        %v3634 = vunpack.c.h.b16 %v3259
        %v3635 = vunpack.c.l.b16 %v3260
        %v3636 = vunpack.c.h.b16 %v3260
        %v3637 = vunpack.c.l.b16 %v3261
        %v3638 = vunpack.c.h.b16 %v3261
        %v3639 = vunpack.c.l.b16 %v3262
        %v3640 = vunpack.c.h.b16 %v3262
        %v3641 = vunpack.c.l.b16 %v3263
        %v3642 = vunpack.c.h.b16 %v3263
        %v3643 = vpack.c.b16 %v3613, %v3611
        %v3644 = vpack.c.b16 %v3614, %v3612
        %v3645 = vpack.c.b16 %v3617, %v3615
        %v3646 = vpack.c.b16 %v3618, %v3616
        %v3647 = vpack.c.b16 %v3621, %v3619
        %v3648 = vpack.c.b16 %v3622, %v3620
        %v3649 = vpack.c.b16 %v3625, %v3623
        %v3650 = vpack.c.b16 %v3626, %v3624
        %v3651 = vpack.c.b16 %v3629, %v3627
        %v3652 = vpack.c.b16 %v3630, %v3628
        %v3653 = vpack.c.b16 %v3633, %v3631
        %v3654 = vpack.c.b16 %v3634, %v3632
        %v3655 = vpack.c.b16 %v3637, %v3635
        %v3656 = vpack.c.b16 %v3638, %v3636
        %v3657 = vpack.c.b16 %v3641, %v3639
        %v3658 = vpack.c.b16 %v3642, %v3640
        %v3691 = vunpack.c.l.b16 %v3264
        %v3692 = vunpack.c.l.b16 %v3265
        %v3693 = vunpack.c.l.b16 %v3266
        %v3694 = vunpack.c.l.b16 %v3267
        %v3695 = vunpack.c.l.b16 %v3268
        %v3696 = vunpack.c.l.b16 %v3269
        %v3697 = vunpack.c.l.b16 %v3270
        %v3698 = vunpack.c.l.b16 %v3271
        %v3699 = vunpack.c.l.b16 %v3272
        %v3700 = vunpack.c.l.b16 %v3273
        %v3701 = vunpack.c.l.b16 %v3274
        %v3702 = vunpack.c.l.b16 %v3275
        %v3703 = vunpack.c.l.b16 %v3276
        %v3704 = vunpack.c.l.b16 %v3277
        %v3705 = vunpack.c.l.b16 %v3278
        %v3706 = vunpack.c.l.b16 %v3279
        %v3707 = vunpack.c.l.b16 %v3280
        %v3708 = vunpack.c.l.b16 %v3281
        %v3709 = vunpack.c.l.b16 %v3282
        %v3710 = vunpack.c.l.b16 %v3283
        %v3711 = vunpack.c.l.b16 %v3284
        %v3712 = vunpack.c.l.b16 %v3285
        %v3713 = vunpack.c.l.b16 %v3286
        %v3714 = vunpack.c.l.b16 %v3287
        %v3715 = vpack.c.b16 %v3692, %v3691
        %v3716 = vpack.c.b16 %v3694, %v3693
        %v3717 = vpack.c.b16 %v3696, %v3695
        %v3718 = vpack.c.b16 %v3698, %v3697
        %v3719 = vpack.c.b16 %v3700, %v3699
        %v3720 = vpack.c.b16 %v3702, %v3701
        %v3721 = vpack.c.b16 %v3704, %v3703
        %v3722 = vpack.c.b16 %v3706, %v3705
        %v3723 = vpack.c.b16 %v3708, %v3707
        %v3724 = vpack.c.b16 %v3710, %v3709
        %v3725 = vpack.c.b16 %v3712, %v3711
        %v3726 = vpack.c.b16 %v3714, %v3713
        %v3740 = vsel %vm1084, %v3644, 0
        %v3743 = vsel %vm1084, %v3646, 0
        %v3746 = vsel %vm1084, %v3648, 0
        %v3749 = vsel %vm1084, %v3650, 0
        %v3752 = vsel %vm1084, %v3652, 0
        %v3755 = vsel %vm1084, %v3654, 0
        %v3758 = vsel %vm1084, %v3656, 0
        %v3761 = vsel %vm1084, %v3658, 0
        %3763 = vmatpush.bf16.msra.mxu0 %v3722
        %3764 = vmatpush.bf16.msra.mxu0 %v3721
        %3765 = vmatpush.bf16.msra.mxu0 %v3720
        %3766 = vmatpush.bf16.msra.mxu0 %v3719
        %3767 = vmatpush.bf16.msra.mxu0 %v3718
        %3768 = vmatpush.bf16.msra.mxu0 %v3717
        %3769 = vmatpush.bf16.msra.mxu0 %v3716
        %3770 = vmatpush.bf16.msra.mxu0 %v3715
        %3771 = vmatmul.bf16.gmra.mxu0 %v3643
        %v3772 = vpop.f32.mrf.mxu0
        %v3773 = vadd.f32 %v3556, %v3772
        %v3774 = vpop.f32.mrf.mxu0
        %v3775 = vadd.f32 %v3558, %v3774
        %3776 = vmatmul.bf16.gmra.mxu0 %v3645
        %v3777 = vpop.f32.mrf.mxu0
        %v3778 = vadd.f32 %v3561, %v3777
        %v3779 = vpop.f32.mrf.mxu0
        %v3780 = vadd.f32 %v3563, %v3779
        %3781 = vmatmul.bf16.gmra.mxu0 %v3647
        %v3782 = vpop.f32.mrf.mxu0
        %v3783 = vadd.f32 %v3566, %v3782
        %v3784 = vpop.f32.mrf.mxu0
        %v3785 = vadd.f32 %v3568, %v3784
        %3786 = vmatmul.bf16.gmra.mxu0 %v3649
        %v3787 = vpop.f32.mrf.mxu0
        %v3788 = vadd.f32 %v3571, %v3787
        %v3789 = vpop.f32.mrf.mxu0
        %v3790 = vadd.f32 %v3573, %v3789
        %3791 = vmatmul.bf16.gmra.mxu0 %v3651
        %v3792 = vpop.f32.mrf.mxu0
        %v3793 = vadd.f32 %v3576, %v3792
        %v3794 = vpop.f32.mrf.mxu0
        %v3795 = vadd.f32 %v3578, %v3794
        %3796 = vmatmul.bf16.gmra.mxu0 %v3653
        %v3797 = vpop.f32.mrf.mxu0
        %v3798 = vadd.f32 %v3581, %v3797
        %v3799 = vpop.f32.mrf.mxu0
        %v3800 = vadd.f32 %v3583, %v3799
        %3801 = vmatmul.bf16.gmra.mxu0 %v3655
        %v3802 = vpop.f32.mrf.mxu0
        %v3803 = vadd.f32 %v3586, %v3802
        %v3804 = vpop.f32.mrf.mxu0
        %v3805 = vadd.f32 %v3588, %v3804
        %3806 = vmatmul.bf16.gmra.mxu0 %v3657
        %v3807 = vpop.f32.mrf.mxu0
        %v3808 = vadd.f32 %v3591, %v3807
        %v3809 = vpop.f32.mrf.mxu0
        %v3810 = vadd.f32 %v3593, %v3809
        %3811 = vdwg.mxu0
        %3812 = vmatpush.bf16.msra.mxu0 0
        %3813 = vmatpush.bf16.msra.mxu0 0
        %3814 = vmatpush.bf16.msra.mxu0 0
        %3815 = vmatpush.bf16.msra.mxu0 0
        %3816 = vmatpush.bf16.msra.mxu0 %v3726
        %3817 = vmatpush.bf16.msra.mxu0 %v3725
        %3818 = vmatpush.bf16.msra.mxu0 %v3724
        %3819 = vmatpush.bf16.msra.mxu0 %v3723
        %3820 = vmatmul.bf16.gmra.mxu0 %v3740
        %v3821 = vpop.f32.mrf.mxu0
        %v3822 = vadd.f32 %v3773, %v3821
        %v3823 = vpop.f32.mrf.mxu0
        %v3824 = vadd.f32 %v3775, %v3823
        %3825 = vmatmul.bf16.gmra.mxu0 %v3743
        %v3826 = vpop.f32.mrf.mxu0
        %v3827 = vadd.f32 %v3778, %v3826
        %v3828 = vpop.f32.mrf.mxu0
        %v3829 = vadd.f32 %v3780, %v3828
        %3830 = vmatmul.bf16.gmra.mxu0 %v3746
        %v3831 = vpop.f32.mrf.mxu0
        %v3832 = vadd.f32 %v3783, %v3831
        %v3833 = vpop.f32.mrf.mxu0
        %v3834 = vadd.f32 %v3785, %v3833
        %3835 = vmatmul.bf16.gmra.mxu0 %v3749
        %v3836 = vpop.f32.mrf.mxu0
        %v3837 = vadd.f32 %v3788, %v3836
        %v3838 = vpop.f32.mrf.mxu0
        %v3839 = vadd.f32 %v3790, %v3838
        %3840 = vmatmul.bf16.gmra.mxu0 %v3752
        %v3841 = vpop.f32.mrf.mxu0
        %v3842 = vadd.f32 %v3793, %v3841
        %v3843 = vpop.f32.mrf.mxu0
        %v3844 = vadd.f32 %v3795, %v3843
        %3845 = vmatmul.bf16.gmra.mxu0 %v3755
        %v3846 = vpop.f32.mrf.mxu0
        %v3847 = vadd.f32 %v3798, %v3846
        %v3848 = vpop.f32.mrf.mxu0
        %v3849 = vadd.f32 %v3800, %v3848
        %3850 = vmatmul.bf16.gmra.mxu0 %v3758
        %v3851 = vpop.f32.mrf.mxu0
        %v3852 = vadd.f32 %v3803, %v3851
        %v3853 = vpop.f32.mrf.mxu0
        %v3854 = vadd.f32 %v3805, %v3853
        %3855 = vmatmul.bf16.gmra.mxu0 %v3761
        %v3856 = vpop.f32.mrf.mxu0
        %v3857 = vadd.f32 %v3808, %v3856
        %v3858 = vpop.f32.mrf.mxu0
        %v3859 = vadd.f32 %v3810, %v3858
        %3860 = vdwg.mxu0
        %v3861 = vld [vmem:[%s3247] sm:$0xff]
        %v3862 = vld [vmem:[%s3247 + $0x8] sm:$0xff]
        %v3863 = vld [vmem:[%s3247 + $0x10] sm:$0xff]
        %v3864 = vld [vmem:[%s3247 + $0x18] sm:$0xff]
        %v3865 = vld [vmem:[%s3247 + $0x20] sm:$0x11]
        %v3866 = vld [vmem:[%s3247 + $0x28] sm:$0xff]
        %v3867 = vld [vmem:[%s3247 + $0x30] sm:$0xff]
        %v3868 = vld [vmem:[%s3247 + $0x38] sm:$0xff]
        %v3869 = vld [vmem:[%s3247 + $0x40] sm:$0xff]
        %v3870 = vld [vmem:[%s3247 + $0x48] sm:$0x11]
        %v3871 = vld [vmem:[%s3247 + $0x50] sm:$0xff]
        %v3872 = vld [vmem:[%s3247 + $0x58] sm:$0xff]
        %v3873 = vld [vmem:[%s3247 + $0x60] sm:$0xff]
        %v3874 = vld [vmem:[%s3247 + $0x68] sm:$0xff]
        %v3875 = vld [vmem:[%s3247 + $0x70] sm:$0x11]
        %v3876 = vld [vmem:[%s3247 + $0x78] sm:$0xff]
        %v3877 = vld [vmem:[%s3247 + $0x80] sm:$0xff]
        %v3878 = vld [vmem:[%s3247 + $0x88] sm:$0xff]
        %v3879 = vld [vmem:[%s3247 + $0x90] sm:$0xff]
        %v3880 = vld [vmem:[%s3247 + $0x98] sm:$0x11]
        %v3882 = vshrl.u32 %v3861, 16
        %v3884 = vrot.slane %v3882, 4
        %v3885 = vshll.u32 %v3861, 16
        %v3887 = vrot.slane %v3885, 5
        %v3888 = vor.u32 %v3884, %v3887
        %v3889 = vrot.slane %v3888, 4
        %v3891 = vshll.u32 %v3862, 16
        %v3893 = vrot.slane %v3891, 5
        %v3894 = vsel %vm1495, %v3889, %v3893
        %v3895 = vshrl.u32 %v3862, 16
        %v3897 = vrot.slane %v3895, 4
        %v3898 = vor.u32 %v3897, %v3893
        %v3899 = vrot.slane %v3898, 4
        %v3901 = vshll.u32 %v3863, 16
        %v3903 = vrot.slane %v3901, 5
        %v3904 = vsel %vm1495, %v3899, %v3903
        %v3905 = vshrl.u32 %v3863, 16
        %v3907 = vrot.slane %v3905, 4
        %v3908 = vor.u32 %v3907, %v3903
        %v3909 = vrot.slane %v3908, 4
        %v3911 = vshll.u32 %v3864, 16
        %v3913 = vrot.slane %v3911, 5
        %v3914 = vsel %vm1495, %v3909, %v3913
        %v3915 = vshrl.u32 %v3864, 16
        %v3917 = vrot.slane %v3915, 4
        %v3918 = vor.u32 %v3917, %v3913
        %v3919 = vrot.slane %v3918, 4
        %v3921 = vshll.u32 %v3865, 16
        %v3923 = vrot.slane %v3921, 5
        %v3924 = vsel %vm1495, %v3919, %v3923
        %v3926 = vshrl.u32 %v3866, 16
        %v3928 = vrot.slane %v3926, 4
        %v3929 = vshll.u32 %v3866, 16
        %v3931 = vrot.slane %v3929, 5
        %v3932 = vor.u32 %v3928, %v3931
        %v3933 = vrot.slane %v3932, 4
        %v3935 = vshll.u32 %v3867, 16
        %v3937 = vrot.slane %v3935, 5
        %v3938 = vsel %vm1495, %v3933, %v3937
        %v3939 = vshrl.u32 %v3867, 16
        %v3941 = vrot.slane %v3939, 4
        %v3942 = vor.u32 %v3941, %v3937
        %v3943 = vrot.slane %v3942, 4
        %v3945 = vshll.u32 %v3868, 16
        %v3947 = vrot.slane %v3945, 5
        %v3948 = vsel %vm1495, %v3943, %v3947
        %v3949 = vshrl.u32 %v3868, 16
        %v3951 = vrot.slane %v3949, 4
        %v3952 = vor.u32 %v3951, %v3947
        %v3953 = vrot.slane %v3952, 4
        %v3955 = vshll.u32 %v3869, 16
        %v3957 = vrot.slane %v3955, 5
        %v3958 = vsel %vm1495, %v3953, %v3957
        %v3959 = vshrl.u32 %v3869, 16
        %v3961 = vrot.slane %v3959, 4
        %v3962 = vor.u32 %v3961, %v3957
        %v3963 = vrot.slane %v3962, 4
        %v3965 = vshll.u32 %v3870, 16
        %v3967 = vrot.slane %v3965, 5
        %v3968 = vsel %vm1495, %v3963, %v3967
        %v3970 = vshrl.u32 %v3871, 16
        %v3972 = vrot.slane %v3970, 4
        %v3973 = vshll.u32 %v3871, 16
        %v3975 = vrot.slane %v3973, 5
        %v3976 = vor.u32 %v3972, %v3975
        %v3977 = vrot.slane %v3976, 4
        %v3979 = vshll.u32 %v3872, 16
        %v3981 = vrot.slane %v3979, 5
        %v3982 = vsel %vm1495, %v3977, %v3981
        %v3983 = vshrl.u32 %v3872, 16
        %v3985 = vrot.slane %v3983, 4
        %v3986 = vor.u32 %v3985, %v3981
        %v3987 = vrot.slane %v3986, 4
        %v3989 = vshll.u32 %v3873, 16
        %v3991 = vrot.slane %v3989, 5
        %v3992 = vsel %vm1495, %v3987, %v3991
        %v3993 = vshrl.u32 %v3873, 16
        %v3995 = vrot.slane %v3993, 4
        %v3996 = vor.u32 %v3995, %v3991
        %v3997 = vrot.slane %v3996, 4
        %v3999 = vshll.u32 %v3874, 16
        %v4001 = vrot.slane %v3999, 5
        %v4002 = vsel %vm1495, %v3997, %v4001
        %v4003 = vshrl.u32 %v3874, 16
        %v4005 = vrot.slane %v4003, 4
        %v4006 = vor.u32 %v4005, %v4001
        %v4007 = vrot.slane %v4006, 4
        %v4009 = vshll.u32 %v3875, 16
        %v4011 = vrot.slane %v4009, 5
        %v4012 = vsel %vm1495, %v4007, %v4011
        %v4014 = vshrl.u32 %v3876, 16
        %v4016 = vrot.slane %v4014, 4
        %v4017 = vshll.u32 %v3876, 16
        %v4019 = vrot.slane %v4017, 5
        %v4020 = vor.u32 %v4016, %v4019
        %v4021 = vrot.slane %v4020, 4
        %v4023 = vshll.u32 %v3877, 16
        %v4025 = vrot.slane %v4023, 5
        %v4026 = vsel %vm1495, %v4021, %v4025
        %v4027 = vshrl.u32 %v3877, 16
        %v4029 = vrot.slane %v4027, 4
        %v4030 = vor.u32 %v4029, %v4025
        %v4031 = vrot.slane %v4030, 4
        %v4033 = vshll.u32 %v3878, 16
        %v4035 = vrot.slane %v4033, 5
        %v4036 = vsel %vm1495, %v4031, %v4035
        %v4037 = vshrl.u32 %v3878, 16
        %v4039 = vrot.slane %v4037, 4
        %v4040 = vor.u32 %v4039, %v4035
        %v4041 = vrot.slane %v4040, 4
        %v4043 = vshll.u32 %v3879, 16
        %v4045 = vrot.slane %v4043, 5
        %v4046 = vsel %vm1495, %v4041, %v4045
        %v4047 = vshrl.u32 %v3879, 16
        %v4049 = vrot.slane %v4047, 4
        %v4050 = vor.u32 %v4049, %v4045
        %v4051 = vrot.slane %v4050, 4
        %v4053 = vshll.u32 %v3880, 16
        %v4055 = vrot.slane %v4053, 5
        %v4056 = vsel %vm1495, %v4051, %v4055
        %v4057 = vld [vmem:[%s1672] sm:$0xf]
        %v4058 = vld [vmem:[%s1672 + $0x4] sm:$0xf]
        %v4059 = vld [vmem:[%s1672 + $0x8] sm:$0xf]
        %v4060 = vld [vmem:[%s1672 + $0xc] sm:$0xf]
        %v4061 = vld [vmem:[%s1672 + $0x10] sm:$0xf]
        %v4062 = vld [vmem:[%s1672 + $0x14] sm:$0xf]
        %v4063 = vld [vmem:[%s1672 + $0x18] sm:$0xf]
        %v4064 = vld [vmem:[%s1672 + $0x1c] sm:$0xf]
        %v4065 = vld [vmem:[%s1672 + $0x20] sm:$0xf]
        %v4066 = vld [vmem:[%s1672 + $0x24] sm:$0xf]
        %v4067 = vld [vmem:[%s1672 + $0x28] sm:$0xf]
        %v4068 = vld [vmem:[%s1672 + $0x2c] sm:$0xf]
        %v4069 = vld [vmem:[%s1672 + $0x30] sm:$0xf]
        %v4070 = vld [vmem:[%s1672 + $0x34] sm:$0xf]
        %v4071 = vld [vmem:[%s1672 + $0x38] sm:$0xf]
        %v4072 = vld [vmem:[%s1672 + $0x3c] sm:$0xf]
        %v4073 = vld [vmem:[%s1672 + $0x40] sm:$0xf]
        %v4074 = vld [vmem:[%s1672 + $0x44] sm:$0xf]
        %v4075 = vld [vmem:[%s1672 + $0x48] sm:$0xf]
        %v4076 = vld [vmem:[%s1672 + $0x4c] sm:$0xf]
        %v4077 = vld [vmem:[%s1672 + $0x50] sm:$0xf]
        %v4078 = vld [vmem:[%s1672 + $0x54] sm:$0xf]
        %v4079 = vld [vmem:[%s1672 + $0x58] sm:$0xf]
        %v4080 = vld [vmem:[%s1672 + $0x5c] sm:$0xf]
        %v4081 = vunpack.c.l.b16 %v3894
        %v4082 = vunpack.c.h.b16 %v3894
        %v4083 = vunpack.c.l.b16 %v3904
        %v4084 = vunpack.c.h.b16 %v3904
        %v4085 = vunpack.c.l.b16 %v3914
        %v4086 = vunpack.c.h.b16 %v3914
        %v4087 = vunpack.c.l.b16 %v3924
        %v4088 = vunpack.c.h.b16 %v3924
        %v4089 = vunpack.c.l.b16 %v3938
        %v4090 = vunpack.c.h.b16 %v3938
        %v4091 = vunpack.c.l.b16 %v3948
        %v4092 = vunpack.c.h.b16 %v3948
        %v4093 = vunpack.c.l.b16 %v3958
        %v4094 = vunpack.c.h.b16 %v3958
        %v4095 = vunpack.c.l.b16 %v3968
        %v4096 = vunpack.c.h.b16 %v3968
        %v4097 = vunpack.c.l.b16 %v3982
        %v4098 = vunpack.c.h.b16 %v3982
        %v4099 = vunpack.c.l.b16 %v3992
        %v4100 = vunpack.c.h.b16 %v3992
        %v4101 = vunpack.c.l.b16 %v4002
        %v4102 = vunpack.c.h.b16 %v4002
        %v4103 = vunpack.c.l.b16 %v4012
        %v4104 = vunpack.c.h.b16 %v4012
        %v4105 = vunpack.c.l.b16 %v4026
        %v4106 = vunpack.c.h.b16 %v4026
        %v4107 = vunpack.c.l.b16 %v4036
        %v4108 = vunpack.c.h.b16 %v4036
        %v4109 = vunpack.c.l.b16 %v4046
        %v4110 = vunpack.c.h.b16 %v4046
        %v4111 = vunpack.c.l.b16 %v4056
        %v4112 = vunpack.c.h.b16 %v4056
        %v4113 = vpack.c.b16 %v4083, %v4081
        %v4114 = vpack.c.b16 %v4084, %v4082
        %v4115 = vpack.c.b16 %v4087, %v4085
        %v4116 = vpack.c.b16 %v4088, %v4086
        %v4117 = vpack.c.b16 %v4091, %v4089
        %v4118 = vpack.c.b16 %v4092, %v4090
        %v4119 = vpack.c.b16 %v4095, %v4093
        %v4120 = vpack.c.b16 %v4096, %v4094
        %v4121 = vpack.c.b16 %v4099, %v4097
        %v4122 = vpack.c.b16 %v4100, %v4098
        %v4123 = vpack.c.b16 %v4103, %v4101
        %v4124 = vpack.c.b16 %v4104, %v4102
        %v4125 = vpack.c.b16 %v4107, %v4105
        %v4126 = vpack.c.b16 %v4108, %v4106
        %v4127 = vpack.c.b16 %v4111, %v4109
        %v4128 = vpack.c.b16 %v4112, %v4110
        %v4161 = vunpack.c.l.b16 %v4057
        %v4162 = vunpack.c.l.b16 %v4058
        %v4163 = vunpack.c.l.b16 %v4059
        %v4164 = vunpack.c.l.b16 %v4060
        %v4165 = vunpack.c.l.b16 %v4061
        %v4166 = vunpack.c.l.b16 %v4062
        %v4167 = vunpack.c.l.b16 %v4063
        %v4168 = vunpack.c.l.b16 %v4064
        %v4169 = vunpack.c.l.b16 %v4065
        %v4170 = vunpack.c.l.b16 %v4066
        %v4171 = vunpack.c.l.b16 %v4067
        %v4172 = vunpack.c.l.b16 %v4068
        %v4173 = vunpack.c.l.b16 %v4069
        %v4174 = vunpack.c.l.b16 %v4070
        %v4175 = vunpack.c.l.b16 %v4071
        %v4176 = vunpack.c.l.b16 %v4072
        %v4177 = vunpack.c.l.b16 %v4073
        %v4178 = vunpack.c.l.b16 %v4074
        %v4179 = vunpack.c.l.b16 %v4075
        %v4180 = vunpack.c.l.b16 %v4076
        %v4181 = vunpack.c.l.b16 %v4077
        %v4182 = vunpack.c.l.b16 %v4078
        %v4183 = vunpack.c.l.b16 %v4079
        %v4184 = vunpack.c.l.b16 %v4080
        %v4185 = vpack.c.b16 %v4162, %v4161
        %v4186 = vpack.c.b16 %v4164, %v4163
        %v4187 = vpack.c.b16 %v4166, %v4165
        %v4188 = vpack.c.b16 %v4168, %v4167
        %v4189 = vpack.c.b16 %v4170, %v4169
        %v4190 = vpack.c.b16 %v4172, %v4171
        %v4191 = vpack.c.b16 %v4174, %v4173
        %v4192 = vpack.c.b16 %v4176, %v4175
        %v4193 = vpack.c.b16 %v4178, %v4177
        %v4194 = vpack.c.b16 %v4180, %v4179
        %v4195 = vpack.c.b16 %v4182, %v4181
        %v4196 = vpack.c.b16 %v4184, %v4183
        %v4210 = vsel %vm1084, %v4114, 0
        %v4213 = vsel %vm1084, %v4116, 0
        %v4216 = vsel %vm1084, %v4118, 0
        %v4219 = vsel %vm1084, %v4120, 0
        %v4222 = vsel %vm1084, %v4122, 0
        %v4225 = vsel %vm1084, %v4124, 0
        %v4228 = vsel %vm1084, %v4126, 0
        %v4231 = vsel %vm1084, %v4128, 0
        %4233 = vmatpush.bf16.msra.mxu0 %v4192
        %4234 = vmatpush.bf16.msra.mxu0 %v4191
        %4235 = vmatpush.bf16.msra.mxu0 %v4190
        %4236 = vmatpush.bf16.msra.mxu0 %v4189
        %4237 = vmatpush.bf16.msra.mxu0 %v4188
        %4238 = vmatpush.bf16.msra.mxu0 %v4187
        %4239 = vmatpush.bf16.msra.mxu0 %v4186
        %4240 = vmatpush.bf16.msra.mxu0 %v4185
        %4241 = vmatmul.bf16.gmra.mxu0 %v4113
        %v4242 = vpop.f32.mrf.mxu0
        %v4243 = vadd.f32 0.0, %v4242
        %v4244 = vpop.f32.mrf.mxu0
        %v4245 = vadd.f32 0.0, %v4244
        %4246 = vmatmul.bf16.gmra.mxu0 %v4115
        %v4247 = vpop.f32.mrf.mxu0
        %v4248 = vadd.f32 0.0, %v4247
        %v4249 = vpop.f32.mrf.mxu0
        %v4250 = vadd.f32 0.0, %v4249
        %4251 = vmatmul.bf16.gmra.mxu0 %v4117
        %v4252 = vpop.f32.mrf.mxu0
        %v4253 = vadd.f32 0.0, %v4252
        %v4254 = vpop.f32.mrf.mxu0
        %v4255 = vadd.f32 0.0, %v4254
        %4256 = vmatmul.bf16.gmra.mxu0 %v4119
        %v4257 = vpop.f32.mrf.mxu0
        %v4258 = vadd.f32 0.0, %v4257
        %v4259 = vpop.f32.mrf.mxu0
        %v4260 = vadd.f32 0.0, %v4259
        %4261 = vmatmul.bf16.gmra.mxu0 %v4121
        %v4262 = vpop.f32.mrf.mxu0
        %v4263 = vadd.f32 0.0, %v4262
        %v4264 = vpop.f32.mrf.mxu0
        %v4265 = vadd.f32 0.0, %v4264
        %4266 = vmatmul.bf16.gmra.mxu0 %v4123
        %v4267 = vpop.f32.mrf.mxu0
        %v4268 = vadd.f32 0.0, %v4267
        %v4269 = vpop.f32.mrf.mxu0
        %v4270 = vadd.f32 0.0, %v4269
        %4271 = vmatmul.bf16.gmra.mxu0 %v4125
        %v4272 = vpop.f32.mrf.mxu0
        %v4273 = vadd.f32 0.0, %v4272
        %v4274 = vpop.f32.mrf.mxu0
        %v4275 = vadd.f32 0.0, %v4274
        %4276 = vmatmul.bf16.gmra.mxu0 %v4127
        %v4277 = vpop.f32.mrf.mxu0
        %v4278 = vadd.f32 0.0, %v4277
        %v4279 = vpop.f32.mrf.mxu0
        %v4280 = vadd.f32 0.0, %v4279
        %4281 = vdwg.mxu0
        %4282 = vmatpush.bf16.msra.mxu0 0
        %4283 = vmatpush.bf16.msra.mxu0 0
        %4284 = vmatpush.bf16.msra.mxu0 0
        %4285 = vmatpush.bf16.msra.mxu0 0
        %4286 = vmatpush.bf16.msra.mxu0 %v4196
        %4287 = vmatpush.bf16.msra.mxu0 %v4195
        %4288 = vmatpush.bf16.msra.mxu0 %v4194
        %4289 = vmatpush.bf16.msra.mxu0 %v4193
        %4290 = vmatmul.bf16.gmra.mxu0 %v4210
        %v4291 = vpop.f32.mrf.mxu0
        %v4292 = vadd.f32 %v4243, %v4291
        %v4293 = vpop.f32.mrf.mxu0
        %v4294 = vadd.f32 %v4245, %v4293
        %4295 = vmatmul.bf16.gmra.mxu0 %v4213
        %v4296 = vpop.f32.mrf.mxu0
        %v4297 = vadd.f32 %v4248, %v4296
        %v4298 = vpop.f32.mrf.mxu0
        %v4299 = vadd.f32 %v4250, %v4298
        %4300 = vmatmul.bf16.gmra.mxu0 %v4216
        %v4301 = vpop.f32.mrf.mxu0
        %v4302 = vadd.f32 %v4253, %v4301
        %v4303 = vpop.f32.mrf.mxu0
        %v4304 = vadd.f32 %v4255, %v4303
        %4305 = vmatmul.bf16.gmra.mxu0 %v4219
        %v4306 = vpop.f32.mrf.mxu0
        %v4307 = vadd.f32 %v4258, %v4306
        %v4308 = vpop.f32.mrf.mxu0
        %v4309 = vadd.f32 %v4260, %v4308
        %4310 = vmatmul.bf16.gmra.mxu0 %v4222
        %v4311 = vpop.f32.mrf.mxu0
        %v4312 = vadd.f32 %v4263, %v4311
        %v4313 = vpop.f32.mrf.mxu0
        %v4314 = vadd.f32 %v4265, %v4313
        %4315 = vmatmul.bf16.gmra.mxu0 %v4225
        %v4316 = vpop.f32.mrf.mxu0
        %v4317 = vadd.f32 %v4268, %v4316
        %v4318 = vpop.f32.mrf.mxu0
        %v4319 = vadd.f32 %v4270, %v4318
        %4320 = vmatmul.bf16.gmra.mxu0 %v4228
        %v4321 = vpop.f32.mrf.mxu0
        %v4322 = vadd.f32 %v4273, %v4321
        %v4323 = vpop.f32.mrf.mxu0
        %v4324 = vadd.f32 %v4275, %v4323
        %4325 = vmatmul.bf16.gmra.mxu0 %v4231
        %v4326 = vpop.f32.mrf.mxu0
        %v4327 = vadd.f32 %v4278, %v4326
        %v4328 = vpop.f32.mrf.mxu0
        %v4329 = vadd.f32 %v4280, %v4328
        %4330 = vdwg.mxu0
        %v4331 = vadd.f32 %v3822, %v4292
        %v4332 = vadd.f32 %v3824, %v4294
        %v4333 = vadd.f32 %v3827, %v4297
        %v4334 = vadd.f32 %v3829, %v4299
        %v4335 = vadd.f32 %v3832, %v4302
        %v4336 = vadd.f32 %v3834, %v4304
        %v4337 = vadd.f32 %v3837, %v4307
        %v4338 = vadd.f32 %v3839, %v4309
        %v4339 = vadd.f32 %v3842, %v4312
        %v4340 = vadd.f32 %v3844, %v4314
        %v4341 = vadd.f32 %v3847, %v4317
        %v4342 = vadd.f32 %v3849, %v4319
        %v4343 = vadd.f32 %v3852, %v4322
        %v4344 = vadd.f32 %v3854, %v4324
        %v4345 = vadd.f32 %v3857, %v4327
        %v4346 = vadd.f32 %v3859, %v4329
        %v4347 = vpack.c.bf16 %v4331, %v4331
        %v4348 = vpack.c.bf16 %v4332, %v4332
        %v4349 = vpack.c.bf16 %v4333, %v4333
        %v4350 = vpack.c.bf16 %v4334, %v4334
        %v4351 = vpack.c.bf16 %v4335, %v4335
        %v4352 = vpack.c.bf16 %v4336, %v4336
        %v4353 = vpack.c.bf16 %v4337, %v4337
        %v4354 = vpack.c.bf16 %v4338, %v4338
        %v4355 = vpack.c.bf16 %v4339, %v4339
        %v4356 = vpack.c.bf16 %v4340, %v4340
        %v4357 = vpack.c.bf16 %v4341, %v4341
        %v4358 = vpack.c.bf16 %v4342, %v4342
        %v4359 = vpack.c.bf16 %v4343, %v4343
        %v4360 = vpack.c.bf16 %v4344, %v4344
        %v4361 = vpack.c.bf16 %v4345, %v4345
        %v4362 = vpack.c.bf16 %v4346, %v4346
        %4363 = vst [vmem:[%s851 + $0x80] sm:$0xf] %v4347
        %4364 = vst [vmem:[%s851 + $0x84] sm:$0xf] %v4348
        %4365 = vst [vmem:[%s851 + $0x88] sm:$0xf] %v4349
        %4366 = vst [vmem:[%s851 + $0x8c] sm:$0xf] %v4350
        %4367 = vst [vmem:[%s851 + $0x90] sm:$0xf] %v4351
        %4368 = vst [vmem:[%s851 + $0x94] sm:$0xf] %v4352
        %4369 = vst [vmem:[%s851 + $0x98] sm:$0xf] %v4353
        %4370 = vst [vmem:[%s851 + $0x9c] sm:$0xf] %v4354
        %4371 = vst [vmem:[%s851 + $0xa0] sm:$0xf] %v4355
        %4372 = vst [vmem:[%s851 + $0xa4] sm:$0xf] %v4356
        %4373 = vst [vmem:[%s851 + $0xa8] sm:$0xf] %v4357
        %4374 = vst [vmem:[%s851 + $0xac] sm:$0xf] %v4358
        %4375 = vst [vmem:[%s851 + $0xb0] sm:$0xf] %v4359
        %4376 = vst [vmem:[%s851 + $0xb4] sm:$0xf] %v4360
        %4377 = vst [vmem:[%s851 + $0xb8] sm:$0xf] %v4361
        %4378 = vst [vmem:[%s851 + $0xbc] sm:$0xf] %v4362
        %v4379 = vadd.f32 %v4331, %v4332
        %v4380 = vadd.f32 %v4379, %v4333
        %v4381 = vadd.f32 %v4380, %v4334
        %v4382 = vadd.f32 %v4381, %v4335
        %v4383 = vadd.f32 %v4382, %v4336
        %v4384 = vadd.f32 %v4383, %v4337
        %v4385 = vadd.f32 %v4384, %v4338
        %v4386 = vadd.f32 %v4385, %v4339
        %v4387 = vadd.f32 %v4386, %v4340
        %v4388 = vadd.f32 %v4387, %v4341
        %v4389 = vadd.f32 %v4388, %v4342
        %v4390 = vadd.f32 %v4389, %v4343
        %v4391 = vadd.f32 %v4390, %v4344
        %v4392 = vadd.f32 %v4391, %v4345
        %v4393 = vadd.f32 %v4392, %v4346
        %v4394 = vrot.slane %v4393, 4
        %v4395 = vadd.f32 %v4393, %v4394
        %v4396 = vrot.slane %v4395, 2
        %v4397 = vadd.f32 %v4395, %v4396
        %v4398 = vrot.slane %v4397, 1
        %v4399 = vadd.f32 %v4397, %v4398
        %v4400 = vadd.f32 %v3208, %v4399
        %v4401 = vmul.f32 %v4331, %v4331
        %v4402 = vmul.f32 %v4332, %v4332
        %v4403 = vmul.f32 %v4333, %v4333
        %v4404 = vmul.f32 %v4334, %v4334
        %v4405 = vmul.f32 %v4335, %v4335
        %v4406 = vmul.f32 %v4336, %v4336
        %v4407 = vmul.f32 %v4337, %v4337
        %v4408 = vmul.f32 %v4338, %v4338
        %v4409 = vmul.f32 %v4339, %v4339
        %v4410 = vmul.f32 %v4340, %v4340
        %v4411 = vmul.f32 %v4341, %v4341
        %v4412 = vmul.f32 %v4342, %v4342
        %v4413 = vmul.f32 %v4343, %v4343
        %v4414 = vmul.f32 %v4344, %v4344
        %v4415 = vmul.f32 %v4345, %v4345
        %v4416 = vmul.f32 %v4346, %v4346
        %v4417 = vadd.f32 %v4401, %v4402
        %v4418 = vadd.f32 %v4417, %v4403
        %v4419 = vadd.f32 %v4418, %v4404
        %v4420 = vadd.f32 %v4419, %v4405
        %v4421 = vadd.f32 %v4420, %v4406
        %v4422 = vadd.f32 %v4421, %v4407
        %v4423 = vadd.f32 %v4422, %v4408
        %v4424 = vadd.f32 %v4423, %v4409
        %v4425 = vadd.f32 %v4424, %v4410
        %v4426 = vadd.f32 %v4425, %v4411
        %v4427 = vadd.f32 %v4426, %v4412
        %v4428 = vadd.f32 %v4427, %v4413
        %v4429 = vadd.f32 %v4428, %v4414
        %v4430 = vadd.f32 %v4429, %v4415
        %v4431 = vadd.f32 %v4430, %v4416
        %v4432 = vrot.slane %v4431, 4
        %v4433 = vadd.f32 %v4431, %v4432
        %v4434 = vrot.slane %v4433, 2
        %v4435 = vadd.f32 %v4433, %v4434
        %v4436 = vrot.slane %v4435, 1
        %v4437 = vadd.f32 %v4435, %v4436
        %v4438 = vadd.f32 %v3246, %v4437
        %s4439 = scalar_lea.vmem %s821, 480 [#allocation2]
        %v4440 = vld [vmem:[%s4439] sm:$0xff]
        %v4441 = vld [vmem:[%s4439 + $0x8] sm:$0xff]
        %v4442 = vld [vmem:[%s4439 + $0x10] sm:$0xff]
        %v4443 = vld [vmem:[%s4439 + $0x18] sm:$0xff]
        %v4444 = vld [vmem:[%s4439 + $0x28] sm:$0xff]
        %v4445 = vld [vmem:[%s4439 + $0x30] sm:$0xff]
        %v4446 = vld [vmem:[%s4439 + $0x38] sm:$0xff]
        %v4447 = vld [vmem:[%s4439 + $0x40] sm:$0xff]
        %v4448 = vld [vmem:[%s4439 + $0x50] sm:$0xff]
        %v4449 = vld [vmem:[%s4439 + $0x58] sm:$0xff]
        %v4450 = vld [vmem:[%s4439 + $0x60] sm:$0xff]
        %v4451 = vld [vmem:[%s4439 + $0x68] sm:$0xff]
        %v4452 = vld [vmem:[%s4439 + $0x78] sm:$0xff]
        %v4453 = vld [vmem:[%s4439 + $0x80] sm:$0xff]
        %v4454 = vld [vmem:[%s4439 + $0x88] sm:$0xff]
        %v4455 = vld [vmem:[%s4439 + $0x90] sm:$0xff]
        %v4456 = vld [vmem:[%s1] sm:$0xf]
        %v4457 = vld [vmem:[%s1 + $0x4] sm:$0xf]
        %v4458 = vld [vmem:[%s1 + $0x8] sm:$0xf]
        %v4459 = vld [vmem:[%s1 + $0xc] sm:$0xf]
        %v4460 = vld [vmem:[%s1 + $0x10] sm:$0xf]
        %v4461 = vld [vmem:[%s1 + $0x14] sm:$0xf]
        %v4462 = vld [vmem:[%s1 + $0x18] sm:$0xf]
        %v4463 = vld [vmem:[%s1 + $0x1c] sm:$0xf]
        %v4464 = vld [vmem:[%s1 + $0x20] sm:$0xf]
        %v4465 = vld [vmem:[%s1 + $0x24] sm:$0xf]
        %v4466 = vld [vmem:[%s1 + $0x28] sm:$0xf]
        %v4467 = vld [vmem:[%s1 + $0x2c] sm:$0xf]
        %v4468 = vld [vmem:[%s1 + $0x30] sm:$0xf]
        %v4469 = vld [vmem:[%s1 + $0x34] sm:$0xf]
        %v4470 = vld [vmem:[%s1 + $0x38] sm:$0xf]
        %v4471 = vld [vmem:[%s1 + $0x3c] sm:$0xf]
        %v4472 = vld [vmem:[%s1 + $0x40] sm:$0xf]
        %v4473 = vld [vmem:[%s1 + $0x44] sm:$0xf]
        %v4474 = vld [vmem:[%s1 + $0x48] sm:$0xf]
        %v4475 = vld [vmem:[%s1 + $0x4c] sm:$0xf]
        %v4476 = vld [vmem:[%s1 + $0x50] sm:$0xf]
        %v4477 = vld [vmem:[%s1 + $0x54] sm:$0xf]
        %v4478 = vld [vmem:[%s1 + $0x58] sm:$0xf]
        %v4479 = vld [vmem:[%s1 + $0x5c] sm:$0xf]
        %s4480 = scalar_lea.vmem %s821, 1120 [#allocation2]
        %v4481 = vld [vmem:[%s4480] sm:$0xff]
        %v4482 = vld [vmem:[%s4480 + $0x8] sm:$0xff]
        %v4483 = vld [vmem:[%s4480 + $0x10] sm:$0xff]
        %v4484 = vld [vmem:[%s4480 + $0x18] sm:$0xff]
        %v4485 = vld [vmem:[%s4480 + $0x28] sm:$0xff]
        %v4486 = vld [vmem:[%s4480 + $0x30] sm:$0xff]
        %v4487 = vld [vmem:[%s4480 + $0x38] sm:$0xff]
        %v4488 = vld [vmem:[%s4480 + $0x40] sm:$0xff]
        %v4489 = vld [vmem:[%s4480 + $0x50] sm:$0xff]
        %v4490 = vld [vmem:[%s4480 + $0x58] sm:$0xff]
        %v4491 = vld [vmem:[%s4480 + $0x60] sm:$0xff]
        %v4492 = vld [vmem:[%s4480 + $0x68] sm:$0xff]
        %v4493 = vld [vmem:[%s4480 + $0x78] sm:$0xff]
        %v4494 = vld [vmem:[%s4480 + $0x80] sm:$0xff]
        %v4495 = vld [vmem:[%s4480 + $0x88] sm:$0xff]
        %v4496 = vld [vmem:[%s4480 + $0x90] sm:$0xff]
        %v4497 = vld [vmem:[%s915] sm:$0xf]
        %v4498 = vld [vmem:[%s915 + $0x4] sm:$0xf]
        %v4499 = vld [vmem:[%s915 + $0x8] sm:$0xf]
        %v4500 = vld [vmem:[%s915 + $0xc] sm:$0xf]
        %v4501 = vld [vmem:[%s915 + $0x10] sm:$0xf]
        %v4502 = vld [vmem:[%s915 + $0x14] sm:$0xf]
        %v4503 = vld [vmem:[%s915 + $0x18] sm:$0xf]
        %v4504 = vld [vmem:[%s915 + $0x1c] sm:$0xf]
        %v4505 = vld [vmem:[%s915 + $0x20] sm:$0xf]
        %v4506 = vld [vmem:[%s915 + $0x24] sm:$0xf]
        %v4507 = vld [vmem:[%s915 + $0x28] sm:$0xf]
        %v4508 = vld [vmem:[%s915 + $0x2c] sm:$0xf]
        %v4509 = vld [vmem:[%s915 + $0x30] sm:$0xf]
        %v4510 = vld [vmem:[%s915 + $0x34] sm:$0xf]
        %v4511 = vld [vmem:[%s915 + $0x38] sm:$0xf]
        %v4512 = vld [vmem:[%s915 + $0x3c] sm:$0xf]
        %v4513 = vld [vmem:[%s915 + $0x40] sm:$0xf]
        %v4514 = vld [vmem:[%s915 + $0x44] sm:$0xf]
        %v4515 = vld [vmem:[%s915 + $0x48] sm:$0xf]
        %v4516 = vld [vmem:[%s915 + $0x4c] sm:$0xf]
        %v4517 = vld [vmem:[%s915 + $0x50] sm:$0xf]
        %v4518 = vld [vmem:[%s915 + $0x54] sm:$0xf]
        %v4519 = vld [vmem:[%s915 + $0x58] sm:$0xf]
        %v4520 = vld [vmem:[%s915 + $0x5c] sm:$0xf]
        %v4537 = vunpack.c.l.b16 %v4481
        %v4538 = vunpack.c.h.b16 %v4481
        %v4539 = vunpack.c.l.b16 %v4482
        %v4540 = vunpack.c.h.b16 %v4482
        %v4541 = vunpack.c.l.b16 %v4483
        %v4542 = vunpack.c.h.b16 %v4483
        %v4543 = vunpack.c.l.b16 %v4484
        %v4544 = vunpack.c.h.b16 %v4484
        %v4545 = vunpack.c.l.b16 %v4485
        %v4546 = vunpack.c.h.b16 %v4485
        %v4547 = vunpack.c.l.b16 %v4486
        %v4548 = vunpack.c.h.b16 %v4486
        %v4549 = vunpack.c.l.b16 %v4487
        %v4550 = vunpack.c.h.b16 %v4487
        %v4551 = vunpack.c.l.b16 %v4488
        %v4552 = vunpack.c.h.b16 %v4488
        %v4553 = vunpack.c.l.b16 %v4489
        %v4554 = vunpack.c.h.b16 %v4489
        %v4555 = vunpack.c.l.b16 %v4490
        %v4556 = vunpack.c.h.b16 %v4490
        %v4557 = vunpack.c.l.b16 %v4491
        %v4558 = vunpack.c.h.b16 %v4491
        %v4559 = vunpack.c.l.b16 %v4492
        %v4560 = vunpack.c.h.b16 %v4492
        %v4561 = vunpack.c.l.b16 %v4493
        %v4562 = vunpack.c.h.b16 %v4493
        %v4563 = vunpack.c.l.b16 %v4494
        %v4564 = vunpack.c.h.b16 %v4494
        %v4565 = vunpack.c.l.b16 %v4495
        %v4566 = vunpack.c.h.b16 %v4495
        %v4567 = vunpack.c.l.b16 %v4496
        %v4568 = vunpack.c.h.b16 %v4496
        %v4569 = vpack.c.b16 %v4539, %v4537
        %v4570 = vpack.c.b16 %v4540, %v4538
        %v4571 = vpack.c.b16 %v4543, %v4541
        %v4572 = vpack.c.b16 %v4544, %v4542
        %v4573 = vpack.c.b16 %v4547, %v4545
        %v4574 = vpack.c.b16 %v4548, %v4546
        %v4575 = vpack.c.b16 %v4551, %v4549
        %v4576 = vpack.c.b16 %v4552, %v4550
        %v4577 = vpack.c.b16 %v4555, %v4553
        %v4578 = vpack.c.b16 %v4556, %v4554
        %v4579 = vpack.c.b16 %v4559, %v4557
        %v4580 = vpack.c.b16 %v4560, %v4558
        %v4581 = vpack.c.b16 %v4563, %v4561
        %v4582 = vpack.c.b16 %v4564, %v4562
        %v4583 = vpack.c.b16 %v4567, %v4565
        %v4584 = vpack.c.b16 %v4568, %v4566
        %v4617 = vunpack.c.l.b16 %v4497
        %v4618 = vunpack.c.l.b16 %v4498
        %v4619 = vunpack.c.l.b16 %v4499
        %v4620 = vunpack.c.l.b16 %v4500
        %v4621 = vunpack.c.l.b16 %v4501
        %v4622 = vunpack.c.l.b16 %v4502
        %v4623 = vunpack.c.l.b16 %v4503
        %v4624 = vunpack.c.l.b16 %v4504
        %v4625 = vunpack.c.l.b16 %v4505
        %v4626 = vunpack.c.l.b16 %v4506
        %v4627 = vunpack.c.l.b16 %v4507
        %v4628 = vunpack.c.l.b16 %v4508
        %v4629 = vunpack.c.l.b16 %v4509
        %v4630 = vunpack.c.l.b16 %v4510
        %v4631 = vunpack.c.l.b16 %v4511
        %v4632 = vunpack.c.l.b16 %v4512
        %v4633 = vunpack.c.l.b16 %v4513
        %v4634 = vunpack.c.l.b16 %v4514
        %v4635 = vunpack.c.l.b16 %v4515
        %v4636 = vunpack.c.l.b16 %v4516
        %v4637 = vunpack.c.l.b16 %v4517
        %v4638 = vunpack.c.l.b16 %v4518
        %v4639 = vunpack.c.l.b16 %v4519
        %v4640 = vunpack.c.l.b16 %v4520
        %v4641 = vpack.c.b16 %v4618, %v4617
        %v4642 = vpack.c.b16 %v4620, %v4619
        %v4643 = vpack.c.b16 %v4622, %v4621
        %v4644 = vpack.c.b16 %v4624, %v4623
        %v4645 = vpack.c.b16 %v4626, %v4625
        %v4646 = vpack.c.b16 %v4628, %v4627
        %v4647 = vpack.c.b16 %v4630, %v4629
        %v4648 = vpack.c.b16 %v4632, %v4631
        %v4649 = vpack.c.b16 %v4634, %v4633
        %v4650 = vpack.c.b16 %v4636, %v4635
        %v4651 = vpack.c.b16 %v4638, %v4637
        %v4652 = vpack.c.b16 %v4640, %v4639
        %v4666 = vsel %vm1084, %v4570, 0
        %v4669 = vsel %vm1084, %v4572, 0
        %v4672 = vsel %vm1084, %v4574, 0
        %v4675 = vsel %vm1084, %v4576, 0
        %v4678 = vsel %vm1084, %v4578, 0
        %v4681 = vsel %vm1084, %v4580, 0
        %v4684 = vsel %vm1084, %v4582, 0
        %v4687 = vsel %vm1084, %v4584, 0
        %4689 = vmatpush.bf16.msra.mxu0 %v4648
        %4690 = vmatpush.bf16.msra.mxu0 %v4647
        %4691 = vmatpush.bf16.msra.mxu0 %v4646
        %4692 = vmatpush.bf16.msra.mxu0 %v4645
        %4693 = vmatpush.bf16.msra.mxu0 %v4644
        %4694 = vmatpush.bf16.msra.mxu0 %v4643
        %4695 = vmatpush.bf16.msra.mxu0 %v4642
        %4696 = vmatpush.bf16.msra.mxu0 %v4641
        %4697 = vmatmul.bf16.gmra.mxu0 %v4569
        %v4698 = vpop.f32.mrf.mxu0
        %v4699 = vadd.f32 0.0, %v4698
        %v4700 = vpop.f32.mrf.mxu0
        %v4701 = vadd.f32 0.0, %v4700
        %4702 = vmatmul.bf16.gmra.mxu0 %v4571
        %v4703 = vpop.f32.mrf.mxu0
        %v4704 = vadd.f32 0.0, %v4703
        %v4705 = vpop.f32.mrf.mxu0
        %v4706 = vadd.f32 0.0, %v4705
        %4707 = vmatmul.bf16.gmra.mxu0 %v4573
        %v4708 = vpop.f32.mrf.mxu0
        %v4709 = vadd.f32 0.0, %v4708
        %v4710 = vpop.f32.mrf.mxu0
        %v4711 = vadd.f32 0.0, %v4710
        %4712 = vmatmul.bf16.gmra.mxu0 %v4575
        %v4713 = vpop.f32.mrf.mxu0
        %v4714 = vadd.f32 0.0, %v4713
        %v4715 = vpop.f32.mrf.mxu0
        %v4716 = vadd.f32 0.0, %v4715
        %4717 = vmatmul.bf16.gmra.mxu0 %v4577
        %v4718 = vpop.f32.mrf.mxu0
        %v4719 = vadd.f32 0.0, %v4718
        %v4720 = vpop.f32.mrf.mxu0
        %v4721 = vadd.f32 0.0, %v4720
        %4722 = vmatmul.bf16.gmra.mxu0 %v4579
        %v4723 = vpop.f32.mrf.mxu0
        %v4724 = vadd.f32 0.0, %v4723
        %v4725 = vpop.f32.mrf.mxu0
        %v4726 = vadd.f32 0.0, %v4725
        %4727 = vmatmul.bf16.gmra.mxu0 %v4581
        %v4728 = vpop.f32.mrf.mxu0
        %v4729 = vadd.f32 0.0, %v4728
        %v4730 = vpop.f32.mrf.mxu0
        %v4731 = vadd.f32 0.0, %v4730
        %4732 = vmatmul.bf16.gmra.mxu0 %v4583
        %v4733 = vpop.f32.mrf.mxu0
        %v4734 = vadd.f32 0.0, %v4733
        %v4735 = vpop.f32.mrf.mxu0
        %v4736 = vadd.f32 0.0, %v4735
        %4737 = vdwg.mxu0
        %4738 = vmatpush.bf16.msra.mxu0 0
        %4739 = vmatpush.bf16.msra.mxu0 0
        %4740 = vmatpush.bf16.msra.mxu0 0
        %4741 = vmatpush.bf16.msra.mxu0 0
        %4742 = vmatpush.bf16.msra.mxu0 %v4652
        %4743 = vmatpush.bf16.msra.mxu0 %v4651
        %4744 = vmatpush.bf16.msra.mxu0 %v4650
        %4745 = vmatpush.bf16.msra.mxu0 %v4649
        %4746 = vmatmul.bf16.gmra.mxu0 %v4666
        %v4747 = vpop.f32.mrf.mxu0
        %v4748 = vadd.f32 %v4699, %v4747
        %v4749 = vpop.f32.mrf.mxu0
        %v4750 = vadd.f32 %v4701, %v4749
        %4751 = vmatmul.bf16.gmra.mxu0 %v4669
        %v4752 = vpop.f32.mrf.mxu0
        %v4753 = vadd.f32 %v4704, %v4752
        %v4754 = vpop.f32.mrf.mxu0
        %v4755 = vadd.f32 %v4706, %v4754
        %4756 = vmatmul.bf16.gmra.mxu0 %v4672
        %v4757 = vpop.f32.mrf.mxu0
        %v4758 = vadd.f32 %v4709, %v4757
        %v4759 = vpop.f32.mrf.mxu0
        %v4760 = vadd.f32 %v4711, %v4759
        %4761 = vmatmul.bf16.gmra.mxu0 %v4675
        %v4762 = vpop.f32.mrf.mxu0
        %v4763 = vadd.f32 %v4714, %v4762
        %v4764 = vpop.f32.mrf.mxu0
        %v4765 = vadd.f32 %v4716, %v4764
        %4766 = vmatmul.bf16.gmra.mxu0 %v4678
        %v4767 = vpop.f32.mrf.mxu0
        %v4768 = vadd.f32 %v4719, %v4767
        %v4769 = vpop.f32.mrf.mxu0
        %v4770 = vadd.f32 %v4721, %v4769
        %4771 = vmatmul.bf16.gmra.mxu0 %v4681
        %v4772 = vpop.f32.mrf.mxu0
        %v4773 = vadd.f32 %v4724, %v4772
        %v4774 = vpop.f32.mrf.mxu0
        %v4775 = vadd.f32 %v4726, %v4774
        %4776 = vmatmul.bf16.gmra.mxu0 %v4684
        %v4777 = vpop.f32.mrf.mxu0
        %v4778 = vadd.f32 %v4729, %v4777
        %v4779 = vpop.f32.mrf.mxu0
        %v4780 = vadd.f32 %v4731, %v4779
        %4781 = vmatmul.bf16.gmra.mxu0 %v4687
        %v4782 = vpop.f32.mrf.mxu0
        %v4783 = vadd.f32 %v4734, %v4782
        %v4784 = vpop.f32.mrf.mxu0
        %v4785 = vadd.f32 %v4736, %v4784
        %4786 = vdwg.mxu0
        %v4803 = vunpack.c.l.b16 %v4440
        %v4804 = vunpack.c.h.b16 %v4440
        %v4805 = vunpack.c.l.b16 %v4441
        %v4806 = vunpack.c.h.b16 %v4441
        %v4807 = vunpack.c.l.b16 %v4442
        %v4808 = vunpack.c.h.b16 %v4442
        %v4809 = vunpack.c.l.b16 %v4443
        %v4810 = vunpack.c.h.b16 %v4443
        %v4811 = vunpack.c.l.b16 %v4444
        %v4812 = vunpack.c.h.b16 %v4444
        %v4813 = vunpack.c.l.b16 %v4445
        %v4814 = vunpack.c.h.b16 %v4445
        %v4815 = vunpack.c.l.b16 %v4446
        %v4816 = vunpack.c.h.b16 %v4446
        %v4817 = vunpack.c.l.b16 %v4447
        %v4818 = vunpack.c.h.b16 %v4447
        %v4819 = vunpack.c.l.b16 %v4448
        %v4820 = vunpack.c.h.b16 %v4448
        %v4821 = vunpack.c.l.b16 %v4449
        %v4822 = vunpack.c.h.b16 %v4449
        %v4823 = vunpack.c.l.b16 %v4450
        %v4824 = vunpack.c.h.b16 %v4450
        %v4825 = vunpack.c.l.b16 %v4451
        %v4826 = vunpack.c.h.b16 %v4451
        %v4827 = vunpack.c.l.b16 %v4452
        %v4828 = vunpack.c.h.b16 %v4452
        %v4829 = vunpack.c.l.b16 %v4453
        %v4830 = vunpack.c.h.b16 %v4453
        %v4831 = vunpack.c.l.b16 %v4454
        %v4832 = vunpack.c.h.b16 %v4454
        %v4833 = vunpack.c.l.b16 %v4455
        %v4834 = vunpack.c.h.b16 %v4455
        %v4835 = vpack.c.b16 %v4805, %v4803
        %v4836 = vpack.c.b16 %v4806, %v4804
        %v4837 = vpack.c.b16 %v4809, %v4807
        %v4838 = vpack.c.b16 %v4810, %v4808
        %v4839 = vpack.c.b16 %v4813, %v4811
        %v4840 = vpack.c.b16 %v4814, %v4812
        %v4841 = vpack.c.b16 %v4817, %v4815
        %v4842 = vpack.c.b16 %v4818, %v4816
        %v4843 = vpack.c.b16 %v4821, %v4819
        %v4844 = vpack.c.b16 %v4822, %v4820
        %v4845 = vpack.c.b16 %v4825, %v4823
        %v4846 = vpack.c.b16 %v4826, %v4824
        %v4847 = vpack.c.b16 %v4829, %v4827
        %v4848 = vpack.c.b16 %v4830, %v4828
        %v4849 = vpack.c.b16 %v4833, %v4831
        %v4850 = vpack.c.b16 %v4834, %v4832
        %v4883 = vunpack.c.l.b16 %v4456
        %v4884 = vunpack.c.l.b16 %v4457
        %v4885 = vunpack.c.l.b16 %v4458
        %v4886 = vunpack.c.l.b16 %v4459
        %v4887 = vunpack.c.l.b16 %v4460
        %v4888 = vunpack.c.l.b16 %v4461
        %v4889 = vunpack.c.l.b16 %v4462
        %v4890 = vunpack.c.l.b16 %v4463
        %v4891 = vunpack.c.l.b16 %v4464
        %v4892 = vunpack.c.l.b16 %v4465
        %v4893 = vunpack.c.l.b16 %v4466
        %v4894 = vunpack.c.l.b16 %v4467
        %v4895 = vunpack.c.l.b16 %v4468
        %v4896 = vunpack.c.l.b16 %v4469
        %v4897 = vunpack.c.l.b16 %v4470
        %v4898 = vunpack.c.l.b16 %v4471
        %v4899 = vunpack.c.l.b16 %v4472
        %v4900 = vunpack.c.l.b16 %v4473
        %v4901 = vunpack.c.l.b16 %v4474
        %v4902 = vunpack.c.l.b16 %v4475
        %v4903 = vunpack.c.l.b16 %v4476
        %v4904 = vunpack.c.l.b16 %v4477
        %v4905 = vunpack.c.l.b16 %v4478
        %v4906 = vunpack.c.l.b16 %v4479
        %v4907 = vpack.c.b16 %v4884, %v4883
        %v4908 = vpack.c.b16 %v4886, %v4885
        %v4909 = vpack.c.b16 %v4888, %v4887
        %v4910 = vpack.c.b16 %v4890, %v4889
        %v4911 = vpack.c.b16 %v4892, %v4891
        %v4912 = vpack.c.b16 %v4894, %v4893
        %v4913 = vpack.c.b16 %v4896, %v4895
        %v4914 = vpack.c.b16 %v4898, %v4897
        %v4915 = vpack.c.b16 %v4900, %v4899
        %v4916 = vpack.c.b16 %v4902, %v4901
        %v4917 = vpack.c.b16 %v4904, %v4903
        %v4918 = vpack.c.b16 %v4906, %v4905
        %v4932 = vsel %vm1084, %v4836, 0
        %v4935 = vsel %vm1084, %v4838, 0
        %v4938 = vsel %vm1084, %v4840, 0
        %v4941 = vsel %vm1084, %v4842, 0
        %v4944 = vsel %vm1084, %v4844, 0
        %v4947 = vsel %vm1084, %v4846, 0
        %v4950 = vsel %vm1084, %v4848, 0
        %v4953 = vsel %vm1084, %v4850, 0
        %4955 = vmatpush.bf16.msra.mxu0 %v4914
        %4956 = vmatpush.bf16.msra.mxu0 %v4913
        %4957 = vmatpush.bf16.msra.mxu0 %v4912
        %4958 = vmatpush.bf16.msra.mxu0 %v4911
        %4959 = vmatpush.bf16.msra.mxu0 %v4910
        %4960 = vmatpush.bf16.msra.mxu0 %v4909
        %4961 = vmatpush.bf16.msra.mxu0 %v4908
        %4962 = vmatpush.bf16.msra.mxu0 %v4907
        %4963 = vmatmul.bf16.gmra.mxu0 %v4835
        %v4964 = vpop.f32.mrf.mxu0
        %v4965 = vadd.f32 %v4748, %v4964
        %v4966 = vpop.f32.mrf.mxu0
        %v4967 = vadd.f32 %v4750, %v4966
        %4968 = vmatmul.bf16.gmra.mxu0 %v4837
        %v4969 = vpop.f32.mrf.mxu0
        %v4970 = vadd.f32 %v4753, %v4969
        %v4971 = vpop.f32.mrf.mxu0
        %v4972 = vadd.f32 %v4755, %v4971
        %4973 = vmatmul.bf16.gmra.mxu0 %v4839
        %v4974 = vpop.f32.mrf.mxu0
        %v4975 = vadd.f32 %v4758, %v4974
        %v4976 = vpop.f32.mrf.mxu0
        %v4977 = vadd.f32 %v4760, %v4976
        %4978 = vmatmul.bf16.gmra.mxu0 %v4841
        %v4979 = vpop.f32.mrf.mxu0
        %v4980 = vadd.f32 %v4763, %v4979
        %v4981 = vpop.f32.mrf.mxu0
        %v4982 = vadd.f32 %v4765, %v4981
        %4983 = vmatmul.bf16.gmra.mxu0 %v4843
        %v4984 = vpop.f32.mrf.mxu0
        %v4985 = vadd.f32 %v4768, %v4984
        %v4986 = vpop.f32.mrf.mxu0
        %v4987 = vadd.f32 %v4770, %v4986
        %4988 = vmatmul.bf16.gmra.mxu0 %v4845
        %v4989 = vpop.f32.mrf.mxu0
        %v4990 = vadd.f32 %v4773, %v4989
        %v4991 = vpop.f32.mrf.mxu0
        %v4992 = vadd.f32 %v4775, %v4991
        %4993 = vmatmul.bf16.gmra.mxu0 %v4847
        %v4994 = vpop.f32.mrf.mxu0
        %v4995 = vadd.f32 %v4778, %v4994
        %v4996 = vpop.f32.mrf.mxu0
        %v4997 = vadd.f32 %v4780, %v4996
        %4998 = vmatmul.bf16.gmra.mxu0 %v4849
        %v4999 = vpop.f32.mrf.mxu0
        %v5000 = vadd.f32 %v4783, %v4999
        %v5001 = vpop.f32.mrf.mxu0
        %v5002 = vadd.f32 %v4785, %v5001
        %5003 = vdwg.mxu0
        %5004 = vmatpush.bf16.msra.mxu0 0
        %5005 = vmatpush.bf16.msra.mxu0 0
        %5006 = vmatpush.bf16.msra.mxu0 0
        %5007 = vmatpush.bf16.msra.mxu0 0
        %5008 = vmatpush.bf16.msra.mxu0 %v4918
        %5009 = vmatpush.bf16.msra.mxu0 %v4917
        %5010 = vmatpush.bf16.msra.mxu0 %v4916
        %5011 = vmatpush.bf16.msra.mxu0 %v4915
        %5012 = vmatmul.bf16.gmra.mxu0 %v4932
        %v5013 = vpop.f32.mrf.mxu0
        %v5014 = vadd.f32 %v4965, %v5013
        %v5015 = vpop.f32.mrf.mxu0
        %v5016 = vadd.f32 %v4967, %v5015
        %5017 = vmatmul.bf16.gmra.mxu0 %v4935
        %v5018 = vpop.f32.mrf.mxu0
        %v5019 = vadd.f32 %v4970, %v5018
        %v5020 = vpop.f32.mrf.mxu0
        %v5021 = vadd.f32 %v4972, %v5020
        %5022 = vmatmul.bf16.gmra.mxu0 %v4938
        %v5023 = vpop.f32.mrf.mxu0
        %v5024 = vadd.f32 %v4975, %v5023
        %v5025 = vpop.f32.mrf.mxu0
        %v5026 = vadd.f32 %v4977, %v5025
        %5027 = vmatmul.bf16.gmra.mxu0 %v4941
        %v5028 = vpop.f32.mrf.mxu0
        %v5029 = vadd.f32 %v4980, %v5028
        %v5030 = vpop.f32.mrf.mxu0
        %v5031 = vadd.f32 %v4982, %v5030
        %5032 = vmatmul.bf16.gmra.mxu0 %v4944
        %v5033 = vpop.f32.mrf.mxu0
        %v5034 = vadd.f32 %v4985, %v5033
        %v5035 = vpop.f32.mrf.mxu0
        %v5036 = vadd.f32 %v4987, %v5035
        %5037 = vmatmul.bf16.gmra.mxu0 %v4947
        %v5038 = vpop.f32.mrf.mxu0
        %v5039 = vadd.f32 %v4990, %v5038
        %v5040 = vpop.f32.mrf.mxu0
        %v5041 = vadd.f32 %v4992, %v5040
        %5042 = vmatmul.bf16.gmra.mxu0 %v4950
        %v5043 = vpop.f32.mrf.mxu0
        %v5044 = vadd.f32 %v4995, %v5043
        %v5045 = vpop.f32.mrf.mxu0
        %v5046 = vadd.f32 %v4997, %v5045
        %5047 = vmatmul.bf16.gmra.mxu0 %v4953
        %v5048 = vpop.f32.mrf.mxu0
        %v5049 = vadd.f32 %v5000, %v5048
        %v5050 = vpop.f32.mrf.mxu0
        %v5051 = vadd.f32 %v5002, %v5050
        %5052 = vdwg.mxu0
        %v5053 = vld [vmem:[%s4439] sm:$0xff]
        %v5054 = vld [vmem:[%s4439 + $0x8] sm:$0xff]
        %v5055 = vld [vmem:[%s4439 + $0x10] sm:$0xff]
        %v5056 = vld [vmem:[%s4439 + $0x18] sm:$0xff]
        %v5057 = vld [vmem:[%s4439 + $0x20] sm:$0x11]
        %v5058 = vld [vmem:[%s4439 + $0x28] sm:$0xff]
        %v5059 = vld [vmem:[%s4439 + $0x30] sm:$0xff]
        %v5060 = vld [vmem:[%s4439 + $0x38] sm:$0xff]
        %v5061 = vld [vmem:[%s4439 + $0x40] sm:$0xff]
        %v5062 = vld [vmem:[%s4439 + $0x48] sm:$0x11]
        %v5063 = vld [vmem:[%s4439 + $0x50] sm:$0xff]
        %v5064 = vld [vmem:[%s4439 + $0x58] sm:$0xff]
        %v5065 = vld [vmem:[%s4439 + $0x60] sm:$0xff]
        %v5066 = vld [vmem:[%s4439 + $0x68] sm:$0xff]
        %v5067 = vld [vmem:[%s4439 + $0x70] sm:$0x11]
        %v5068 = vld [vmem:[%s4439 + $0x78] sm:$0xff]
        %v5069 = vld [vmem:[%s4439 + $0x80] sm:$0xff]
        %v5070 = vld [vmem:[%s4439 + $0x88] sm:$0xff]
        %v5071 = vld [vmem:[%s4439 + $0x90] sm:$0xff]
        %v5072 = vld [vmem:[%s4439 + $0x98] sm:$0x11]
        %v5074 = vshrl.u32 %v5053, 16
        %v5076 = vrot.slane %v5074, 4
        %v5077 = vshll.u32 %v5053, 16
        %v5079 = vrot.slane %v5077, 5
        %v5080 = vor.u32 %v5076, %v5079
        %v5081 = vrot.slane %v5080, 4
        %v5083 = vshll.u32 %v5054, 16
        %v5085 = vrot.slane %v5083, 5
        %v5086 = vsel %vm1495, %v5081, %v5085
        %v5087 = vshrl.u32 %v5054, 16
        %v5089 = vrot.slane %v5087, 4
        %v5090 = vor.u32 %v5089, %v5085
        %v5091 = vrot.slane %v5090, 4
        %v5093 = vshll.u32 %v5055, 16
        %v5095 = vrot.slane %v5093, 5
        %v5096 = vsel %vm1495, %v5091, %v5095
        %v5097 = vshrl.u32 %v5055, 16
        %v5099 = vrot.slane %v5097, 4
        %v5100 = vor.u32 %v5099, %v5095
        %v5101 = vrot.slane %v5100, 4
        %v5103 = vshll.u32 %v5056, 16
        %v5105 = vrot.slane %v5103, 5
        %v5106 = vsel %vm1495, %v5101, %v5105
        %v5107 = vshrl.u32 %v5056, 16
        %v5109 = vrot.slane %v5107, 4
        %v5110 = vor.u32 %v5109, %v5105
        %v5111 = vrot.slane %v5110, 4
        %v5113 = vshll.u32 %v5057, 16
        %v5115 = vrot.slane %v5113, 5
        %v5116 = vsel %vm1495, %v5111, %v5115
        %v5118 = vshrl.u32 %v5058, 16
        %v5120 = vrot.slane %v5118, 4
        %v5121 = vshll.u32 %v5058, 16
        %v5123 = vrot.slane %v5121, 5
        %v5124 = vor.u32 %v5120, %v5123
        %v5125 = vrot.slane %v5124, 4
        %v5127 = vshll.u32 %v5059, 16
        %v5129 = vrot.slane %v5127, 5
        %v5130 = vsel %vm1495, %v5125, %v5129
        %v5131 = vshrl.u32 %v5059, 16
        %v5133 = vrot.slane %v5131, 4
        %v5134 = vor.u32 %v5133, %v5129
        %v5135 = vrot.slane %v5134, 4
        %v5137 = vshll.u32 %v5060, 16
        %v5139 = vrot.slane %v5137, 5
        %v5140 = vsel %vm1495, %v5135, %v5139
        %v5141 = vshrl.u32 %v5060, 16
        %v5143 = vrot.slane %v5141, 4
        %v5144 = vor.u32 %v5143, %v5139
        %v5145 = vrot.slane %v5144, 4
        %v5147 = vshll.u32 %v5061, 16
        %v5149 = vrot.slane %v5147, 5
        %v5150 = vsel %vm1495, %v5145, %v5149
        %v5151 = vshrl.u32 %v5061, 16
        %v5153 = vrot.slane %v5151, 4
        %v5154 = vor.u32 %v5153, %v5149
        %v5155 = vrot.slane %v5154, 4
        %v5157 = vshll.u32 %v5062, 16
        %v5159 = vrot.slane %v5157, 5
        %v5160 = vsel %vm1495, %v5155, %v5159
        %v5162 = vshrl.u32 %v5063, 16
        %v5164 = vrot.slane %v5162, 4
        %v5165 = vshll.u32 %v5063, 16
        %v5167 = vrot.slane %v5165, 5
        %v5168 = vor.u32 %v5164, %v5167
        %v5169 = vrot.slane %v5168, 4
        %v5171 = vshll.u32 %v5064, 16
        %v5173 = vrot.slane %v5171, 5
        %v5174 = vsel %vm1495, %v5169, %v5173
        %v5175 = vshrl.u32 %v5064, 16
        %v5177 = vrot.slane %v5175, 4
        %v5178 = vor.u32 %v5177, %v5173
        %v5179 = vrot.slane %v5178, 4
        %v5181 = vshll.u32 %v5065, 16
        %v5183 = vrot.slane %v5181, 5
        %v5184 = vsel %vm1495, %v5179, %v5183
        %v5185 = vshrl.u32 %v5065, 16
        %v5187 = vrot.slane %v5185, 4
        %v5188 = vor.u32 %v5187, %v5183
        %v5189 = vrot.slane %v5188, 4
        %v5191 = vshll.u32 %v5066, 16
        %v5193 = vrot.slane %v5191, 5
        %v5194 = vsel %vm1495, %v5189, %v5193
        %v5195 = vshrl.u32 %v5066, 16
        %v5197 = vrot.slane %v5195, 4
        %v5198 = vor.u32 %v5197, %v5193
        %v5199 = vrot.slane %v5198, 4
        %v5201 = vshll.u32 %v5067, 16
        %v5203 = vrot.slane %v5201, 5
        %v5204 = vsel %vm1495, %v5199, %v5203
        %v5206 = vshrl.u32 %v5068, 16
        %v5208 = vrot.slane %v5206, 4
        %v5209 = vshll.u32 %v5068, 16
        %v5211 = vrot.slane %v5209, 5
        %v5212 = vor.u32 %v5208, %v5211
        %v5213 = vrot.slane %v5212, 4
        %v5215 = vshll.u32 %v5069, 16
        %v5217 = vrot.slane %v5215, 5
        %v5218 = vsel %vm1495, %v5213, %v5217
        %v5219 = vshrl.u32 %v5069, 16
        %v5221 = vrot.slane %v5219, 4
        %v5222 = vor.u32 %v5221, %v5217
        %v5223 = vrot.slane %v5222, 4
        %v5225 = vshll.u32 %v5070, 16
        %v5227 = vrot.slane %v5225, 5
        %v5228 = vsel %vm1495, %v5223, %v5227
        %v5229 = vshrl.u32 %v5070, 16
        %v5231 = vrot.slane %v5229, 4
        %v5232 = vor.u32 %v5231, %v5227
        %v5233 = vrot.slane %v5232, 4
        %v5235 = vshll.u32 %v5071, 16
        %v5237 = vrot.slane %v5235, 5
        %v5238 = vsel %vm1495, %v5233, %v5237
        %v5239 = vshrl.u32 %v5071, 16
        %v5241 = vrot.slane %v5239, 4
        %v5242 = vor.u32 %v5241, %v5237
        %v5243 = vrot.slane %v5242, 4
        %v5245 = vshll.u32 %v5072, 16
        %v5247 = vrot.slane %v5245, 5
        %v5248 = vsel %vm1495, %v5243, %v5247
        %v5249 = vld [vmem:[%s1672] sm:$0xf]
        %v5250 = vld [vmem:[%s1672 + $0x4] sm:$0xf]
        %v5251 = vld [vmem:[%s1672 + $0x8] sm:$0xf]
        %v5252 = vld [vmem:[%s1672 + $0xc] sm:$0xf]
        %v5253 = vld [vmem:[%s1672 + $0x10] sm:$0xf]
        %v5254 = vld [vmem:[%s1672 + $0x14] sm:$0xf]
        %v5255 = vld [vmem:[%s1672 + $0x18] sm:$0xf]
        %v5256 = vld [vmem:[%s1672 + $0x1c] sm:$0xf]
        %v5257 = vld [vmem:[%s1672 + $0x20] sm:$0xf]
        %v5258 = vld [vmem:[%s1672 + $0x24] sm:$0xf]
        %v5259 = vld [vmem:[%s1672 + $0x28] sm:$0xf]
        %v5260 = vld [vmem:[%s1672 + $0x2c] sm:$0xf]
        %v5261 = vld [vmem:[%s1672 + $0x30] sm:$0xf]
        %v5262 = vld [vmem:[%s1672 + $0x34] sm:$0xf]
        %v5263 = vld [vmem:[%s1672 + $0x38] sm:$0xf]
        %v5264 = vld [vmem:[%s1672 + $0x3c] sm:$0xf]
        %v5265 = vld [vmem:[%s1672 + $0x40] sm:$0xf]
        %v5266 = vld [vmem:[%s1672 + $0x44] sm:$0xf]
        %v5267 = vld [vmem:[%s1672 + $0x48] sm:$0xf]
        %v5268 = vld [vmem:[%s1672 + $0x4c] sm:$0xf]
        %v5269 = vld [vmem:[%s1672 + $0x50] sm:$0xf]
        %v5270 = vld [vmem:[%s1672 + $0x54] sm:$0xf]
        %v5271 = vld [vmem:[%s1672 + $0x58] sm:$0xf]
        %v5272 = vld [vmem:[%s1672 + $0x5c] sm:$0xf]
        %v5273 = vunpack.c.l.b16 %v5086
        %v5274 = vunpack.c.h.b16 %v5086
        %v5275 = vunpack.c.l.b16 %v5096
        %v5276 = vunpack.c.h.b16 %v5096
        %v5277 = vunpack.c.l.b16 %v5106
        %v5278 = vunpack.c.h.b16 %v5106
        %v5279 = vunpack.c.l.b16 %v5116
        %v5280 = vunpack.c.h.b16 %v5116
        %v5281 = vunpack.c.l.b16 %v5130
        %v5282 = vunpack.c.h.b16 %v5130
        %v5283 = vunpack.c.l.b16 %v5140
        %v5284 = vunpack.c.h.b16 %v5140
        %v5285 = vunpack.c.l.b16 %v5150
        %v5286 = vunpack.c.h.b16 %v5150
        %v5287 = vunpack.c.l.b16 %v5160
        %v5288 = vunpack.c.h.b16 %v5160
        %v5289 = vunpack.c.l.b16 %v5174
        %v5290 = vunpack.c.h.b16 %v5174
        %v5291 = vunpack.c.l.b16 %v5184
        %v5292 = vunpack.c.h.b16 %v5184
        %v5293 = vunpack.c.l.b16 %v5194
        %v5294 = vunpack.c.h.b16 %v5194
        %v5295 = vunpack.c.l.b16 %v5204
        %v5296 = vunpack.c.h.b16 %v5204
        %v5297 = vunpack.c.l.b16 %v5218
        %v5298 = vunpack.c.h.b16 %v5218
        %v5299 = vunpack.c.l.b16 %v5228
        %v5300 = vunpack.c.h.b16 %v5228
        %v5301 = vunpack.c.l.b16 %v5238
        %v5302 = vunpack.c.h.b16 %v5238
        %v5303 = vunpack.c.l.b16 %v5248
        %v5304 = vunpack.c.h.b16 %v5248
        %v5305 = vpack.c.b16 %v5275, %v5273
        %v5306 = vpack.c.b16 %v5276, %v5274
        %v5307 = vpack.c.b16 %v5279, %v5277
        %v5308 = vpack.c.b16 %v5280, %v5278
        %v5309 = vpack.c.b16 %v5283, %v5281
        %v5310 = vpack.c.b16 %v5284, %v5282
        %v5311 = vpack.c.b16 %v5287, %v5285
        %v5312 = vpack.c.b16 %v5288, %v5286
        %v5313 = vpack.c.b16 %v5291, %v5289
        %v5314 = vpack.c.b16 %v5292, %v5290
        %v5315 = vpack.c.b16 %v5295, %v5293
        %v5316 = vpack.c.b16 %v5296, %v5294
        %v5317 = vpack.c.b16 %v5299, %v5297
        %v5318 = vpack.c.b16 %v5300, %v5298
        %v5319 = vpack.c.b16 %v5303, %v5301
        %v5320 = vpack.c.b16 %v5304, %v5302
        %v5353 = vunpack.c.l.b16 %v5249
        %v5354 = vunpack.c.l.b16 %v5250
        %v5355 = vunpack.c.l.b16 %v5251
        %v5356 = vunpack.c.l.b16 %v5252
        %v5357 = vunpack.c.l.b16 %v5253
        %v5358 = vunpack.c.l.b16 %v5254
        %v5359 = vunpack.c.l.b16 %v5255
        %v5360 = vunpack.c.l.b16 %v5256
        %v5361 = vunpack.c.l.b16 %v5257
        %v5362 = vunpack.c.l.b16 %v5258
        %v5363 = vunpack.c.l.b16 %v5259
        %v5364 = vunpack.c.l.b16 %v5260
        %v5365 = vunpack.c.l.b16 %v5261
        %v5366 = vunpack.c.l.b16 %v5262
        %v5367 = vunpack.c.l.b16 %v5263
        %v5368 = vunpack.c.l.b16 %v5264
        %v5369 = vunpack.c.l.b16 %v5265
        %v5370 = vunpack.c.l.b16 %v5266
        %v5371 = vunpack.c.l.b16 %v5267
        %v5372 = vunpack.c.l.b16 %v5268
        %v5373 = vunpack.c.l.b16 %v5269
        %v5374 = vunpack.c.l.b16 %v5270
        %v5375 = vunpack.c.l.b16 %v5271
        %v5376 = vunpack.c.l.b16 %v5272
        %v5377 = vpack.c.b16 %v5354, %v5353
        %v5378 = vpack.c.b16 %v5356, %v5355
        %v5379 = vpack.c.b16 %v5358, %v5357
        %v5380 = vpack.c.b16 %v5360, %v5359
        %v5381 = vpack.c.b16 %v5362, %v5361
        %v5382 = vpack.c.b16 %v5364, %v5363
        %v5383 = vpack.c.b16 %v5366, %v5365
        %v5384 = vpack.c.b16 %v5368, %v5367
        %v5385 = vpack.c.b16 %v5370, %v5369
        %v5386 = vpack.c.b16 %v5372, %v5371
        %v5387 = vpack.c.b16 %v5374, %v5373
        %v5388 = vpack.c.b16 %v5376, %v5375
        %v5402 = vsel %vm1084, %v5306, 0
        %v5405 = vsel %vm1084, %v5308, 0
        %v5408 = vsel %vm1084, %v5310, 0
        %v5411 = vsel %vm1084, %v5312, 0
        %v5414 = vsel %vm1084, %v5314, 0
        %v5417 = vsel %vm1084, %v5316, 0
        %v5420 = vsel %vm1084, %v5318, 0
        %v5423 = vsel %vm1084, %v5320, 0
        %5425 = vmatpush.bf16.msra.mxu0 %v5384
        %5426 = vmatpush.bf16.msra.mxu0 %v5383
        %5427 = vmatpush.bf16.msra.mxu0 %v5382
        %5428 = vmatpush.bf16.msra.mxu0 %v5381
        %5429 = vmatpush.bf16.msra.mxu0 %v5380
        %5430 = vmatpush.bf16.msra.mxu0 %v5379
        %5431 = vmatpush.bf16.msra.mxu0 %v5378
        %5432 = vmatpush.bf16.msra.mxu0 %v5377
        %5433 = vmatmul.bf16.gmra.mxu0 %v5305
        %v5434 = vpop.f32.mrf.mxu0
        %v5435 = vadd.f32 0.0, %v5434
        %v5436 = vpop.f32.mrf.mxu0
        %v5437 = vadd.f32 0.0, %v5436
        %5438 = vmatmul.bf16.gmra.mxu0 %v5307
        %v5439 = vpop.f32.mrf.mxu0
        %v5440 = vadd.f32 0.0, %v5439
        %v5441 = vpop.f32.mrf.mxu0
        %v5442 = vadd.f32 0.0, %v5441
        %5443 = vmatmul.bf16.gmra.mxu0 %v5309
        %v5444 = vpop.f32.mrf.mxu0
        %v5445 = vadd.f32 0.0, %v5444
        %v5446 = vpop.f32.mrf.mxu0
        %v5447 = vadd.f32 0.0, %v5446
        %5448 = vmatmul.bf16.gmra.mxu0 %v5311
        %v5449 = vpop.f32.mrf.mxu0
        %v5450 = vadd.f32 0.0, %v5449
        %v5451 = vpop.f32.mrf.mxu0
        %v5452 = vadd.f32 0.0, %v5451
        %5453 = vmatmul.bf16.gmra.mxu0 %v5313
        %v5454 = vpop.f32.mrf.mxu0
        %v5455 = vadd.f32 0.0, %v5454
        %v5456 = vpop.f32.mrf.mxu0
        %v5457 = vadd.f32 0.0, %v5456
        %5458 = vmatmul.bf16.gmra.mxu0 %v5315
        %v5459 = vpop.f32.mrf.mxu0
        %v5460 = vadd.f32 0.0, %v5459
        %v5461 = vpop.f32.mrf.mxu0
        %v5462 = vadd.f32 0.0, %v5461
        %5463 = vmatmul.bf16.gmra.mxu0 %v5317
        %v5464 = vpop.f32.mrf.mxu0
        %v5465 = vadd.f32 0.0, %v5464
        %v5466 = vpop.f32.mrf.mxu0
        %v5467 = vadd.f32 0.0, %v5466
        %5468 = vmatmul.bf16.gmra.mxu0 %v5319
        %v5469 = vpop.f32.mrf.mxu0
        %v5470 = vadd.f32 0.0, %v5469
        %v5471 = vpop.f32.mrf.mxu0
        %v5472 = vadd.f32 0.0, %v5471
        %5473 = vdwg.mxu0
        %5474 = vmatpush.bf16.msra.mxu0 0
        %5475 = vmatpush.bf16.msra.mxu0 0
        %5476 = vmatpush.bf16.msra.mxu0 0
        %5477 = vmatpush.bf16.msra.mxu0 0
        %5478 = vmatpush.bf16.msra.mxu0 %v5388
        %5479 = vmatpush.bf16.msra.mxu0 %v5387
        %5480 = vmatpush.bf16.msra.mxu0 %v5386
        %5481 = vmatpush.bf16.msra.mxu0 %v5385
        %5482 = vmatmul.bf16.gmra.mxu0 %v5402
        %v5483 = vpop.f32.mrf.mxu0
        %v5484 = vadd.f32 %v5435, %v5483
        %v5485 = vpop.f32.mrf.mxu0
        %v5486 = vadd.f32 %v5437, %v5485
        %5487 = vmatmul.bf16.gmra.mxu0 %v5405
        %v5488 = vpop.f32.mrf.mxu0
        %v5489 = vadd.f32 %v5440, %v5488
        %v5490 = vpop.f32.mrf.mxu0
        %v5491 = vadd.f32 %v5442, %v5490
        %5492 = vmatmul.bf16.gmra.mxu0 %v5408
        %v5493 = vpop.f32.mrf.mxu0
        %v5494 = vadd.f32 %v5445, %v5493
        %v5495 = vpop.f32.mrf.mxu0
        %v5496 = vadd.f32 %v5447, %v5495
        %5497 = vmatmul.bf16.gmra.mxu0 %v5411
        %v5498 = vpop.f32.mrf.mxu0
        %v5499 = vadd.f32 %v5450, %v5498
        %v5500 = vpop.f32.mrf.mxu0
        %v5501 = vadd.f32 %v5452, %v5500
        %5502 = vmatmul.bf16.gmra.mxu0 %v5414
        %v5503 = vpop.f32.mrf.mxu0
        %v5504 = vadd.f32 %v5455, %v5503
        %v5505 = vpop.f32.mrf.mxu0
        %v5506 = vadd.f32 %v5457, %v5505
        %5507 = vmatmul.bf16.gmra.mxu0 %v5417
        %v5508 = vpop.f32.mrf.mxu0
        %v5509 = vadd.f32 %v5460, %v5508
        %v5510 = vpop.f32.mrf.mxu0
        %v5511 = vadd.f32 %v5462, %v5510
        %5512 = vmatmul.bf16.gmra.mxu0 %v5420
        %v5513 = vpop.f32.mrf.mxu0
        %v5514 = vadd.f32 %v5465, %v5513
        %v5515 = vpop.f32.mrf.mxu0
        %v5516 = vadd.f32 %v5467, %v5515
        %5517 = vmatmul.bf16.gmra.mxu0 %v5423
        %v5518 = vpop.f32.mrf.mxu0
        %v5519 = vadd.f32 %v5470, %v5518
        %v5520 = vpop.f32.mrf.mxu0
        %v5521 = vadd.f32 %v5472, %v5520
        %5522 = vdwg.mxu0
        %v5523 = vadd.f32 %v5014, %v5484
        %v5524 = vadd.f32 %v5016, %v5486
        %v5525 = vadd.f32 %v5019, %v5489
        %v5526 = vadd.f32 %v5021, %v5491
        %v5527 = vadd.f32 %v5024, %v5494
        %v5528 = vadd.f32 %v5026, %v5496
        %v5529 = vadd.f32 %v5029, %v5499
        %v5530 = vadd.f32 %v5031, %v5501
        %v5531 = vadd.f32 %v5034, %v5504
        %v5532 = vadd.f32 %v5036, %v5506
        %v5533 = vadd.f32 %v5039, %v5509
        %v5534 = vadd.f32 %v5041, %v5511
        %v5535 = vadd.f32 %v5044, %v5514
        %v5536 = vadd.f32 %v5046, %v5516
        %v5537 = vadd.f32 %v5049, %v5519
        %v5538 = vadd.f32 %v5051, %v5521
        %v5539 = vpack.c.bf16 %v5523, %v5523
        %v5540 = vpack.c.bf16 %v5524, %v5524
        %v5541 = vpack.c.bf16 %v5525, %v5525
        %v5542 = vpack.c.bf16 %v5526, %v5526
        %v5543 = vpack.c.bf16 %v5527, %v5527
        %v5544 = vpack.c.bf16 %v5528, %v5528
        %v5545 = vpack.c.bf16 %v5529, %v5529
        %v5546 = vpack.c.bf16 %v5530, %v5530
        %v5547 = vpack.c.bf16 %v5531, %v5531
        %v5548 = vpack.c.bf16 %v5532, %v5532
        %v5549 = vpack.c.bf16 %v5533, %v5533
        %v5550 = vpack.c.bf16 %v5534, %v5534
        %v5551 = vpack.c.bf16 %v5535, %v5535
        %v5552 = vpack.c.bf16 %v5536, %v5536
        %v5553 = vpack.c.bf16 %v5537, %v5537
        %v5554 = vpack.c.bf16 %v5538, %v5538
        %5555 = vst [vmem:[%s851 + $0xc0] sm:$0xf] %v5539
        %5556 = vst [vmem:[%s851 + $0xc4] sm:$0xf] %v5540
        %5557 = vst [vmem:[%s851 + $0xc8] sm:$0xf] %v5541
        %5558 = vst [vmem:[%s851 + $0xcc] sm:$0xf] %v5542
        %5559 = vst [vmem:[%s851 + $0xd0] sm:$0xf] %v5543
        %5560 = vst [vmem:[%s851 + $0xd4] sm:$0xf] %v5544
        %5561 = vst [vmem:[%s851 + $0xd8] sm:$0xf] %v5545
        %5562 = vst [vmem:[%s851 + $0xdc] sm:$0xf] %v5546
        %5563 = vst [vmem:[%s851 + $0xe0] sm:$0xf] %v5547
        %5564 = vst [vmem:[%s851 + $0xe4] sm:$0xf] %v5548
        %5565 = vst [vmem:[%s851 + $0xe8] sm:$0xf] %v5549
        %5566 = vst [vmem:[%s851 + $0xec] sm:$0xf] %v5550
        %5567 = vst [vmem:[%s851 + $0xf0] sm:$0xf] %v5551
        %5568 = vst [vmem:[%s851 + $0xf4] sm:$0xf] %v5552
        %5569 = vst [vmem:[%s851 + $0xf8] sm:$0xf] %v5553
        %5570 = vst [vmem:[%s851 + $0xfc] sm:$0xf] %v5554
        %v5571 = vadd.f32 %v5523, %v5524
        %v5572 = vadd.f32 %v5571, %v5525
        %v5573 = vadd.f32 %v5572, %v5526
        %v5574 = vadd.f32 %v5573, %v5527
        %v5575 = vadd.f32 %v5574, %v5528
        %v5576 = vadd.f32 %v5575, %v5529
        %v5577 = vadd.f32 %v5576, %v5530
        %v5578 = vadd.f32 %v5577, %v5531
        %v5579 = vadd.f32 %v5578, %v5532
        %v5580 = vadd.f32 %v5579, %v5533
        %v5581 = vadd.f32 %v5580, %v5534
        %v5582 = vadd.f32 %v5581, %v5535
        %v5583 = vadd.f32 %v5582, %v5536
        %v5584 = vadd.f32 %v5583, %v5537
        %v5585 = vadd.f32 %v5584, %v5538
        %v5586 = vrot.slane %v5585, 4
        %v5587 = vadd.f32 %v5585, %v5586
        %v5588 = vrot.slane %v5587, 2
        %v5589 = vadd.f32 %v5587, %v5588
        %v5590 = vrot.slane %v5589, 1
        %v5591 = vadd.f32 %v5589, %v5590
        %v5592 = vadd.f32 %v4400, %v5591
        %v5593 = vmul.f32 %v5523, %v5523
        %v5594 = vmul.f32 %v5524, %v5524
        %v5595 = vmul.f32 %v5525, %v5525
        %v5596 = vmul.f32 %v5526, %v5526
        %v5597 = vmul.f32 %v5527, %v5527
        %v5598 = vmul.f32 %v5528, %v5528
        %v5599 = vmul.f32 %v5529, %v5529
        %v5600 = vmul.f32 %v5530, %v5530
        %v5601 = vmul.f32 %v5531, %v5531
        %v5602 = vmul.f32 %v5532, %v5532
        %v5603 = vmul.f32 %v5533, %v5533
        %v5604 = vmul.f32 %v5534, %v5534
        %v5605 = vmul.f32 %v5535, %v5535
        %v5606 = vmul.f32 %v5536, %v5536
        %v5607 = vmul.f32 %v5537, %v5537
        %v5608 = vmul.f32 %v5538, %v5538
        %v5609 = vadd.f32 %v5593, %v5594
        %v5610 = vadd.f32 %v5609, %v5595
        %v5611 = vadd.f32 %v5610, %v5596
        %v5612 = vadd.f32 %v5611, %v5597
        %v5613 = vadd.f32 %v5612, %v5598
        %v5614 = vadd.f32 %v5613, %v5599
        %v5615 = vadd.f32 %v5614, %v5600
        %v5616 = vadd.f32 %v5615, %v5601
        %v5617 = vadd.f32 %v5616, %v5602
        %v5618 = vadd.f32 %v5617, %v5603
        %v5619 = vadd.f32 %v5618, %v5604
        %v5620 = vadd.f32 %v5619, %v5605
        %v5621 = vadd.f32 %v5620, %v5606
        %v5622 = vadd.f32 %v5621, %v5607
        %v5623 = vadd.f32 %v5622, %v5608
        %v5624 = vrot.slane %v5623, 4
        %v5625 = vadd.f32 %v5623, %v5624
        %v5626 = vrot.slane %v5625, 2
        %v5627 = vadd.f32 %v5625, %v5626
        %v5628 = vrot.slane %v5627, 1
        %v5629 = vadd.f32 %v5627, %v5628
        %v5630 = vadd.f32 %v4438, %v5629
        %vm5631 = vcmask 1040384
        %v5632 = vsel %vm5631, %v5592, %v5630
        %vm5633 = vcmask 1041408
        %v5634 = vsel %vm5633, %v5632, 0.0
        %5635 = vst [vmem:[%s856] sm:$0xff] %v5634
        %s5636 = smul.u32 64, %s15
        %p5637 = scmp.lt.s32.totalorder %s5636, 255
        %s5638 = scalar_select %p5637, %s5636, 255
        %s5639 = smul.addr %s5638, 4
        %s5640 = scalar_lea.vmem %s2, %s5639
        %p5641 = scmp.lt.s32.totalorder %s15, 3
        %s5642 = scalar_select %p5641, %s15, 3
        %s5643 = smul.addr %s5642, 8
        %s5644 = scalar_lea.vmem %s3, %s5643
        // Predicated region
        $region67: #{conv_block_forward.2} parent=61 // pred_check
          %p5645 = pneg %p80
        $region68: #{conv_block_forward.2} parent=61 // pred_check_branch
          %5647 = sbr.rel (%p5645) target = $region70
        $region69: #{conv_block_forward.2} parent=61 // pred_region
          %s5648 = smul.u32 64, %s15
        $region70: #{conv_block_forward.2} parent=61 // pred_fallthru
          _
        // Predicated region
        $region71: #{conv_block_forward.2} parent=61 // pred_check
          %p5649 = pneg %p106
        $region72: #{conv_block_forward.2} parent=61 // pred_check_branch
          %5651 = sbr.rel (%p5649) target = $region74
        $region73: #{conv_block_forward.2} parent=61 // pred_region
          _
        $region74: #{conv_block_forward.2} parent=61 // pred_fallthru
          _
      $region62: #{conv_block_forward.2} parent=5 // pred_fallthru
        _
      %p5652 = scmp.le.s32.totalorder 2, %s10
      // Predicated region
      $region75: #{conv_block_forward.2} parent=5 // pred_check
        %p5653 = pneg %p5652
      $region76: #{conv_block_forward.2} parent=5 // pred_check_branch
        %5655 = sbr.rel (%p5653) target = $region78
      $region77: #{conv_block_forward.2} parent=5 // pred_region
        %s5656 = ssub.s32 %s10, 2
        // Predicated region
        $region79: #{conv_block_forward.2} parent=77 // pred_check
          %p5657 = pneg %p86
        $region80: #{conv_block_forward.2} parent=77 // pred_check_branch
          %5659 = sbr.rel (%p5657) target = $region82
        $region81: #{conv_block_forward.2} parent=77 // pred_region
          %s5660 = smul.u32 64, %s16
          %p5661 = scmp.lt.s32.totalorder %s5660, 255
          %s5662 = scalar_select %p5661, %s5660, 255
          %s5663 = smul.addr %s5662, 4
          %s5664 = scalar_lea.vmem %s2, %s5663
        $region82: #{conv_block_forward.2} parent=77 // pred_fallthru
          _
        // Predicated region
        $region83: #{conv_block_forward.2} parent=77 // pred_check
          %p5665 = pneg %p112
        $region84: #{conv_block_forward.2} parent=77 // pred_check_branch
          %5667 = sbr.rel (%p5665) target = $region86
        $region85: #{conv_block_forward.2} parent=77 // pred_region
          %p5668 = scmp.lt.s32.totalorder %s16, 3
          %s5669 = scalar_select %p5668, %s16, 3
          %s5670 = smul.addr %s5669, 8
          %s5671 = scalar_lea.vmem %s3, %s5670
        $region86: #{conv_block_forward.2} parent=77 // pred_fallthru
          _
      $region78: #{conv_block_forward.2} parent=5 // pred_fallthru
        _
    $region6: #{conv_block_forward.2} parent=1 // loop_footer
      %s14 = sadd.s32 1, %s10
    $region7: #{conv_block_forward.2} parent=1 // loop_footer_branch
      %9 = sbr.rel target = $region3
    $region8: #{conv_block_forward.2} parent=1 // loop_exit
      _

</llo_original>
